<compile_context>
chip_gen: v7x
topology: tpu7x:2x2x1
jax: 0.10.0
libtpu: 0.0.40
codegen_flags: <defaults>
</compile_context>

<pallas_src>
import functools

import jax
import jax.numpy as jnp
from jax.experimental import pallas as pl
from jax.experimental.pallas import tpu as pltpu

LANE = 128                         # lane-padded width for feature / hidden / class dims
NEG_INF = -1e30                    # class-padding mask value baked into b2
FUSED_ADJ_BYTES_LIMIT = 30 << 20   # bf16 Ahat budget for the VMEM-resident fused path
                                   # (~n_pad <= 3.9k; covers Cora/Citeseer, safe on v7x)


def _round_up(x, m):
    return (x + m - 1) // m * m


def _pick_tm(n_pad):
    """Largest row tile (512 preferred, per review) that divides the padded row count."""
    for t in (512, 256, 128):
        if n_pad % t == 0:
            return t
    return 128


def _vmem_limit(working_bytes):
    """Right-sized scoped-VMEM limit: ~1.25x working set, floored/capped for all gens."""
    return int(min(max(working_bytes * 5 // 4 + (4 << 20), 16 << 20), 60 << 20))


# --------------------------- kernels ---------------------------

def _proj_kernel(x_ref, w1_ref, xw_ref):
    """xw_tile = x_tile @ W1   (bf16 operands, f32 MXU accumulation, bf16 out)."""
    xw_ref[...] = jnp.dot(
        x_ref[...], w1_ref[...], preferred_element_type=jnp.float32
    ).astype(xw_ref.dtype)


def _fused_agg_kernel(adj_ref, xw_ref, b1_ref, w2_ref, b2_ref, out_ref):
    """Both GCN aggregations with Ahat resident in VMEM (read from HBM once).

    pass 1: hw  = ReLU(Ahat @ xw + b1) @ W2
    pass 2: out = log_softmax(Ahat @ hw + b2)   (padded class lanes carry b2 = -1e30)
    """
    adj = adj_ref[...]
    h = jnp.dot(adj, xw_ref[...], preferred_element_type=jnp.float32)
    h = jnp.maximum(h + b1_ref[...], 0.0)
    hw = jnp.dot(h.astype(w2_ref.dtype), w2_ref[...],
                 preferred_element_type=jnp.float32).astype(adj.dtype)
    o = jnp.dot(adj, hw, preferred_element_type=jnp.float32) + b2_ref[...]
    m = jnp.max(o, axis=1, keepdims=True)
    z = o - m
    lse = jnp.log(jnp.sum(jnp.exp(z), axis=1, keepdims=True))
    out_ref[...] = z - lse


def _layer1_kernel(adj_ref, xw_ref, b1_ref, w2_ref, hw_ref):
    """Streaming fallback stage 2: hw_tile = ReLU(Ahat_tile @ xw + b1) @ W2."""
    h = jnp.dot(adj_ref[...], xw_ref[...], preferred_element_type=jnp.float32)
    h = jnp.maximum(h + b1_ref[...], 0.0)
    hw_ref[...] = jnp.dot(
        h.astype(w2_ref.dtype), w2_ref[...], preferred_element_type=jnp.float32
    ).astype(hw_ref.dtype)


def _layer2_kernel(adj_ref, hw_ref, b2_ref, out_ref):
    """Streaming fallback stage 3: out_tile = log_softmax(Ahat_tile @ hw + b2)."""
    o = jnp.dot(adj_ref[...], hw_ref[...], preferred_element_type=jnp.float32)
    o = o + b2_ref[...]          # padded class lanes carry -1e30 -> masked for free
    m = jnp.max(o, axis=1, keepdims=True)
    z = o - m
    lse = jnp.log(jnp.sum(jnp.exp(z), axis=1, keepdims=True))
    out_ref[...] = z - lse


# --------------------------- pallas_call builders ---------------------------

def _project(x_p, w1_p):
    """xw = x @ W1, row-tiled streaming (x never fully resident)."""
    n_pad, f_pad = x_p.shape
    hp = w1_p.shape[1]
    tm = _pick_tm(n_pad)
    r = n_pad // tm
    working = 2 * (tm * f_pad * 2) + 2 * (f_pad * hp * 2) + 2 * (tm * hp * 2)
    return pl.pallas_call(
        _proj_kernel,
        out_shape=jax.ShapeDtypeStruct((n_pad, hp), jnp.bfloat16),
        grid=(r,),
        in_specs=[
            pl.BlockSpec((tm, f_pad), lambda i: (i, 0)),
            pl.BlockSpec((f_pad, hp), lambda i: (0, 0)),
        ],
        out_specs=pl.BlockSpec((tm, hp), lambda i: (i, 0)),
        compiler_params=pltpu.CompilerParams(
            dimension_semantics=("parallel",),
            vmem_limit_bytes=_vmem_limit(working),
        ),
        cost_estimate=pl.CostEstimate(
            flops=2 * n_pad * f_pad * hp,
            transcendentals=0,
            bytes_accessed=2 * (n_pad * f_pad + f_pad * hp + n_pad * hp),
        ),
    )(x_p, w1_p)


def _fused_aggregate(adj_p, xw, b1_p, w2_p, b2_p):
    """Both aggregations in one call; Ahat is read from HBM exactly once."""
    n_pad = adj_p.shape[0]
    hp = xw.shape[1]
    cp = w2_p.shape[1]
    working = (n_pad * n_pad * 2            # Ahat (bf16, single buffer, no grid)
               + n_pad * hp * 2             # xw
               + hp * cp * 2 + 2 * cp * 4   # W2, b1, b2
               + n_pad * cp * 4             # output (f32)
               + 2 * n_pad * hp * 4)        # f32 intermediates headroom
    vmem_spec = pl.BlockSpec(memory_space=pltpu.MemorySpace.VMEM)
    return pl.pallas_call(
        _fused_agg_kernel,
        out_shape=jax.ShapeDtypeStruct((n_pad, cp), jnp.float32),
        in_specs=[vmem_spec] * 5,
        out_specs=vmem_spec,
        compiler_params=pltpu.CompilerParams(vmem_limit_bytes=_vmem_limit(working)),
        cost_estimate=pl.CostEstimate(
            flops=2 * n_pad * n_pad * hp + 2 * n_pad * hp * cp + 2 * n_pad * n_pad * cp,
            transcendentals=n_pad * cp + n_pad,
            bytes_accessed=n_pad * n_pad * 2 + n_pad * hp * 2 + hp * cp * 2
            + n_pad * cp * 4,
        ),
    )(adj_p, xw, b1_p, w2_p, b2_p)


def _streaming_aggregate(adj_p, xw, b1_p, w2_p, b2_p):
    """Fallback for Ahat too large for VMEM: row-tiled streaming (tm=512)."""
    n_pad = adj_p.shape[0]
    hp = xw.shape[1]
    cp = w2_p.shape[1]
    tm = _pick_tm(n_pad)
    r = n_pad // tm
    bf16 = jnp.bfloat16
    cparams = lambda working: pltpu.CompilerParams(     # noqa: E731
        dimension_semantics=("parallel",),
        vmem_limit_bytes=_vmem_limit(working),
    )

    # stage 2: hw = ReLU(Ahat @ xw + b1) @ W2
    hw = pl.pallas_call(
        _layer1_kernel,
        out_shape=jax.ShapeDtypeStruct((n_pad, cp), bf16),
        grid=(r,),
        in_specs=[
            pl.BlockSpec((tm, n_pad), lambda i: (i, 0)),   # Ahat row tile (streamed)
            pl.BlockSpec((n_pad, hp), lambda i: (0, 0)),   # xw (resident)
            pl.BlockSpec((1, hp), lambda i: (0, 0)),       # b1
            pl.BlockSpec((hp, cp), lambda i: (0, 0)),      # W2
        ],
        out_specs=pl.BlockSpec((tm, cp), lambda i: (i, 0)),
        compiler_params=cparams(2 * tm * n_pad * 2 + 2 * n_pad * hp * 2
                                + hp * cp * 2 + 2 * tm * cp * 2),
    )(adj_p, xw, b1_p, w2_p)

    # stage 3: out = log_softmax(Ahat @ hw + b2)
    out_pad = pl.pallas_call(
        _layer2_kernel,
        out_shape=jax.ShapeDtypeStruct((n_pad, cp), jnp.float32),
        grid=(r,),
        in_specs=[
            pl.BlockSpec((tm, n_pad), lambda i: (i, 0)),   # Ahat row tile (streamed)
            pl.BlockSpec((n_pad, cp), lambda i: (0, 0)),   # hw (resident)
            pl.BlockSpec((1, cp), lambda i: (0, 0)),       # b2 (padded lanes = -1e30)
        ],
        out_specs=pl.BlockSpec((tm, cp), lambda i: (i, 0)),
        compiler_params=cparams(2 * tm * n_pad * 2 + 2 * n_pad * cp * 2
                                + cp * 4 + 2 * tm * cp * 4),
    )(adj_p, hw, b2_p)
    return out_pad


# --------------------------- forward (jitted; inputs pre-padded) ---------------------------

@functools.partial(jax.jit, static_argnames=("n", "c", "force_streaming"))
def gcn_forward(adj_p, x_p, w1_p, b1_p, w2_p, b2_p, *, n, c, force_streaming=False):
    xw = _project(x_p, w1_p)
    n_pad = adj_p.shape[0]
    if force_streaming or (n_pad * n_pad * 2 > FUSED_ADJ_BYTES_LIMIT):
        out_pad = _streaming_aggregate(adj_p, xw, b1_p, w2_p, b2_p)
    else:
        out_pad = _fused_aggregate(adj_p, xw, b1_p, w2_p, b2_p)
    return out_pad[:n, :c]


# --------------------------- one-time (outside jit) padding / casting ---------------------------

def prepare_gcn_inputs(adj_hat, x):
    """Pad + cast the graph once, outside the jitted forward."""
    n, f = x.shape
    n_pad = _round_up(n, LANE)
    f_pad = _round_up(f, LANE)
    bf16 = jnp.bfloat16
    adj_p = jnp.zeros((n_pad, n_pad), bf16).at[:n, :n].set(adj_hat.astype(bf16))
    x_p = jnp.zeros((n_pad, f_pad), bf16).at[:n, :f].set(x.astype(bf16))
    return adj_p, x_p


def prepare_gcn_params(w1, b1, w2, b2):
    """Pad + cast the parameters once, outside the jitted forward."""
    f, hidden = w1.shape
    c = w2.shape[1]
    assert hidden <= LANE and c <= LANE
    f_pad = _round_up(f, LANE)
    hp, cp = LANE, LANE
    bf16 = jnp.bfloat16
    w1_p = jnp.zeros((f_pad, hp), bf16).at[:f, :hidden].set(w1.astype(bf16))
    b1_p = jnp.zeros((1, hp), jnp.float32).at[:, :hidden].set(
        b1.reshape(1, -1).astype(jnp.float32))
    w2_p = jnp.zeros((hp, cp), bf16).at[:hidden, :c].set(w2.astype(bf16))
    # Bake the class-padding mask into b2: padded lanes of Ahat@hw are exactly 0,
    # so adding -1e30 there excludes them from the softmax with no in-kernel mask.
    b2_p = jnp.full((1, cp), NEG_INF, jnp.float32).at[:, :c].set(
        b2.reshape(1, -1).astype(jnp.float32))
    return w1_p, b1_p, w2_p, b2_p


# --------------------------- graph / param construction (JAX glue) ---------------------------

def build_normalized_adjacency(edge_index, num_nodes):
    """Dense Ahat = D^-1/2 (A + I) D^-1/2 (GCNConv default normalization)."""
    src, dst = edge_index
    a = jnp.zeros((num_nodes, num_nodes), jnp.float32)
    a = a.at[src, dst].set(1.0)
    a = jnp.maximum(a, a.T)                                       # symmetrize (undirected)
    a = jnp.maximum(a, jnp.eye(num_nodes, dtype=jnp.float32))     # add self-loops
    deg = jnp.sum(a, axis=1)
    dinv = jax.lax.rsqrt(jnp.maximum(deg, 1.0))                   # guard deg=0
    return dinv[:, None] * a * dinv[None, :]


def glorot(key, shape):
    fan_in, fan_out = shape
    limit = jnp.sqrt(6.0 / (fan_in + fan_out))
    return jax.random.uniform(key, shape, jnp.float32, -limit, limit)


if __name__ == "__main__":
    # Small synthetic "Cora-like" graph (Planetoid dataset is not loaded in-script).
    N = 512          # number of nodes
    F_IN = 96        # node feature width (not a multiple of 128 -> exercises F padding)
    HIDDEN = 16      # fixed by the module
    C = 7            # Cora-like number of classes
    E = 4096         # number of random edges

    key = jax.random.PRNGKey(0)
    k_x, k_src, k_dst, k_w1, k_w2, k_b1, k_b2 = jax.random.split(key, 7)

    x = jax.random.normal(k_x, (N, F_IN), jnp.float32)
    src = jax.random.randint(k_src, (E,), 0, N)
    dst = jax.random.randint(k_dst, (E,), 0, N)
    adj_hat = build_normalized_adjacency((src, dst), N)

    w1 = glorot(k_w1, (F_IN, HIDDEN))
    b1 = 0.05 * jax.random.normal(k_b1, (HIDDEN,), jnp.float32)
    w2 = glorot(k_w2, (HIDDEN, C))
    b2 = 0.05 * jax.random.normal(k_b2, (C,), jnp.float32)

    # One-time padding / bf16 cast (hoisted out of the jitted forward).
    adj_p, x_p = prepare_gcn_inputs(adj_hat, x)
    w1_p, b1_p, w2_p, b2_p = prepare_gcn_params(w1, b1, w2, b2)

    # Fused (Ahat read once, VMEM-resident) path — the default at this scale.
    out_fused = jax.block_until_ready(
        gcn_forward(adj_p, x_p, w1_p, b1_p, w2_p, b2_p, n=N, c=C))
    # Streaming fallback path (used when Ahat exceeds the VMEM budget) — also verified.
    out_stream = jax.block_until_ready(
        gcn_forward(adj_p, x_p, w1_p, b1_p, w2_p, b2_p, n=N, c=C,
                    force_streaming=True))

    # Pure-JAX f32 reference of the same forward pass.
    h_ref = jnp.maximum(adj_hat @ (x @ w1) + b1[None, :], 0.0)
    o_ref = adj_hat @ (h_ref @ w2) + b2[None, :]
    ref = jax.nn.log_softmax(o_ref, axis=1)

    for out in (out_fused, out_stream):
        assert out.shape == (N, C)
        row_sums = jnp.exp(out).sum(axis=1)
        assert bool(jnp.all(jnp.abs(row_sums - 1.0) < 1e-3))
        max_err = float(jnp.max(jnp.abs(out - ref)))
        assert max_err < 0.1, f"max abs err vs f32 reference: {max_err}"
    assert float(jnp.max(jnp.abs(out_fused - out_stream))) < 5e-2

    print("KERNEL_OK")
</pallas_src>

<mosaic_0001>
module attributes {stable_mosaic.version = 11 : i64} {
  func.func @_proj_kernel(%arg0: i32, %arg1: memref<512x128xbf16, #tpu.memory_space<vmem>>, %arg2: memref<128x128xbf16, #tpu.memory_space<vmem>>, %arg3: memref<512x128xbf16, #tpu.memory_space<vmem>>) attributes {dimension_semantics = [#tpu.dimension_semantics<parallel>], iteration_bounds = array<i64: 1>, scalar_prefetch = 0 : i64, scratch_operands = 0 : i64, tpu.core_type = #tpu.core_type<tc>, window_params = [{transform_indices = @transform_0, window_bounds = array<i64: 512, 128>}, {pipeline_mode = #tpu.pipeline_mode<synchronous>, transform_indices = @transform_1, window_bounds = array<i64: 128, 128>}, {transform_indices = @transform_2, window_bounds = array<i64: 512, 128>}]} {
    %c0 = arith.constant 0 : index
    %c0_0 = arith.constant 0 : index
    %0 = vector.load %arg1[%c0, %c0_0] : memref<512x128xbf16, #tpu.memory_space<vmem>>, vector<512x128xbf16>
    %c0_1 = arith.constant 0 : index
    %c0_2 = arith.constant 0 : index
    %1 = vector.load %arg2[%c0_1, %c0_2] : memref<128x128xbf16, #tpu.memory_space<vmem>>, vector<128x128xbf16>
    %cst = arith.constant dense<0.000000e+00> : vector<512x128xf32>
    %2 = tpu.matmul %0, %1, %cst {dimension_numbers = #tpu.dot_dimension_numbers<[1], [0], [0], [1], [0, 0, 1, 1], [], []>} : vector<512x128xbf16>, vector<128x128xbf16>, vector<512x128xf32> -> vector<512x128xf32>
    %3 = arith.truncf %2 : vector<512x128xf32> to vector<512x128xbf16>
    %c0_3 = arith.constant 0 : index
    %c0_4 = arith.constant 0 : index
    %4 = vector.load %arg3[%c0_3, %c0_4] : memref<512x128xbf16, #tpu.memory_space<vmem>>, vector<512x128xbf16>
    tpu.vector_store %arg3[%c0_3, %c0_4], %3 {strides = array<i32>} : memref<512x128xbf16, #tpu.memory_space<vmem>>, vector<512x128xbf16>,
    return
  }
  func.func @transform_0(%arg0: i32) -> (i32, i32) {
    %c0_i32 = arith.constant 0 : i32
    %c0_i32_0 = arith.constant 0 : i32
    return %arg0, %c0_i32 : i32, i32
  }
  func.func @transform_1(%arg0: i32) -> (i32, i32) {
    %c0_i32 = arith.constant 0 : i32
    %c0_i32_0 = arith.constant 0 : i32
    %c0_i32_1 = arith.constant 0 : i32
    return %c0_i32, %c0_i32_0 : i32, i32
  }
  func.func @transform_2(%arg0: i32) -> (i32, i32) {
    %c0_i32 = arith.constant 0 : i32
    %c0_i32_0 = arith.constant 0 : i32
    return %arg0, %c0_i32 : i32, i32
  }
}

module attributes {stable_mosaic.version = 11 : i64} {
  func.func @_fused_agg_kernel(%arg0: memref<512x512xbf16, #tpu.memory_space<vmem>>, %arg1: memref<512x128xbf16, #tpu.memory_space<vmem>>, %arg2: memref<1x128xf32, #tpu.memory_space<vmem>>, %arg3: memref<128x128xbf16, #tpu.memory_space<vmem>>, %arg4: memref<1x128xf32, #tpu.memory_space<vmem>>, %arg5: memref<512x128xf32, #tpu.memory_space<vmem>>) attributes {dimension_semantics = [], scalar_prefetch = 0 : i64, scratch_operands = 0 : i64, tpu.core_type = #tpu.core_type<tc>} {
    %c0 = arith.constant 0 : index
    %c0_0 = arith.constant 0 : index
    %0 = vector.load %arg0[%c0, %c0_0] : memref<512x512xbf16, #tpu.memory_space<vmem>>, vector<512x512xbf16>
    %c0_1 = arith.constant 0 : index
    %c0_2 = arith.constant 0 : index
    %1 = vector.load %arg1[%c0_1, %c0_2] : memref<512x128xbf16, #tpu.memory_space<vmem>>, vector<512x128xbf16>
    %cst = arith.constant dense<0.000000e+00> : vector<512x128xf32>
    %2 = tpu.matmul %0, %1, %cst {dimension_numbers = #tpu.dot_dimension_numbers<[1], [0], [0], [1], [0, 0, 1, 1], [], []>} : vector<512x512xbf16>, vector<512x128xbf16>, vector<512x128xf32> -> vector<512x128xf32>
    %c0_3 = arith.constant 0 : index
    %c0_4 = arith.constant 0 : index
    %3 = vector.load %arg2[%c0_3, %c0_4] : memref<1x128xf32, #tpu.memory_space<vmem>>, vector<1x128xf32>
    %4 = vector.broadcast %3 : vector<1x128xf32> to vector<512x128xf32>
    %5 = arith.addf %2, %4 : vector<512x128xf32>
    %cst_5 = arith.constant 0.000000e+00 : f32
    %6 = vector.broadcast %cst_5 : f32 to vector<512x128xf32>
    %7 = arith.maximumf %5, %6 : vector<512x128xf32>
    %8 = arith.truncf %7 : vector<512x128xf32> to vector<512x128xbf16>
    %c0_6 = arith.constant 0 : index
    %c0_7 = arith.constant 0 : index
    %9 = vector.load %arg3[%c0_6, %c0_7] : memref<128x128xbf16, #tpu.memory_space<vmem>>, vector<128x128xbf16>
    %cst_8 = arith.constant dense<0.000000e+00> : vector<512x128xf32>
    %10 = tpu.matmul %8, %9, %cst_8 {dimension_numbers = #tpu.dot_dimension_numbers<[1], [0], [0], [1], [0, 0, 1, 1], [], []>} : vector<512x128xbf16>, vector<128x128xbf16>, vector<512x128xf32> -> vector<512x128xf32>
    %11 = arith.truncf %10 : vector<512x128xf32> to vector<512x128xbf16>
    %cst_9 = arith.constant dense<0.000000e+00> : vector<512x128xf32>
    %12 = tpu.matmul %0, %11, %cst_9 {dimension_numbers = #tpu.dot_dimension_numbers<[1], [0], [0], [1], [0, 0, 1, 1], [], []>} : vector<512x512xbf16>, vector<512x128xbf16>, vector<512x128xf32> -> vector<512x128xf32>
    %c0_10 = arith.constant 0 : index
    %c0_11 = arith.constant 0 : index
    %13 = vector.load %arg4[%c0_10, %c0_11] : memref<1x128xf32, #tpu.memory_space<vmem>>, vector<1x128xf32>
    %14 = vector.broadcast %13 : vector<1x128xf32> to vector<512x128xf32>
    %15 = arith.addf %12, %14 : vector<512x128xf32>
    %cst_12 = arith.constant dense<0xFF800000> : vector<512xf32>
    %16 = vector.multi_reduction <maximumf>, %15, %cst_12 [1] : vector<512x128xf32> to vector<512xf32>
    %17 = vector.shape_cast %16 : vector<512xf32> to vector<512x1xf32>
    %18 = vector.broadcast %17 : vector<512x1xf32> to vector<512x128xf32>
    %19 = arith.subf %15, %18 : vector<512x128xf32>
    %20 = math.exp %19 : vector<512x128xf32>
    %cst_13 = arith.constant dense<0.000000e+00> : vector<512xf32>
    %21 = vector.multi_reduction <add>, %20, %cst_13 [1] : vector<512x128xf32> to vector<512xf32>
    %22 = vector.shape_cast %21 : vector<512xf32> to vector<512x1xf32>
    %23 = math.log %22 : vector<512x1xf32>
    %24 = vector.broadcast %23 : vector<512x1xf32> to vector<512x128xf32>
    %25 = arith.subf %19, %24 : vector<512x128xf32>
    %c0_14 = arith.constant 0 : index
    %c0_15 = arith.constant 0 : index
    %26 = vector.load %arg5[%c0_14, %c0_15] : memref<512x128xf32, #tpu.memory_space<vmem>>, vector<512x128xf32>
    tpu.vector_store %arg5[%c0_14, %c0_15], %25 {strides = array<i32>} : memref<512x128xf32, #tpu.memory_space<vmem>>, vector<512x128xf32>,
    return
  }
}

</mosaic_0001>

<llo_original>
// kernel: gcn_forward.2
$region0: #{gcn_forward.2}
  #allocation0 [shape = 'u32[]', space=smem, size = 0x4, offset = 0x4, fixed_abs, tag = 'smem constant byte address 0x4 - core index']
  #allocation1 [shape = 'u32[144,128]{1,0:T(1,128)}', space=vmem, size = 0x12000, scoped, tag = 'internal scratch']
  %s0 = inlined_call_operand.hbm [shape: bf16[512,128], index: 0, kind: input, shape index: {}]
  %s1 = inlined_call_operand.hbm [shape: bf16[128,128], index: 1, kind: input, shape index: {}]
  %s2 = inlined_call_operand.vmem [shape: bf16[512,128], index: 2, kind: output, shape index: {}]
  %s3 = sld [smem:[#allocation0]]
  $region26: #{gcn_forward.2} parent=0
    _
  %s5 = ssub.s32 1, %s3
  %s6 = scalar_select 0, %s5, %s3
  $region1: #{gcn_forward.2} parent=0
    #allocation2 [shape = 'u8[131072]{0}', space=vmem, size = 0x20000, scoped, tag = 'input window, operand 0, single buffered']
    #allocation3 [shape = 's32[1]{0}', space=sflag, size = 0x4, scoped, tag = 'scoped memory for gcn_forward.2']
    #allocation4 [shape = 'u8[32768]{0}', space=vmem, size = 0x8000, scoped, tag = 'input window, operand 1, single buffered']
    #allocation5 [shape = 's32[1]{0}', space=sflag, size = 0x4, scoped, tag = 'scoped memory for gcn_forward.2']
    %7 = vsyncpa [#allocation3], 0
    %8 = vsyncpa [#allocation5], 0
    // Predicated region
    $region2: #{gcn_forward.2} parent=1 // pred_check
      _
    $region3: #{gcn_forward.2} parent=1 // pred_check_branch
      %10 = sbr.rel (0) target = $region5
    $region4: #{gcn_forward.2} parent=1 // pred_region
      %s12 = ssub.s32 4096, 4096
      %13 = vsyncadd [#allocation3], %s12
      %s14 = sshll.u32 [#allocation2], 4
      %s15 = int_to_ptr.vmem [resolvable:$true] %s14
      %20 = dma.hbm_to_vmem [thread:$0]  %s0, 4096, %s15, [#allocation3], 64, 64, 4
    $region5: #{gcn_forward.2} parent=1 // pred_fallthru
      _
    // Predicated region
    $region6: #{gcn_forward.2} parent=1 // pred_check
      _
    $region7: #{gcn_forward.2} parent=1 // pred_check_branch
      %22 = sbr.rel (0) target = $region9
    $region8: #{gcn_forward.2} parent=1 // pred_region
      %s24 = ssub.s32 1024, 1024
      %25 = vsyncadd [#allocation5], %s24
      %s26 = sshll.u32 [#allocation4], 4
      %s27 = int_to_ptr.vmem [resolvable:$true] %s26
      %32 = dma.hbm_to_vmem [thread:$0]  %s1, 1024, %s27, [#allocation5], 64, 64, 4
    $region9: #{gcn_forward.2} parent=1 // pred_fallthru
      _
    // Predicated region
    $region10: #{gcn_forward.2} parent=1 // pred_check
      _
    $region11: #{gcn_forward.2} parent=1 // pred_check_branch
      %34 = sbr.rel (0) target = $region13
    $region12: #{gcn_forward.2} parent=1 // pred_region
      %35 = dma.done [#allocation3], 4096
    $region13: #{gcn_forward.2} parent=1 // pred_fallthru
      _
    // Predicated region
    $region14: #{gcn_forward.2} parent=1 // pred_check
      _
    $region15: #{gcn_forward.2} parent=1 // pred_check_branch
      %37 = sbr.rel (0) target = $region17
    $region16: #{gcn_forward.2} parent=1 // pred_region
      %38 = dma.done [#allocation5], 1024
    $region17: #{gcn_forward.2} parent=1 // pred_fallthru
      _
    %v40 = vld [vmem:[#allocation2] sm:$0xf]
    %v41 = vld [vmem:[#allocation2 + $0x4] sm:$0xf]
    %v42 = vld [vmem:[#allocation2 + $0x8] sm:$0xf]
    %v43 = vld [vmem:[#allocation2 + $0xc] sm:$0xf]
    %v44 = vld [vmem:[#allocation2 + $0x10] sm:$0xf]
    %v45 = vld [vmem:[#allocation2 + $0x14] sm:$0xf]
    %v46 = vld [vmem:[#allocation2 + $0x18] sm:$0xf]
    %v47 = vld [vmem:[#allocation2 + $0x1c] sm:$0xf]
    %v48 = vld [vmem:[#allocation2 + $0x20] sm:$0xf]
    %v49 = vld [vmem:[#allocation2 + $0x24] sm:$0xf]
    %v50 = vld [vmem:[#allocation2 + $0x28] sm:$0xf]
    %v51 = vld [vmem:[#allocation2 + $0x2c] sm:$0xf]
    %v52 = vld [vmem:[#allocation2 + $0x30] sm:$0xf]
    %v53 = vld [vmem:[#allocation2 + $0x34] sm:$0xf]
    %v54 = vld [vmem:[#allocation2 + $0x38] sm:$0xf]
    %v55 = vld [vmem:[#allocation2 + $0x3c] sm:$0xf]
    %v56 = vld [vmem:[#allocation2 + $0x40] sm:$0xf]
    %v57 = vld [vmem:[#allocation2 + $0x44] sm:$0xf]
    %v58 = vld [vmem:[#allocation2 + $0x48] sm:$0xf]
    %v59 = vld [vmem:[#allocation2 + $0x4c] sm:$0xf]
    %v60 = vld [vmem:[#allocation2 + $0x50] sm:$0xf]
    %v61 = vld [vmem:[#allocation2 + $0x54] sm:$0xf]
    %v62 = vld [vmem:[#allocation2 + $0x58] sm:$0xf]
    %v63 = vld [vmem:[#allocation2 + $0x5c] sm:$0xf]
    %v64 = vld [vmem:[#allocation2 + $0x60] sm:$0xf]
    %v65 = vld [vmem:[#allocation2 + $0x64] sm:$0xf]
    %v66 = vld [vmem:[#allocation2 + $0x68] sm:$0xf]
    %v67 = vld [vmem:[#allocation2 + $0x6c] sm:$0xf]
    %v68 = vld [vmem:[#allocation2 + $0x70] sm:$0xf]
    %v69 = vld [vmem:[#allocation2 + $0x74] sm:$0xf]
    %v70 = vld [vmem:[#allocation2 + $0x78] sm:$0xf]
    %v71 = vld [vmem:[#allocation2 + $0x7c] sm:$0xf]
    %v72 = vld [vmem:[#allocation2 + $0x80] sm:$0xf]
    %v73 = vld [vmem:[#allocation2 + $0x84] sm:$0xf]
    %v74 = vld [vmem:[#allocation2 + $0x88] sm:$0xf]
    %v75 = vld [vmem:[#allocation2 + $0x8c] sm:$0xf]
    %v76 = vld [vmem:[#allocation2 + $0x90] sm:$0xf]
    %v77 = vld [vmem:[#allocation2 + $0x94] sm:$0xf]
    %v78 = vld [vmem:[#allocation2 + $0x98] sm:$0xf]
    %v79 = vld [vmem:[#allocation2 + $0x9c] sm:$0xf]
    %v80 = vld [vmem:[#allocation2 + $0xa0] sm:$0xf]
    %v81 = vld [vmem:[#allocation2 + $0xa4] sm:$0xf]
    %v82 = vld [vmem:[#allocation2 + $0xa8] sm:$0xf]
    %v83 = vld [vmem:[#allocation2 + $0xac] sm:$0xf]
    %v84 = vld [vmem:[#allocation2 + $0xb0] sm:$0xf]
    %v85 = vld [vmem:[#allocation2 + $0xb4] sm:$0xf]
    %v86 = vld [vmem:[#allocation2 + $0xb8] sm:$0xf]
    %v87 = vld [vmem:[#allocation2 + $0xbc] sm:$0xf]
    %v88 = vld [vmem:[#allocation2 + $0xc0] sm:$0xf]
    %v89 = vld [vmem:[#allocation2 + $0xc4] sm:$0xf]
    %v90 = vld [vmem:[#allocation2 + $0xc8] sm:$0xf]
    %v91 = vld [vmem:[#allocation2 + $0xcc] sm:$0xf]
    %v92 = vld [vmem:[#allocation2 + $0xd0] sm:$0xf]
    %v93 = vld [vmem:[#allocation2 + $0xd4] sm:$0xf]
    %v94 = vld [vmem:[#allocation2 + $0xd8] sm:$0xf]
    %v95 = vld [vmem:[#allocation2 + $0xdc] sm:$0xf]
    %v96 = vld [vmem:[#allocation2 + $0xe0] sm:$0xf]
    %v97 = vld [vmem:[#allocation2 + $0xe4] sm:$0xf]
    %v98 = vld [vmem:[#allocation2 + $0xe8] sm:$0xf]
    %v99 = vld [vmem:[#allocation2 + $0xec] sm:$0xf]
    %v100 = vld [vmem:[#allocation2 + $0xf0] sm:$0xf]
    %v101 = vld [vmem:[#allocation2 + $0xf4] sm:$0xf]
    %v102 = vld [vmem:[#allocation2 + $0xf8] sm:$0xf]
    %v103 = vld [vmem:[#allocation2 + $0xfc] sm:$0xf]
    %v104 = vld [vmem:[#allocation4] sm:$0xf]
    %v105 = vld [vmem:[#allocation4 + $0x4] sm:$0xf]
    %v106 = vld [vmem:[#allocation4 + $0x8] sm:$0xf]
    %v107 = vld [vmem:[#allocation4 + $0xc] sm:$0xf]
    %v108 = vld [vmem:[#allocation4 + $0x10] sm:$0xf]
    %v109 = vld [vmem:[#allocation4 + $0x14] sm:$0xf]
    %v110 = vld [vmem:[#allocation4 + $0x18] sm:$0xf]
    %v111 = vld [vmem:[#allocation4 + $0x1c] sm:$0xf]
    %v112 = vld [vmem:[#allocation4 + $0x20] sm:$0xf]
    %v113 = vld [vmem:[#allocation4 + $0x24] sm:$0xf]
    %v114 = vld [vmem:[#allocation4 + $0x28] sm:$0xf]
    %v115 = vld [vmem:[#allocation4 + $0x2c] sm:$0xf]
    %v116 = vld [vmem:[#allocation4 + $0x30] sm:$0xf]
    %v117 = vld [vmem:[#allocation4 + $0x34] sm:$0xf]
    %v118 = vld [vmem:[#allocation4 + $0x38] sm:$0xf]
    %v119 = vld [vmem:[#allocation4 + $0x3c] sm:$0xf]
    %v184 = vunpack.c.l.b16 %v40
    %v185 = vunpack.c.l.b16 %v41
    %v186 = vunpack.c.l.b16 %v42
    %v187 = vunpack.c.l.b16 %v43
    %v188 = vunpack.c.l.b16 %v44
    %v189 = vunpack.c.l.b16 %v45
    %v190 = vunpack.c.l.b16 %v46
    %v191 = vunpack.c.l.b16 %v47
    %v192 = vunpack.c.l.b16 %v48
    %v193 = vunpack.c.l.b16 %v49
    %v194 = vunpack.c.l.b16 %v50
    %v195 = vunpack.c.l.b16 %v51
    %v196 = vunpack.c.l.b16 %v52
    %v197 = vunpack.c.l.b16 %v53
    %v198 = vunpack.c.l.b16 %v54
    %v199 = vunpack.c.l.b16 %v55
    %v200 = vunpack.c.l.b16 %v56
    %v201 = vunpack.c.l.b16 %v57
    %v202 = vunpack.c.l.b16 %v58
    %v203 = vunpack.c.l.b16 %v59
    %v204 = vunpack.c.l.b16 %v60
    %v205 = vunpack.c.l.b16 %v61
    %v206 = vunpack.c.l.b16 %v62
    %v207 = vunpack.c.l.b16 %v63
    %v208 = vunpack.c.l.b16 %v64
    %v209 = vunpack.c.l.b16 %v65
    %v210 = vunpack.c.l.b16 %v66
    %v211 = vunpack.c.l.b16 %v67
    %v212 = vunpack.c.l.b16 %v68
    %v213 = vunpack.c.l.b16 %v69
    %v214 = vunpack.c.l.b16 %v70
    %v215 = vunpack.c.l.b16 %v71
    %v216 = vunpack.c.l.b16 %v72
    %v217 = vunpack.c.l.b16 %v73
    %v218 = vunpack.c.l.b16 %v74
    %v219 = vunpack.c.l.b16 %v75
    %v220 = vunpack.c.l.b16 %v76
    %v221 = vunpack.c.l.b16 %v77
    %v222 = vunpack.c.l.b16 %v78
    %v223 = vunpack.c.l.b16 %v79
    %v224 = vunpack.c.l.b16 %v80
    %v225 = vunpack.c.l.b16 %v81
    %v226 = vunpack.c.l.b16 %v82
    %v227 = vunpack.c.l.b16 %v83
    %v228 = vunpack.c.l.b16 %v84
    %v229 = vunpack.c.l.b16 %v85
    %v230 = vunpack.c.l.b16 %v86
    %v231 = vunpack.c.l.b16 %v87
    %v232 = vunpack.c.l.b16 %v88
    %v233 = vunpack.c.l.b16 %v89
    %v234 = vunpack.c.l.b16 %v90
    %v235 = vunpack.c.l.b16 %v91
    %v236 = vunpack.c.l.b16 %v92
    %v237 = vunpack.c.l.b16 %v93
    %v238 = vunpack.c.l.b16 %v94
    %v239 = vunpack.c.l.b16 %v95
    %v240 = vunpack.c.l.b16 %v96
    %v241 = vunpack.c.l.b16 %v97
    %v242 = vunpack.c.l.b16 %v98
    %v243 = vunpack.c.l.b16 %v99
    %v244 = vunpack.c.l.b16 %v100
    %v245 = vunpack.c.l.b16 %v101
    %v246 = vunpack.c.l.b16 %v102
    %v247 = vunpack.c.l.b16 %v103
    %v248 = vpack.c.b16 %v185, %v184
    %v249 = vpack.c.b16 %v187, %v186
    %v250 = vpack.c.b16 %v189, %v188
    %v251 = vpack.c.b16 %v191, %v190
    %v252 = vpack.c.b16 %v193, %v192
    %v253 = vpack.c.b16 %v195, %v194
    %v254 = vpack.c.b16 %v197, %v196
    %v255 = vpack.c.b16 %v199, %v198
    %v256 = vpack.c.b16 %v201, %v200
    %v257 = vpack.c.b16 %v203, %v202
    %v258 = vpack.c.b16 %v205, %v204
    %v259 = vpack.c.b16 %v207, %v206
    %v260 = vpack.c.b16 %v209, %v208
    %v261 = vpack.c.b16 %v211, %v210
    %v262 = vpack.c.b16 %v213, %v212
    %v263 = vpack.c.b16 %v215, %v214
    %v264 = vpack.c.b16 %v217, %v216
    %v265 = vpack.c.b16 %v219, %v218
    %v266 = vpack.c.b16 %v221, %v220
    %v267 = vpack.c.b16 %v223, %v222
    %v268 = vpack.c.b16 %v225, %v224
    %v269 = vpack.c.b16 %v227, %v226
    %v270 = vpack.c.b16 %v229, %v228
    %v271 = vpack.c.b16 %v231, %v230
    %v272 = vpack.c.b16 %v233, %v232
    %v273 = vpack.c.b16 %v235, %v234
    %v274 = vpack.c.b16 %v237, %v236
    %v275 = vpack.c.b16 %v239, %v238
    %v276 = vpack.c.b16 %v241, %v240
    %v277 = vpack.c.b16 %v243, %v242
    %v278 = vpack.c.b16 %v245, %v244
    %v279 = vpack.c.b16 %v247, %v246
    %v328 = vunpack.c.l.b16 %v104
    %v329 = vunpack.c.l.b16 %v105
    %v330 = vunpack.c.l.b16 %v106
    %v331 = vunpack.c.l.b16 %v107
    %v332 = vunpack.c.l.b16 %v108
    %v333 = vunpack.c.l.b16 %v109
    %v334 = vunpack.c.l.b16 %v110
    %v335 = vunpack.c.l.b16 %v111
    %v336 = vunpack.c.l.b16 %v112
    %v337 = vunpack.c.l.b16 %v113
    %v338 = vunpack.c.l.b16 %v114
    %v339 = vunpack.c.l.b16 %v115
    %v340 = vunpack.c.l.b16 %v116
    %v341 = vunpack.c.l.b16 %v117
    %v342 = vunpack.c.l.b16 %v118
    %v343 = vunpack.c.l.b16 %v119
    %v344 = vpack.c.b16 %v329, %v328
    %v345 = vpack.c.b16 %v331, %v330
    %v346 = vpack.c.b16 %v333, %v332
    %v347 = vpack.c.b16 %v335, %v334
    %v348 = vpack.c.b16 %v337, %v336
    %v349 = vpack.c.b16 %v339, %v338
    %v350 = vpack.c.b16 %v341, %v340
    %v351 = vpack.c.b16 %v343, %v342
    %360 = vmatprep.subr.bf16.mxu0 0
    %361 = vmatpush1.bf16.msra.mxu0 %v344
    %362 = vmatprep.subr.bf16.mxu0 0
    %363 = vmatpush1.bf16.msra.mxu0 %v345
    %364 = vmatprep.subr.bf16.mxu0 0
    %365 = vmatpush1.bf16.msra.mxu0 %v346
    %366 = vmatprep.subr.bf16.mxu0 0
    %367 = vmatpush1.bf16.msra.mxu0 %v347
    %368 = vmatprep.subr.bf16.mxu0 0
    %369 = vmatpush1.bf16.msra.mxu0 %v348
    %370 = vmatprep.subr.bf16.mxu0 0
    %371 = vmatpush1.bf16.msra.mxu0 %v349
    %372 = vmatprep.subr.bf16.mxu0 0
    %373 = vmatpush1.bf16.msra.mxu0 %v350
    %374 = vmatprep.subr.bf16.mxu0 0
    %375 = vmatpush1.bf16.msra.mxu0 %v351
    %376 = vmatprep.subr.bf16.mxu0 0
    %377 = vmatpush1.bf16.msra.mxu0 0
    %378 = vmatprep.subr.bf16.mxu0 0
    %379 = vmatpush1.bf16.msra.mxu0 0
    %380 = vmatprep.subr.bf16.mxu0 0
    %381 = vmatpush1.bf16.msra.mxu0 0
    %382 = vmatprep.subr.bf16.mxu0 0
    %383 = vmatpush1.bf16.msra.mxu0 0
    %384 = vmatprep.subr.bf16.mxu0 0
    %385 = vmatpush1.bf16.msra.mxu0 0
    %386 = vmatprep.subr.bf16.mxu0 0
    %387 = vmatpush1.bf16.msra.mxu0 0
    %388 = vmatprep.subr.bf16.mxu0 0
    %389 = vmatpush1.bf16.msra.mxu0 0
    %390 = vmatprep.subr.bf16.mxu0 0
    %391 = vmatpush1.bf16.msra.mxu0 0
    %392 = vmatprep.mubr.bf16.mxu0 0
    %393 = vmatmul.mubr.bf16.gmra.mrb[0].mxu0 %v248
    %v394 = vpop.f32.mrb[0].mxu0
    %v395 = vadd.f32 0.0, %v394
    %v396 = vpop.f32.mrb[0].mxu0
    %v397 = vpop.f32.mrb[0].mxu0
    %v398 = vadd.f32 0.0, %v397
    %v399 = vpop.f32.mrb[0].mxu0
    %400 = vmatprep.mubr.bf16.mxu0 0
    %401 = vmatmul.mubr.bf16.gmra.mrb[0].mxu0 %v249
    %v402 = vpop.f32.mrb[0].mxu0
    %v403 = vadd.f32 0.0, %v402
    %v404 = vpop.f32.mrb[0].mxu0
    %v405 = vpop.f32.mrb[0].mxu0
    %v406 = vadd.f32 0.0, %v405
    %v407 = vpop.f32.mrb[0].mxu0
    %408 = vmatprep.mubr.bf16.mxu0 0
    %409 = vmatmul.mubr.bf16.gmra.mrb[0].mxu0 %v250
    %v410 = vpop.f32.mrb[0].mxu0
    %v411 = vadd.f32 0.0, %v410
    %v412 = vpop.f32.mrb[0].mxu0
    %v413 = vpop.f32.mrb[0].mxu0
    %v414 = vadd.f32 0.0, %v413
    %v415 = vpop.f32.mrb[0].mxu0
    %416 = vmatprep.mubr.bf16.mxu0 0
    %417 = vmatmul.mubr.bf16.gmra.mrb[0].mxu0 %v251
    %v418 = vpop.f32.mrb[0].mxu0
    %v419 = vadd.f32 0.0, %v418
    %v420 = vpop.f32.mrb[0].mxu0
    %v421 = vpop.f32.mrb[0].mxu0
    %v422 = vadd.f32 0.0, %v421
    %v423 = vpop.f32.mrb[0].mxu0
    %424 = vmatprep.mubr.bf16.mxu0 0
    %425 = vmatmul.mubr.bf16.gmra.mrb[0].mxu0 %v252
    %v426 = vpop.f32.mrb[0].mxu0
    %v427 = vadd.f32 0.0, %v426
    %v428 = vpop.f32.mrb[0].mxu0
    %v429 = vpop.f32.mrb[0].mxu0
    %v430 = vadd.f32 0.0, %v429
    %v431 = vpop.f32.mrb[0].mxu0
    %432 = vmatprep.mubr.bf16.mxu0 0
    %433 = vmatmul.mubr.bf16.gmra.mrb[0].mxu0 %v253
    %v434 = vpop.f32.mrb[0].mxu0
    %v435 = vadd.f32 0.0, %v434
    %v436 = vpop.f32.mrb[0].mxu0
    %v437 = vpop.f32.mrb[0].mxu0
    %v438 = vadd.f32 0.0, %v437
    %v439 = vpop.f32.mrb[0].mxu0
    %440 = vmatprep.mubr.bf16.mxu0 0
    %441 = vmatmul.mubr.bf16.gmra.mrb[0].mxu0 %v254
    %v442 = vpop.f32.mrb[0].mxu0
    %v443 = vadd.f32 0.0, %v442
    %v444 = vpop.f32.mrb[0].mxu0
    %v445 = vpop.f32.mrb[0].mxu0
    %v446 = vadd.f32 0.0, %v445
    %v447 = vpop.f32.mrb[0].mxu0
    %448 = vmatprep.mubr.bf16.mxu0 0
    %449 = vmatmul.mubr.bf16.gmra.mrb[0].mxu0 %v255
    %v450 = vpop.f32.mrb[0].mxu0
    %v451 = vadd.f32 0.0, %v450
    %v452 = vpop.f32.mrb[0].mxu0
    %v453 = vpop.f32.mrb[0].mxu0
    %v454 = vadd.f32 0.0, %v453
    %v455 = vpop.f32.mrb[0].mxu0
    %456 = vmatprep.mubr.bf16.mxu0 0
    %457 = vmatmul.mubr.bf16.gmra.mrb[0].mxu0 %v256
    %v458 = vpop.f32.mrb[0].mxu0
    %v459 = vadd.f32 0.0, %v458
    %v460 = vpop.f32.mrb[0].mxu0
    %v461 = vpop.f32.mrb[0].mxu0
    %v462 = vadd.f32 0.0, %v461
    %v463 = vpop.f32.mrb[0].mxu0
    %464 = vmatprep.mubr.bf16.mxu0 0
    %465 = vmatmul.mubr.bf16.gmra.mrb[0].mxu0 %v257
    %v466 = vpop.f32.mrb[0].mxu0
    %v467 = vadd.f32 0.0, %v466
    %v468 = vpop.f32.mrb[0].mxu0
    %v469 = vpop.f32.mrb[0].mxu0
    %v470 = vadd.f32 0.0, %v469
    %v471 = vpop.f32.mrb[0].mxu0
    %472 = vmatprep.mubr.bf16.mxu0 0
    %473 = vmatmul.mubr.bf16.gmra.mrb[0].mxu0 %v258
    %v474 = vpop.f32.mrb[0].mxu0
    %v475 = vadd.f32 0.0, %v474
    %v476 = vpop.f32.mrb[0].mxu0
    %v477 = vpop.f32.mrb[0].mxu0
    %v478 = vadd.f32 0.0, %v477
    %v479 = vpop.f32.mrb[0].mxu0
    %480 = vmatprep.mubr.bf16.mxu0 0
    %481 = vmatmul.mubr.bf16.gmra.mrb[0].mxu0 %v259
    %v482 = vpop.f32.mrb[0].mxu0
    %v483 = vadd.f32 0.0, %v482
    %v484 = vpop.f32.mrb[0].mxu0
    %v485 = vpop.f32.mrb[0].mxu0
    %v486 = vadd.f32 0.0, %v485
    %v487 = vpop.f32.mrb[0].mxu0
    %488 = vmatprep.mubr.bf16.mxu0 0
    %489 = vmatmul.mubr.bf16.gmra.mrb[0].mxu0 %v260
    %v490 = vpop.f32.mrb[0].mxu0
    %v491 = vadd.f32 0.0, %v490
    %v492 = vpop.f32.mrb[0].mxu0
    %v493 = vpop.f32.mrb[0].mxu0
    %v494 = vadd.f32 0.0, %v493
    %v495 = vpop.f32.mrb[0].mxu0
    %496 = vmatprep.mubr.bf16.mxu0 0
    %497 = vmatmul.mubr.bf16.gmra.mrb[0].mxu0 %v261
    %v498 = vpop.f32.mrb[0].mxu0
    %v499 = vadd.f32 0.0, %v498
    %v500 = vpop.f32.mrb[0].mxu0
    %v501 = vpop.f32.mrb[0].mxu0
    %v502 = vadd.f32 0.0, %v501
    %v503 = vpop.f32.mrb[0].mxu0
    %504 = vmatprep.mubr.bf16.mxu0 0
    %505 = vmatmul.mubr.bf16.gmra.mrb[0].mxu0 %v262
    %v506 = vpop.f32.mrb[0].mxu0
    %v507 = vadd.f32 0.0, %v506
    %v508 = vpop.f32.mrb[0].mxu0
    %v509 = vpop.f32.mrb[0].mxu0
    %v510 = vadd.f32 0.0, %v509
    %v511 = vpop.f32.mrb[0].mxu0
    %512 = vmatprep.mubr.bf16.mxu0 0
    %513 = vmatmul.mubr.bf16.gmra.mrb[0].mxu0 %v263
    %v514 = vpop.f32.mrb[0].mxu0
    %v515 = vadd.f32 0.0, %v514
    %v516 = vpop.f32.mrb[0].mxu0
    %v517 = vpop.f32.mrb[0].mxu0
    %v518 = vadd.f32 0.0, %v517
    %v519 = vpop.f32.mrb[0].mxu0
    %520 = vmatprep.mubr.bf16.mxu0 0
    %521 = vmatmul.mubr.bf16.gmra.mrb[0].mxu0 %v264
    %v522 = vpop.f32.mrb[0].mxu0
    %v523 = vadd.f32 0.0, %v522
    %v524 = vpop.f32.mrb[0].mxu0
    %v525 = vpop.f32.mrb[0].mxu0
    %v526 = vadd.f32 0.0, %v525
    %v527 = vpop.f32.mrb[0].mxu0
    %528 = vmatprep.mubr.bf16.mxu0 0
    %529 = vmatmul.mubr.bf16.gmra.mrb[0].mxu0 %v265
    %v530 = vpop.f32.mrb[0].mxu0
    %v531 = vadd.f32 0.0, %v530
    %v532 = vpop.f32.mrb[0].mxu0
    %v533 = vpop.f32.mrb[0].mxu0
    %v534 = vadd.f32 0.0, %v533
    %v535 = vpop.f32.mrb[0].mxu0
    %536 = vmatprep.mubr.bf16.mxu0 0
    %537 = vmatmul.mubr.bf16.gmra.mrb[0].mxu0 %v266
    %v538 = vpop.f32.mrb[0].mxu0
    %v539 = vadd.f32 0.0, %v538
    %v540 = vpop.f32.mrb[0].mxu0
    %v541 = vpop.f32.mrb[0].mxu0
    %v542 = vadd.f32 0.0, %v541
    %v543 = vpop.f32.mrb[0].mxu0
    %544 = vmatprep.mubr.bf16.mxu0 0
    %545 = vmatmul.mubr.bf16.gmra.mrb[0].mxu0 %v267
    %v546 = vpop.f32.mrb[0].mxu0
    %v547 = vadd.f32 0.0, %v546
    %v548 = vpop.f32.mrb[0].mxu0
    %v549 = vpop.f32.mrb[0].mxu0
    %v550 = vadd.f32 0.0, %v549
    %v551 = vpop.f32.mrb[0].mxu0
    %552 = vmatprep.mubr.bf16.mxu0 0
    %553 = vmatmul.mubr.bf16.gmra.mrb[0].mxu0 %v268
    %v554 = vpop.f32.mrb[0].mxu0
    %v555 = vadd.f32 0.0, %v554
    %v556 = vpop.f32.mrb[0].mxu0
    %v557 = vpop.f32.mrb[0].mxu0
    %v558 = vadd.f32 0.0, %v557
    %v559 = vpop.f32.mrb[0].mxu0
    %560 = vmatprep.mubr.bf16.mxu0 0
    %561 = vmatmul.mubr.bf16.gmra.mrb[0].mxu0 %v269
    %v562 = vpop.f32.mrb[0].mxu0
    %v563 = vadd.f32 0.0, %v562
    %v564 = vpop.f32.mrb[0].mxu0
    %v565 = vpop.f32.mrb[0].mxu0
    %v566 = vadd.f32 0.0, %v565
    %v567 = vpop.f32.mrb[0].mxu0
    %568 = vmatprep.mubr.bf16.mxu0 0
    %569 = vmatmul.mubr.bf16.gmra.mrb[0].mxu0 %v270
    %v570 = vpop.f32.mrb[0].mxu0
    %v571 = vadd.f32 0.0, %v570
    %v572 = vpop.f32.mrb[0].mxu0
    %v573 = vpop.f32.mrb[0].mxu0
    %v574 = vadd.f32 0.0, %v573
    %v575 = vpop.f32.mrb[0].mxu0
    %576 = vmatprep.mubr.bf16.mxu0 0
    %577 = vmatmul.mubr.bf16.gmra.mrb[0].mxu0 %v271
    %v578 = vpop.f32.mrb[0].mxu0
    %v579 = vadd.f32 0.0, %v578
    %v580 = vpop.f32.mrb[0].mxu0
    %v581 = vpop.f32.mrb[0].mxu0
    %v582 = vadd.f32 0.0, %v581
    %v583 = vpop.f32.mrb[0].mxu0
    %584 = vmatprep.mubr.bf16.mxu0 0
    %585 = vmatmul.mubr.bf16.gmra.mrb[0].mxu0 %v272
    %v586 = vpop.f32.mrb[0].mxu0
    %v587 = vadd.f32 0.0, %v586
    %v588 = vpop.f32.mrb[0].mxu0
    %v589 = vpop.f32.mrb[0].mxu0
    %v590 = vadd.f32 0.0, %v589
    %v591 = vpop.f32.mrb[0].mxu0
    %592 = vmatprep.mubr.bf16.mxu0 0
    %593 = vmatmul.mubr.bf16.gmra.mrb[0].mxu0 %v273
    %v594 = vpop.f32.mrb[0].mxu0
    %v595 = vadd.f32 0.0, %v594
    %v596 = vpop.f32.mrb[0].mxu0
    %v597 = vpop.f32.mrb[0].mxu0
    %v598 = vadd.f32 0.0, %v597
    %v599 = vpop.f32.mrb[0].mxu0
    %600 = vmatprep.mubr.bf16.mxu0 0
    %601 = vmatmul.mubr.bf16.gmra.mrb[0].mxu0 %v274
    %v602 = vpop.f32.mrb[0].mxu0
    %v603 = vadd.f32 0.0, %v602
    %v604 = vpop.f32.mrb[0].mxu0
    %v605 = vpop.f32.mrb[0].mxu0
    %v606 = vadd.f32 0.0, %v605
    %v607 = vpop.f32.mrb[0].mxu0
    %608 = vmatprep.mubr.bf16.mxu0 0
    %609 = vmatmul.mubr.bf16.gmra.mrb[0].mxu0 %v275
    %v610 = vpop.f32.mrb[0].mxu0
    %v611 = vadd.f32 0.0, %v610
    %v612 = vpop.f32.mrb[0].mxu0
    %v613 = vpop.f32.mrb[0].mxu0
    %v614 = vadd.f32 0.0, %v613
    %v615 = vpop.f32.mrb[0].mxu0
    %616 = vmatprep.mubr.bf16.mxu0 0
    %617 = vmatmul.mubr.bf16.gmra.mrb[0].mxu0 %v276
    %v618 = vpop.f32.mrb[0].mxu0
    %v619 = vadd.f32 0.0, %v618
    %v620 = vpop.f32.mrb[0].mxu0
    %v621 = vpop.f32.mrb[0].mxu0
    %v622 = vadd.f32 0.0, %v621
    %v623 = vpop.f32.mrb[0].mxu0
    %624 = vmatprep.mubr.bf16.mxu0 0
    %625 = vmatmul.mubr.bf16.gmra.mrb[0].mxu0 %v277
    %v626 = vpop.f32.mrb[0].mxu0
    %v627 = vadd.f32 0.0, %v626
    %v628 = vpop.f32.mrb[0].mxu0
    %v629 = vpop.f32.mrb[0].mxu0
    %v630 = vadd.f32 0.0, %v629
    %v631 = vpop.f32.mrb[0].mxu0
    %632 = vmatprep.mubr.bf16.mxu0 0
    %633 = vmatmul.mubr.bf16.gmra.mrb[0].mxu0 %v278
    %v634 = vpop.f32.mrb[0].mxu0
    %v635 = vadd.f32 0.0, %v634
    %v636 = vpop.f32.mrb[0].mxu0
    %v637 = vpop.f32.mrb[0].mxu0
    %v638 = vadd.f32 0.0, %v637
    %v639 = vpop.f32.mrb[0].mxu0
    %640 = vmatprep.mubr.bf16.mxu0 0
    %641 = vmatmul.mubr.bf16.gmra.mrb[0].mxu0 %v279
    %v642 = vpop.f32.mrb[0].mxu0
    %v643 = vadd.f32 0.0, %v642
    %v644 = vpop.f32.mrb[0].mxu0
    %v645 = vpop.f32.mrb[0].mxu0
    %v646 = vadd.f32 0.0, %v645
    %v647 = vpop.f32.mrb[0].mxu0
    %648 = vdwg.mxu0
    %v649 = vpack.c.bf16 %v398, %v395
    %v650 = vpack.c.bf16 %v406, %v403
    %v651 = vpack.c.bf16 %v414, %v411
    %v652 = vpack.c.bf16 %v422, %v419
    %v653 = vpack.c.bf16 %v430, %v427
    %v654 = vpack.c.bf16 %v438, %v435
    %v655 = vpack.c.bf16 %v446, %v443
    %v656 = vpack.c.bf16 %v454, %v451
    %v657 = vpack.c.bf16 %v462, %v459
    %v658 = vpack.c.bf16 %v470, %v467
    %v659 = vpack.c.bf16 %v478, %v475
    %v660 = vpack.c.bf16 %v486, %v483
    %v661 = vpack.c.bf16 %v494, %v491
    %v662 = vpack.c.bf16 %v502, %v499
    %v663 = vpack.c.bf16 %v510, %v507
    %v664 = vpack.c.bf16 %v518, %v515
    %v665 = vpack.c.bf16 %v526, %v523
    %v666 = vpack.c.bf16 %v534, %v531
    %v667 = vpack.c.bf16 %v542, %v539
    %v668 = vpack.c.bf16 %v550, %v547
    %v669 = vpack.c.bf16 %v558, %v555
    %v670 = vpack.c.bf16 %v566, %v563
    %v671 = vpack.c.bf16 %v574, %v571
    %v672 = vpack.c.bf16 %v582, %v579
    %v673 = vpack.c.bf16 %v590, %v587
    %v674 = vpack.c.bf16 %v598, %v595
    %v675 = vpack.c.bf16 %v606, %v603
    %v676 = vpack.c.bf16 %v614, %v611
    %v677 = vpack.c.bf16 %v622, %v619
    %v678 = vpack.c.bf16 %v630, %v627
    %v679 = vpack.c.bf16 %v638, %v635
    %v680 = vpack.c.bf16 %v646, %v643
    %v713 = vunpack.c.l.b16 %v649
    %v714 = vunpack.c.h.b16 %v649
    %v715 = vunpack.c.l.b16 %v650
    %v716 = vunpack.c.h.b16 %v650
    %v717 = vunpack.c.l.b16 %v651
    %v718 = vunpack.c.h.b16 %v651
    %v719 = vunpack.c.l.b16 %v652
    %v720 = vunpack.c.h.b16 %v652
    %v721 = vunpack.c.l.b16 %v653
    %v722 = vunpack.c.h.b16 %v653
    %v723 = vunpack.c.l.b16 %v654
    %v724 = vunpack.c.h.b16 %v654
    %v725 = vunpack.c.l.b16 %v655
    %v726 = vunpack.c.h.b16 %v655
    %v727 = vunpack.c.l.b16 %v656
    %v728 = vunpack.c.h.b16 %v656
    %v729 = vunpack.c.l.b16 %v657
    %v730 = vunpack.c.h.b16 %v657
    %v731 = vunpack.c.l.b16 %v658
    %v732 = vunpack.c.h.b16 %v658
    %v733 = vunpack.c.l.b16 %v659
    %v734 = vunpack.c.h.b16 %v659
    %v735 = vunpack.c.l.b16 %v660
    %v736 = vunpack.c.h.b16 %v660
    %v737 = vunpack.c.l.b16 %v661
    %v738 = vunpack.c.h.b16 %v661
    %v739 = vunpack.c.l.b16 %v662
    %v740 = vunpack.c.h.b16 %v662
    %v741 = vunpack.c.l.b16 %v663
    %v742 = vunpack.c.h.b16 %v663
    %v743 = vunpack.c.l.b16 %v664
    %v744 = vunpack.c.h.b16 %v664
    %v745 = vunpack.c.l.b16 %v665
    %v746 = vunpack.c.h.b16 %v665
    %v747 = vunpack.c.l.b16 %v666
    %v748 = vunpack.c.h.b16 %v666
    %v749 = vunpack.c.l.b16 %v667
    %v750 = vunpack.c.h.b16 %v667
    %v751 = vunpack.c.l.b16 %v668
    %v752 = vunpack.c.h.b16 %v668
    %v753 = vunpack.c.l.b16 %v669
    %v754 = vunpack.c.h.b16 %v669
    %v755 = vunpack.c.l.b16 %v670
    %v756 = vunpack.c.h.b16 %v670
    %v757 = vunpack.c.l.b16 %v671
    %v758 = vunpack.c.h.b16 %v671
    %v759 = vunpack.c.l.b16 %v672
    %v760 = vunpack.c.h.b16 %v672
    %v761 = vunpack.c.l.b16 %v673
    %v762 = vunpack.c.h.b16 %v673
    %v763 = vunpack.c.l.b16 %v674
    %v764 = vunpack.c.h.b16 %v674
    %v765 = vunpack.c.l.b16 %v675
    %v766 = vunpack.c.h.b16 %v675
    %v767 = vunpack.c.l.b16 %v676
    %v768 = vunpack.c.h.b16 %v676
    %v769 = vunpack.c.l.b16 %v677
    %v770 = vunpack.c.h.b16 %v677
    %v771 = vunpack.c.l.b16 %v678
    %v772 = vunpack.c.h.b16 %v678
    %v773 = vunpack.c.l.b16 %v679
    %v774 = vunpack.c.h.b16 %v679
    %v775 = vunpack.c.l.b16 %v680
    %v776 = vunpack.c.h.b16 %v680
    %v777 = vpack.c.b16 %v713, %v713
    %v778 = vpack.c.b16 %v714, %v714
    %v779 = vpack.c.b16 %v715, %v715
    %v780 = vpack.c.b16 %v716, %v716
    %v781 = vpack.c.b16 %v717, %v717
    %v782 = vpack.c.b16 %v718, %v718
    %v783 = vpack.c.b16 %v719, %v719
    %v784 = vpack.c.b16 %v720, %v720
    %v785 = vpack.c.b16 %v721, %v721
    %v786 = vpack.c.b16 %v722, %v722
    %v787 = vpack.c.b16 %v723, %v723
    %v788 = vpack.c.b16 %v724, %v724
    %v789 = vpack.c.b16 %v725, %v725
    %v790 = vpack.c.b16 %v726, %v726
    %v791 = vpack.c.b16 %v727, %v727
    %v792 = vpack.c.b16 %v728, %v728
    %v793 = vpack.c.b16 %v729, %v729
    %v794 = vpack.c.b16 %v730, %v730
    %v795 = vpack.c.b16 %v731, %v731
    %v796 = vpack.c.b16 %v732, %v732
    %v797 = vpack.c.b16 %v733, %v733
    %v798 = vpack.c.b16 %v734, %v734
    %v799 = vpack.c.b16 %v735, %v735
    %v800 = vpack.c.b16 %v736, %v736
    %v801 = vpack.c.b16 %v737, %v737
    %v802 = vpack.c.b16 %v738, %v738
    %v803 = vpack.c.b16 %v739, %v739
    %v804 = vpack.c.b16 %v740, %v740
    %v805 = vpack.c.b16 %v741, %v741
    %v806 = vpack.c.b16 %v742, %v742
    %v807 = vpack.c.b16 %v743, %v743
    %v808 = vpack.c.b16 %v744, %v744
    %v809 = vpack.c.b16 %v745, %v745
    %v810 = vpack.c.b16 %v746, %v746
    %v811 = vpack.c.b16 %v747, %v747
    %v812 = vpack.c.b16 %v748, %v748
    %v813 = vpack.c.b16 %v749, %v749
    %v814 = vpack.c.b16 %v750, %v750
    %v815 = vpack.c.b16 %v751, %v751
    %v816 = vpack.c.b16 %v752, %v752
    %v817 = vpack.c.b16 %v753, %v753
    %v818 = vpack.c.b16 %v754, %v754
    %v819 = vpack.c.b16 %v755, %v755
    %v820 = vpack.c.b16 %v756, %v756
    %v821 = vpack.c.b16 %v757, %v757
    %v822 = vpack.c.b16 %v758, %v758
    %v823 = vpack.c.b16 %v759, %v759
    %v824 = vpack.c.b16 %v760, %v760
    %v825 = vpack.c.b16 %v761, %v761
    %v826 = vpack.c.b16 %v762, %v762
    %v827 = vpack.c.b16 %v763, %v763
    %v828 = vpack.c.b16 %v764, %v764
    %v829 = vpack.c.b16 %v765, %v765
    %v830 = vpack.c.b16 %v766, %v766
    %v831 = vpack.c.b16 %v767, %v767
    %v832 = vpack.c.b16 %v768, %v768
    %v833 = vpack.c.b16 %v769, %v769
    %v834 = vpack.c.b16 %v770, %v770
    %v835 = vpack.c.b16 %v771, %v771
    %v836 = vpack.c.b16 %v772, %v772
    %v837 = vpack.c.b16 %v773, %v773
    %v838 = vpack.c.b16 %v774, %v774
    %v839 = vpack.c.b16 %v775, %v775
    %v840 = vpack.c.b16 %v776, %v776
    %905 = vst [vmem:[%s2] sm:$0xf] %v777
    %906 = vst [vmem:[%s2 + $0x4] sm:$0xf] %v778
    %907 = vst [vmem:[%s2 + $0x8] sm:$0xf] %v779
    %908 = vst [vmem:[%s2 + $0xc] sm:$0xf] %v780
    %909 = vst [vmem:[%s2 + $0x10] sm:$0xf] %v781
    %910 = vst [vmem:[%s2 + $0x14] sm:$0xf] %v782
    %911 = vst [vmem:[%s2 + $0x18] sm:$0xf] %v783
    %912 = vst [vmem:[%s2 + $0x1c] sm:$0xf] %v784
    %913 = vst [vmem:[%s2 + $0x20] sm:$0xf] %v785
    %914 = vst [vmem:[%s2 + $0x24] sm:$0xf] %v786
    %915 = vst [vmem:[%s2 + $0x28] sm:$0xf] %v787
    %916 = vst [vmem:[%s2 + $0x2c] sm:$0xf] %v788
    %917 = vst [vmem:[%s2 + $0x30] sm:$0xf] %v789
    %918 = vst [vmem:[%s2 + $0x34] sm:$0xf] %v790
    %919 = vst [vmem:[%s2 + $0x38] sm:$0xf] %v791
    %920 = vst [vmem:[%s2 + $0x3c] sm:$0xf] %v792
    %921 = vst [vmem:[%s2 + $0x40] sm:$0xf] %v793
    %922 = vst [vmem:[%s2 + $0x44] sm:$0xf] %v794
    %923 = vst [vmem:[%s2 + $0x48] sm:$0xf] %v795
    %924 = vst [vmem:[%s2 + $0x4c] sm:$0xf] %v796
    %925 = vst [vmem:[%s2 + $0x50] sm:$0xf] %v797
    %926 = vst [vmem:[%s2 + $0x54] sm:$0xf] %v798
    %927 = vst [vmem:[%s2 + $0x58] sm:$0xf] %v799
    %928 = vst [vmem:[%s2 + $0x5c] sm:$0xf] %v800
    %929 = vst [vmem:[%s2 + $0x60] sm:$0xf] %v801
    %930 = vst [vmem:[%s2 + $0x64] sm:$0xf] %v802
    %931 = vst [vmem:[%s2 + $0x68] sm:$0xf] %v803
    %932 = vst [vmem:[%s2 + $0x6c] sm:$0xf] %v804
    %933 = vst [vmem:[%s2 + $0x70] sm:$0xf] %v805
    %934 = vst [vmem:[%s2 + $0x74] sm:$0xf] %v806
    %935 = vst [vmem:[%s2 + $0x78] sm:$0xf] %v807
    %936 = vst [vmem:[%s2 + $0x7c] sm:$0xf] %v808
    %937 = vst [vmem:[%s2 + $0x80] sm:$0xf] %v809
    %938 = vst [vmem:[%s2 + $0x84] sm:$0xf] %v810
    %939 = vst [vmem:[%s2 + $0x88] sm:$0xf] %v811
    %940 = vst [vmem:[%s2 + $0x8c] sm:$0xf] %v812
    %941 = vst [vmem:[%s2 + $0x90] sm:$0xf] %v813
    %942 = vst [vmem:[%s2 + $0x94] sm:$0xf] %v814
    %943 = vst [vmem:[%s2 + $0x98] sm:$0xf] %v815
    %944 = vst [vmem:[%s2 + $0x9c] sm:$0xf] %v816
    %945 = vst [vmem:[%s2 + $0xa0] sm:$0xf] %v817
    %946 = vst [vmem:[%s2 + $0xa4] sm:$0xf] %v818
    %947 = vst [vmem:[%s2 + $0xa8] sm:$0xf] %v819
    %948 = vst [vmem:[%s2 + $0xac] sm:$0xf] %v820
    %949 = vst [vmem:[%s2 + $0xb0] sm:$0xf] %v821
    %950 = vst [vmem:[%s2 + $0xb4] sm:$0xf] %v822
    %951 = vst [vmem:[%s2 + $0xb8] sm:$0xf] %v823
    %952 = vst [vmem:[%s2 + $0xbc] sm:$0xf] %v824
    %953 = vst [vmem:[%s2 + $0xc0] sm:$0xf] %v825
    %954 = vst [vmem:[%s2 + $0xc4] sm:$0xf] %v826
    %955 = vst [vmem:[%s2 + $0xc8] sm:$0xf] %v827
    %956 = vst [vmem:[%s2 + $0xcc] sm:$0xf] %v828
    %957 = vst [vmem:[%s2 + $0xd0] sm:$0xf] %v829
    %958 = vst [vmem:[%s2 + $0xd4] sm:$0xf] %v830
    %959 = vst [vmem:[%s2 + $0xd8] sm:$0xf] %v831
    %960 = vst [vmem:[%s2 + $0xdc] sm:$0xf] %v832
    %961 = vst [vmem:[%s2 + $0xe0] sm:$0xf] %v833
    %962 = vst [vmem:[%s2 + $0xe4] sm:$0xf] %v834
    %963 = vst [vmem:[%s2 + $0xe8] sm:$0xf] %v835
    %964 = vst [vmem:[%s2 + $0xec] sm:$0xf] %v836
    %965 = vst [vmem:[%s2 + $0xf0] sm:$0xf] %v837
    %966 = vst [vmem:[%s2 + $0xf4] sm:$0xf] %v838
    %967 = vst [vmem:[%s2 + $0xf8] sm:$0xf] %v839
    %968 = vst [vmem:[%s2 + $0xfc] sm:$0xf] %v840
    // Predicated region
    $region18: #{gcn_forward.2} parent=1 // pred_check
      _
    $region19: #{gcn_forward.2} parent=1 // pred_check_branch
      %970 = sbr.rel (0) target = $region21
    $region20: #{gcn_forward.2} parent=1 // pred_region
      _
    $region21: #{gcn_forward.2} parent=1 // pred_fallthru
      _
    // Predicated region
    $region22: #{gcn_forward.2} parent=1 // pred_check
      _
    $region23: #{gcn_forward.2} parent=1 // pred_check_branch
      %972 = sbr.rel (0) target = $region25
    $region24: #{gcn_forward.2} parent=1 // pred_region
      _
    $region25: #{gcn_forward.2} parent=1 // pred_fallthru
      _
    %973 = vsyncpa [#allocation3], 1
    %974 = vsyncpa [#allocation5], 1

// kernel: gcn_forward.3
$region0: #{gcn_forward.3}
  #allocation0 [shape = 'u32[]', space=smem, size = 0x4, offset = 0x4, fixed_abs, tag = 'smem constant byte address 0x4 - core index']
  #allocation1 [shape = 'u32[144,128]{1,0:T(1,128)}', space=vmem, size = 0x12000, scoped, tag = 'internal scratch']
  %s0 = inlined_call_operand.hbm [shape: bf16[512,512], index: 0, kind: input, shape index: {}]
  %s1 = inlined_call_operand.vmem [shape: bf16[512,128], index: 1, kind: input, shape index: {}]
  %s2 = inlined_call_operand.vmem [shape: f32[1,128], index: 2, kind: input, shape index: {}]
  %s3 = inlined_call_operand.vmem [shape: bf16[128,128], index: 3, kind: input, shape index: {}]
  %s4 = inlined_call_operand.vmem [shape: f32[1,128], index: 4, kind: input, shape index: {}]
  %s5 = inlined_call_operand.vmem [shape: f32[512,128], index: 5, kind: output, shape index: {}]
  %s6 = sld [smem:[#allocation0]]
  $region34: #{gcn_forward.3} parent=0
    _
  %s8 = ssub.s32 1, %s6
  %s9 = scalar_select 0, %s8, %s6
  $region1: #{gcn_forward.3} parent=0
    #allocation2 [shape = 'u8[524288]{0}', space=vmem, size = 0x80000, scoped, tag = 'input window, operand 0, single buffered']
    #allocation3 [shape = 's32[1]{0}', space=sflag, size = 0x4, scoped, tag = 'scoped memory for gcn_forward.3']
    %10 = vsyncpa [#allocation3], 0
    // Predicated region
    $region2: #{gcn_forward.3} parent=1 // pred_check
      _
    $region3: #{gcn_forward.3} parent=1 // pred_check_branch
      %12 = sbr.rel (0) target = $region5
    $region4: #{gcn_forward.3} parent=1 // pred_region
      %s14 = ssub.s32 16384, 16384
      %15 = vsyncadd [#allocation3], %s14
      %s16 = sshll.u32 [#allocation2], 4
      %s17 = int_to_ptr.vmem [resolvable:$true] %s16
      %22 = dma.hbm_to_vmem [thread:$0]  %s0, 16384, %s17, [#allocation3], 256, 256, 16
    $region5: #{gcn_forward.3} parent=1 // pred_fallthru
      _
    // Predicated region
    $region6: #{gcn_forward.3} parent=1 // pred_check
      _
    $region7: #{gcn_forward.3} parent=1 // pred_check_branch
      %24 = sbr.rel (0) target = $region9
    $region8: #{gcn_forward.3} parent=1 // pred_region
      _
    $region9: #{gcn_forward.3} parent=1 // pred_fallthru
      _
    // Predicated region
    $region10: #{gcn_forward.3} parent=1 // pred_check
      _
    $region11: #{gcn_forward.3} parent=1 // pred_check_branch
      %26 = sbr.rel (0) target = $region13
    $region12: #{gcn_forward.3} parent=1 // pred_region
      _
    $region13: #{gcn_forward.3} parent=1 // pred_fallthru
      _
    // Predicated region
    $region14: #{gcn_forward.3} parent=1 // pred_check
      _
    $region15: #{gcn_forward.3} parent=1 // pred_check_branch
      %28 = sbr.rel (0) target = $region17
    $region16: #{gcn_forward.3} parent=1 // pred_region
      _
    $region17: #{gcn_forward.3} parent=1 // pred_fallthru
      _
    // Predicated region
    $region18: #{gcn_forward.3} parent=1 // pred_check
      _
    $region19: #{gcn_forward.3} parent=1 // pred_check_branch
      %30 = sbr.rel (0) target = $region21
    $region20: #{gcn_forward.3} parent=1 // pred_region
      _
    $region21: #{gcn_forward.3} parent=1 // pred_fallthru
      _
    // Predicated region
    $region22: #{gcn_forward.3} parent=1 // pred_check
      _
    $region23: #{gcn_forward.3} parent=1 // pred_check_branch
      %32 = sbr.rel (0) target = $region25
    $region24: #{gcn_forward.3} parent=1 // pred_region
      %33 = dma.done [#allocation3], 16384
    $region25: #{gcn_forward.3} parent=1 // pred_fallthru
      _
    %v35 = vld [vmem:[#allocation2] sm:$0xff]
    %v36 = vld [vmem:[#allocation2 + $0x8] sm:$0xff]
    %v37 = vld [vmem:[#allocation2 + $0x10] sm:$0xff]
    %v38 = vld [vmem:[#allocation2 + $0x18] sm:$0xff]
    %v39 = vld [vmem:[#allocation2 + $0x20] sm:$0xff]
    %v40 = vld [vmem:[#allocation2 + $0x28] sm:$0xff]
    %v41 = vld [vmem:[#allocation2 + $0x30] sm:$0xff]
    %v42 = vld [vmem:[#allocation2 + $0x38] sm:$0xff]
    %v43 = vld [vmem:[#allocation2 + $0x40] sm:$0xff]
    %v44 = vld [vmem:[#allocation2 + $0x48] sm:$0xff]
    %v45 = vld [vmem:[#allocation2 + $0x50] sm:$0xff]
    %v46 = vld [vmem:[#allocation2 + $0x58] sm:$0xff]
    %v47 = vld [vmem:[#allocation2 + $0x60] sm:$0xff]
    %v48 = vld [vmem:[#allocation2 + $0x68] sm:$0xff]
    %v49 = vld [vmem:[#allocation2 + $0x70] sm:$0xff]
    %v50 = vld [vmem:[#allocation2 + $0x78] sm:$0xff]
    %v51 = vld [vmem:[#allocation2 + $0x80] sm:$0xff]
    %v52 = vld [vmem:[#allocation2 + $0x88] sm:$0xff]
    %v53 = vld [vmem:[#allocation2 + $0x90] sm:$0xff]
    %v54 = vld [vmem:[#allocation2 + $0x98] sm:$0xff]
    %v55 = vld [vmem:[#allocation2 + $0xa0] sm:$0xff]
    %v56 = vld [vmem:[#allocation2 + $0xa8] sm:$0xff]
    %v57 = vld [vmem:[#allocation2 + $0xb0] sm:$0xff]
    %v58 = vld [vmem:[#allocation2 + $0xb8] sm:$0xff]
    %v59 = vld [vmem:[#allocation2 + $0xc0] sm:$0xff]
    %v60 = vld [vmem:[#allocation2 + $0xc8] sm:$0xff]
    %v61 = vld [vmem:[#allocation2 + $0xd0] sm:$0xff]
    %v62 = vld [vmem:[#allocation2 + $0xd8] sm:$0xff]
    %v63 = vld [vmem:[#allocation2 + $0xe0] sm:$0xff]
    %v64 = vld [vmem:[#allocation2 + $0xe8] sm:$0xff]
    %v65 = vld [vmem:[#allocation2 + $0xf0] sm:$0xff]
    %v66 = vld [vmem:[#allocation2 + $0xf8] sm:$0xff]
    %v67 = vld [vmem:[#allocation2 + $0x100] sm:$0xff]
    %v68 = vld [vmem:[#allocation2 + $0x108] sm:$0xff]
    %v69 = vld [vmem:[#allocation2 + $0x110] sm:$0xff]
    %v70 = vld [vmem:[#allocation2 + $0x118] sm:$0xff]
    %v71 = vld [vmem:[#allocation2 + $0x120] sm:$0xff]
    %v72 = vld [vmem:[#allocation2 + $0x128] sm:$0xff]
    %v73 = vld [vmem:[#allocation2 + $0x130] sm:$0xff]
    %v74 = vld [vmem:[#allocation2 + $0x138] sm:$0xff]
    %v75 = vld [vmem:[#allocation2 + $0x140] sm:$0xff]
    %v76 = vld [vmem:[#allocation2 + $0x148] sm:$0xff]
    %v77 = vld [vmem:[#allocation2 + $0x150] sm:$0xff]
    %v78 = vld [vmem:[#allocation2 + $0x158] sm:$0xff]
    %v79 = vld [vmem:[#allocation2 + $0x160] sm:$0xff]
    %v80 = vld [vmem:[#allocation2 + $0x168] sm:$0xff]
    %v81 = vld [vmem:[#allocation2 + $0x170] sm:$0xff]
    %v82 = vld [vmem:[#allocation2 + $0x178] sm:$0xff]
    %v83 = vld [vmem:[#allocation2 + $0x180] sm:$0xff]
    %v84 = vld [vmem:[#allocation2 + $0x188] sm:$0xff]
    %v85 = vld [vmem:[#allocation2 + $0x190] sm:$0xff]
    %v86 = vld [vmem:[#allocation2 + $0x198] sm:$0xff]
    %v87 = vld [vmem:[#allocation2 + $0x1a0] sm:$0xff]
    %v88 = vld [vmem:[#allocation2 + $0x1a8] sm:$0xff]
    %v89 = vld [vmem:[#allocation2 + $0x1b0] sm:$0xff]
    %v90 = vld [vmem:[#allocation2 + $0x1b8] sm:$0xff]
    %v91 = vld [vmem:[#allocation2 + $0x1c0] sm:$0xff]
    %v92 = vld [vmem:[#allocation2 + $0x1c8] sm:$0xff]
    %v93 = vld [vmem:[#allocation2 + $0x1d0] sm:$0xff]
    %v94 = vld [vmem:[#allocation2 + $0x1d8] sm:$0xff]
    %v95 = vld [vmem:[#allocation2 + $0x1e0] sm:$0xff]
    %v96 = vld [vmem:[#allocation2 + $0x1e8] sm:$0xff]
    %v97 = vld [vmem:[#allocation2 + $0x1f0] sm:$0xff]
    %v98 = vld [vmem:[#allocation2 + $0x1f8] sm:$0xff]
    %v99 = vld [vmem:[#allocation2 + $0x200] sm:$0xff]
    %v100 = vld [vmem:[#allocation2 + $0x208] sm:$0xff]
    %v101 = vld [vmem:[#allocation2 + $0x210] sm:$0xff]
    %v102 = vld [vmem:[#allocation2 + $0x218] sm:$0xff]
    %v103 = vld [vmem:[#allocation2 + $0x220] sm:$0xff]
    %v104 = vld [vmem:[#allocation2 + $0x228] sm:$0xff]
    %v105 = vld [vmem:[#allocation2 + $0x230] sm:$0xff]
    %v106 = vld [vmem:[#allocation2 + $0x238] sm:$0xff]
    %v107 = vld [vmem:[#allocation2 + $0x240] sm:$0xff]
    %v108 = vld [vmem:[#allocation2 + $0x248] sm:$0xff]
    %v109 = vld [vmem:[#allocation2 + $0x250] sm:$0xff]
    %v110 = vld [vmem:[#allocation2 + $0x258] sm:$0xff]
    %v111 = vld [vmem:[#allocation2 + $0x260] sm:$0xff]
    %v112 = vld [vmem:[#allocation2 + $0x268] sm:$0xff]
    %v113 = vld [vmem:[#allocation2 + $0x270] sm:$0xff]
    %v114 = vld [vmem:[#allocation2 + $0x278] sm:$0xff]
    %v115 = vld [vmem:[#allocation2 + $0x280] sm:$0xff]
    %v116 = vld [vmem:[#allocation2 + $0x288] sm:$0xff]
    %v117 = vld [vmem:[#allocation2 + $0x290] sm:$0xff]
    %v118 = vld [vmem:[#allocation2 + $0x298] sm:$0xff]
    %v119 = vld [vmem:[#allocation2 + $0x2a0] sm:$0xff]
    %v120 = vld [vmem:[#allocation2 + $0x2a8] sm:$0xff]
    %v121 = vld [vmem:[#allocation2 + $0x2b0] sm:$0xff]
    %v122 = vld [vmem:[#allocation2 + $0x2b8] sm:$0xff]
    %v123 = vld [vmem:[#allocation2 + $0x2c0] sm:$0xff]
    %v124 = vld [vmem:[#allocation2 + $0x2c8] sm:$0xff]
    %v125 = vld [vmem:[#allocation2 + $0x2d0] sm:$0xff]
    %v126 = vld [vmem:[#allocation2 + $0x2d8] sm:$0xff]
    %v127 = vld [vmem:[#allocation2 + $0x2e0] sm:$0xff]
    %v128 = vld [vmem:[#allocation2 + $0x2e8] sm:$0xff]
    %v129 = vld [vmem:[#allocation2 + $0x2f0] sm:$0xff]
    %v130 = vld [vmem:[#allocation2 + $0x2f8] sm:$0xff]
    %v131 = vld [vmem:[#allocation2 + $0x300] sm:$0xff]
    %v132 = vld [vmem:[#allocation2 + $0x308] sm:$0xff]
    %v133 = vld [vmem:[#allocation2 + $0x310] sm:$0xff]
    %v134 = vld [vmem:[#allocation2 + $0x318] sm:$0xff]
    %v135 = vld [vmem:[#allocation2 + $0x320] sm:$0xff]
    %v136 = vld [vmem:[#allocation2 + $0x328] sm:$0xff]
    %v137 = vld [vmem:[#allocation2 + $0x330] sm:$0xff]
    %v138 = vld [vmem:[#allocation2 + $0x338] sm:$0xff]
    %v139 = vld [vmem:[#allocation2 + $0x340] sm:$0xff]
    %v140 = vld [vmem:[#allocation2 + $0x348] sm:$0xff]
    %v141 = vld [vmem:[#allocation2 + $0x350] sm:$0xff]
    %v142 = vld [vmem:[#allocation2 + $0x358] sm:$0xff]
    %v143 = vld [vmem:[#allocation2 + $0x360] sm:$0xff]
    %v144 = vld [vmem:[#allocation2 + $0x368] sm:$0xff]
    %v145 = vld [vmem:[#allocation2 + $0x370] sm:$0xff]
    %v146 = vld [vmem:[#allocation2 + $0x378] sm:$0xff]
    %v147 = vld [vmem:[#allocation2 + $0x380] sm:$0xff]
    %v148 = vld [vmem:[#allocation2 + $0x388] sm:$0xff]
    %v149 = vld [vmem:[#allocation2 + $0x390] sm:$0xff]
    %v150 = vld [vmem:[#allocation2 + $0x398] sm:$0xff]
    %v151 = vld [vmem:[#allocation2 + $0x3a0] sm:$0xff]
    %v152 = vld [vmem:[#allocation2 + $0x3a8] sm:$0xff]
    %v153 = vld [vmem:[#allocation2 + $0x3b0] sm:$0xff]
    %v154 = vld [vmem:[#allocation2 + $0x3b8] sm:$0xff]
    %v155 = vld [vmem:[#allocation2 + $0x3c0] sm:$0xff]
    %v156 = vld [vmem:[#allocation2 + $0x3c8] sm:$0xff]
    %v157 = vld [vmem:[#allocation2 + $0x3d0] sm:$0xff]
    %v158 = vld [vmem:[#allocation2 + $0x3d8] sm:$0xff]
    %v159 = vld [vmem:[#allocation2 + $0x3e0] sm:$0xff]
    %v160 = vld [vmem:[#allocation2 + $0x3e8] sm:$0xff]
    %v161 = vld [vmem:[#allocation2 + $0x3f0] sm:$0xff]
    %v162 = vld [vmem:[#allocation2 + $0x3f8] sm:$0xff]
    %v163 = vld [vmem:[%s1] sm:$0xf]
    %v164 = vld [vmem:[%s1 + $0x4] sm:$0xf]
    %v165 = vld [vmem:[%s1 + $0x8] sm:$0xf]
    %v166 = vld [vmem:[%s1 + $0xc] sm:$0xf]
    %v167 = vld [vmem:[%s1 + $0x10] sm:$0xf]
    %v168 = vld [vmem:[%s1 + $0x14] sm:$0xf]
    %v169 = vld [vmem:[%s1 + $0x18] sm:$0xf]
    %v170 = vld [vmem:[%s1 + $0x1c] sm:$0xf]
    %v171 = vld [vmem:[%s1 + $0x20] sm:$0xf]
    %v172 = vld [vmem:[%s1 + $0x24] sm:$0xf]
    %v173 = vld [vmem:[%s1 + $0x28] sm:$0xf]
    %v174 = vld [vmem:[%s1 + $0x2c] sm:$0xf]
    %v175 = vld [vmem:[%s1 + $0x30] sm:$0xf]
    %v176 = vld [vmem:[%s1 + $0x34] sm:$0xf]
    %v177 = vld [vmem:[%s1 + $0x38] sm:$0xf]
    %v178 = vld [vmem:[%s1 + $0x3c] sm:$0xf]
    %v179 = vld [vmem:[%s1 + $0x40] sm:$0xf]
    %v180 = vld [vmem:[%s1 + $0x44] sm:$0xf]
    %v181 = vld [vmem:[%s1 + $0x48] sm:$0xf]
    %v182 = vld [vmem:[%s1 + $0x4c] sm:$0xf]
    %v183 = vld [vmem:[%s1 + $0x50] sm:$0xf]
    %v184 = vld [vmem:[%s1 + $0x54] sm:$0xf]
    %v185 = vld [vmem:[%s1 + $0x58] sm:$0xf]
    %v186 = vld [vmem:[%s1 + $0x5c] sm:$0xf]
    %v187 = vld [vmem:[%s1 + $0x60] sm:$0xf]
    %v188 = vld [vmem:[%s1 + $0x64] sm:$0xf]
    %v189 = vld [vmem:[%s1 + $0x68] sm:$0xf]
    %v190 = vld [vmem:[%s1 + $0x6c] sm:$0xf]
    %v191 = vld [vmem:[%s1 + $0x70] sm:$0xf]
    %v192 = vld [vmem:[%s1 + $0x74] sm:$0xf]
    %v193 = vld [vmem:[%s1 + $0x78] sm:$0xf]
    %v194 = vld [vmem:[%s1 + $0x7c] sm:$0xf]
    %v195 = vld [vmem:[%s1 + $0x80] sm:$0xf]
    %v196 = vld [vmem:[%s1 + $0x84] sm:$0xf]
    %v197 = vld [vmem:[%s1 + $0x88] sm:$0xf]
    %v198 = vld [vmem:[%s1 + $0x8c] sm:$0xf]
    %v199 = vld [vmem:[%s1 + $0x90] sm:$0xf]
    %v200 = vld [vmem:[%s1 + $0x94] sm:$0xf]
    %v201 = vld [vmem:[%s1 + $0x98] sm:$0xf]
    %v202 = vld [vmem:[%s1 + $0x9c] sm:$0xf]
    %v203 = vld [vmem:[%s1 + $0xa0] sm:$0xf]
    %v204 = vld [vmem:[%s1 + $0xa4] sm:$0xf]
    %v205 = vld [vmem:[%s1 + $0xa8] sm:$0xf]
    %v206 = vld [vmem:[%s1 + $0xac] sm:$0xf]
    %v207 = vld [vmem:[%s1 + $0xb0] sm:$0xf]
    %v208 = vld [vmem:[%s1 + $0xb4] sm:$0xf]
    %v209 = vld [vmem:[%s1 + $0xb8] sm:$0xf]
    %v210 = vld [vmem:[%s1 + $0xbc] sm:$0xf]
    %v211 = vld [vmem:[%s1 + $0xc0] sm:$0xf]
    %v212 = vld [vmem:[%s1 + $0xc4] sm:$0xf]
    %v213 = vld [vmem:[%s1 + $0xc8] sm:$0xf]
    %v214 = vld [vmem:[%s1 + $0xcc] sm:$0xf]
    %v215 = vld [vmem:[%s1 + $0xd0] sm:$0xf]
    %v216 = vld [vmem:[%s1 + $0xd4] sm:$0xf]
    %v217 = vld [vmem:[%s1 + $0xd8] sm:$0xf]
    %v218 = vld [vmem:[%s1 + $0xdc] sm:$0xf]
    %v219 = vld [vmem:[%s1 + $0xe0] sm:$0xf]
    %v220 = vld [vmem:[%s1 + $0xe4] sm:$0xf]
    %v221 = vld [vmem:[%s1 + $0xe8] sm:$0xf]
    %v222 = vld [vmem:[%s1 + $0xec] sm:$0xf]
    %v223 = vld [vmem:[%s1 + $0xf0] sm:$0xf]
    %v224 = vld [vmem:[%s1 + $0xf4] sm:$0xf]
    %v225 = vld [vmem:[%s1 + $0xf8] sm:$0xf]
    %v226 = vld [vmem:[%s1 + $0xfc] sm:$0xf]
    %v227 = vld [vmem:[%s2] sm:$0x1]
    %v229 = vlaneseq
    %v230 = vshrl.u32 %v229, 7
    %v231 = vsub.s32 0, %v230
    %v232 = vrot.slane %v227, %v231
    %v362 = vunpack.c.l.b16 %v35
    %v363 = vunpack.c.h.b16 %v35
    %v364 = vunpack.c.l.b16 %v36
    %v365 = vunpack.c.h.b16 %v36
    %v366 = vunpack.c.l.b16 %v37
    %v367 = vunpack.c.h.b16 %v37
    %v368 = vunpack.c.l.b16 %v38
    %v369 = vunpack.c.h.b16 %v38
    %v370 = vunpack.c.l.b16 %v39
    %v371 = vunpack.c.h.b16 %v39
    %v372 = vunpack.c.l.b16 %v40
    %v373 = vunpack.c.h.b16 %v40
    %v374 = vunpack.c.l.b16 %v41
    %v375 = vunpack.c.h.b16 %v41
    %v376 = vunpack.c.l.b16 %v42
    %v377 = vunpack.c.h.b16 %v42
    %v378 = vunpack.c.l.b16 %v43
    %v379 = vunpack.c.h.b16 %v43
    %v380 = vunpack.c.l.b16 %v44
    %v381 = vunpack.c.h.b16 %v44
    %v382 = vunpack.c.l.b16 %v45
    %v383 = vunpack.c.h.b16 %v45
    %v384 = vunpack.c.l.b16 %v46
    %v385 = vunpack.c.h.b16 %v46
    %v386 = vunpack.c.l.b16 %v47
    %v387 = vunpack.c.h.b16 %v47
    %v388 = vunpack.c.l.b16 %v48
    %v389 = vunpack.c.h.b16 %v48
    %v390 = vunpack.c.l.b16 %v49
    %v391 = vunpack.c.h.b16 %v49
    %v392 = vunpack.c.l.b16 %v50
    %v393 = vunpack.c.h.b16 %v50
    %v394 = vunpack.c.l.b16 %v51
    %v395 = vunpack.c.h.b16 %v51
    %v396 = vunpack.c.l.b16 %v52
    %v397 = vunpack.c.h.b16 %v52
    %v398 = vunpack.c.l.b16 %v53
    %v399 = vunpack.c.h.b16 %v53
    %v400 = vunpack.c.l.b16 %v54
    %v401 = vunpack.c.h.b16 %v54
    %v402 = vunpack.c.l.b16 %v55
    %v403 = vunpack.c.h.b16 %v55
    %v404 = vunpack.c.l.b16 %v56
    %v405 = vunpack.c.h.b16 %v56
    %v406 = vunpack.c.l.b16 %v57
    %v407 = vunpack.c.h.b16 %v57
    %v408 = vunpack.c.l.b16 %v58
    %v409 = vunpack.c.h.b16 %v58
    %v410 = vunpack.c.l.b16 %v59
    %v411 = vunpack.c.h.b16 %v59
    %v412 = vunpack.c.l.b16 %v60
    %v413 = vunpack.c.h.b16 %v60
    %v414 = vunpack.c.l.b16 %v61
    %v415 = vunpack.c.h.b16 %v61
    %v416 = vunpack.c.l.b16 %v62
    %v417 = vunpack.c.h.b16 %v62
    %v418 = vunpack.c.l.b16 %v63
    %v419 = vunpack.c.h.b16 %v63
    %v420 = vunpack.c.l.b16 %v64
    %v421 = vunpack.c.h.b16 %v64
    %v422 = vunpack.c.l.b16 %v65
    %v423 = vunpack.c.h.b16 %v65
    %v424 = vunpack.c.l.b16 %v66
    %v425 = vunpack.c.h.b16 %v66
    %v426 = vunpack.c.l.b16 %v67
    %v427 = vunpack.c.h.b16 %v67
    %v428 = vunpack.c.l.b16 %v68
    %v429 = vunpack.c.h.b16 %v68
    %v430 = vunpack.c.l.b16 %v69
    %v431 = vunpack.c.h.b16 %v69
    %v432 = vunpack.c.l.b16 %v70
    %v433 = vunpack.c.h.b16 %v70
    %v434 = vunpack.c.l.b16 %v71
    %v435 = vunpack.c.h.b16 %v71
    %v436 = vunpack.c.l.b16 %v72
    %v437 = vunpack.c.h.b16 %v72
    %v438 = vunpack.c.l.b16 %v73
    %v439 = vunpack.c.h.b16 %v73
    %v440 = vunpack.c.l.b16 %v74
    %v441 = vunpack.c.h.b16 %v74
    %v442 = vunpack.c.l.b16 %v75
    %v443 = vunpack.c.h.b16 %v75
    %v444 = vunpack.c.l.b16 %v76
    %v445 = vunpack.c.h.b16 %v76
    %v446 = vunpack.c.l.b16 %v77
    %v447 = vunpack.c.h.b16 %v77
    %v448 = vunpack.c.l.b16 %v78
    %v449 = vunpack.c.h.b16 %v78
    %v450 = vunpack.c.l.b16 %v79
    %v451 = vunpack.c.h.b16 %v79
    %v452 = vunpack.c.l.b16 %v80
    %v453 = vunpack.c.h.b16 %v80
    %v454 = vunpack.c.l.b16 %v81
    %v455 = vunpack.c.h.b16 %v81
    %v456 = vunpack.c.l.b16 %v82
    %v457 = vunpack.c.h.b16 %v82
    %v458 = vunpack.c.l.b16 %v83
    %v459 = vunpack.c.h.b16 %v83
    %v460 = vunpack.c.l.b16 %v84
    %v461 = vunpack.c.h.b16 %v84
    %v462 = vunpack.c.l.b16 %v85
    %v463 = vunpack.c.h.b16 %v85
    %v464 = vunpack.c.l.b16 %v86
    %v465 = vunpack.c.h.b16 %v86
    %v466 = vunpack.c.l.b16 %v87
    %v467 = vunpack.c.h.b16 %v87
    %v468 = vunpack.c.l.b16 %v88
    %v469 = vunpack.c.h.b16 %v88
    %v470 = vunpack.c.l.b16 %v89
    %v471 = vunpack.c.h.b16 %v89
    %v472 = vunpack.c.l.b16 %v90
    %v473 = vunpack.c.h.b16 %v90
    %v474 = vunpack.c.l.b16 %v91
    %v475 = vunpack.c.h.b16 %v91
    %v476 = vunpack.c.l.b16 %v92
    %v477 = vunpack.c.h.b16 %v92
    %v478 = vunpack.c.l.b16 %v93
    %v479 = vunpack.c.h.b16 %v93
    %v480 = vunpack.c.l.b16 %v94
    %v481 = vunpack.c.h.b16 %v94
    %v482 = vunpack.c.l.b16 %v95
    %v483 = vunpack.c.h.b16 %v95
    %v484 = vunpack.c.l.b16 %v96
    %v485 = vunpack.c.h.b16 %v96
    %v486 = vunpack.c.l.b16 %v97
    %v487 = vunpack.c.h.b16 %v97
    %v488 = vunpack.c.l.b16 %v98
    %v489 = vunpack.c.h.b16 %v98
    %v490 = vunpack.c.l.b16 %v99
    %v491 = vunpack.c.h.b16 %v99
    %v492 = vunpack.c.l.b16 %v100
    %v493 = vunpack.c.h.b16 %v100
    %v494 = vunpack.c.l.b16 %v101
    %v495 = vunpack.c.h.b16 %v101
    %v496 = vunpack.c.l.b16 %v102
    %v497 = vunpack.c.h.b16 %v102
    %v498 = vunpack.c.l.b16 %v103
    %v499 = vunpack.c.h.b16 %v103
    %v500 = vunpack.c.l.b16 %v104
    %v501 = vunpack.c.h.b16 %v104
    %v502 = vunpack.c.l.b16 %v105
    %v503 = vunpack.c.h.b16 %v105
    %v504 = vunpack.c.l.b16 %v106
    %v505 = vunpack.c.h.b16 %v106
    %v506 = vunpack.c.l.b16 %v107
    %v507 = vunpack.c.h.b16 %v107
    %v508 = vunpack.c.l.b16 %v108
    %v509 = vunpack.c.h.b16 %v108
    %v510 = vunpack.c.l.b16 %v109
    %v511 = vunpack.c.h.b16 %v109
    %v512 = vunpack.c.l.b16 %v110
    %v513 = vunpack.c.h.b16 %v110
    %v514 = vunpack.c.l.b16 %v111
    %v515 = vunpack.c.h.b16 %v111
    %v516 = vunpack.c.l.b16 %v112
    %v517 = vunpack.c.h.b16 %v112
    %v518 = vunpack.c.l.b16 %v113
    %v519 = vunpack.c.h.b16 %v113
    %v520 = vunpack.c.l.b16 %v114
    %v521 = vunpack.c.h.b16 %v114
    %v522 = vunpack.c.l.b16 %v115
    %v523 = vunpack.c.h.b16 %v115
    %v524 = vunpack.c.l.b16 %v116
    %v525 = vunpack.c.h.b16 %v116
    %v526 = vunpack.c.l.b16 %v117
    %v527 = vunpack.c.h.b16 %v117
    %v528 = vunpack.c.l.b16 %v118
    %v529 = vunpack.c.h.b16 %v118
    %v530 = vunpack.c.l.b16 %v119
    %v531 = vunpack.c.h.b16 %v119
    %v532 = vunpack.c.l.b16 %v120
    %v533 = vunpack.c.h.b16 %v120
    %v534 = vunpack.c.l.b16 %v121
    %v535 = vunpack.c.h.b16 %v121
    %v536 = vunpack.c.l.b16 %v122
    %v537 = vunpack.c.h.b16 %v122
    %v538 = vunpack.c.l.b16 %v123
    %v539 = vunpack.c.h.b16 %v123
    %v540 = vunpack.c.l.b16 %v124
    %v541 = vunpack.c.h.b16 %v124
    %v542 = vunpack.c.l.b16 %v125
    %v543 = vunpack.c.h.b16 %v125
    %v544 = vunpack.c.l.b16 %v126
    %v545 = vunpack.c.h.b16 %v126
    %v546 = vunpack.c.l.b16 %v127
    %v547 = vunpack.c.h.b16 %v127
    %v548 = vunpack.c.l.b16 %v128
    %v549 = vunpack.c.h.b16 %v128
    %v550 = vunpack.c.l.b16 %v129
    %v551 = vunpack.c.h.b16 %v129
    %v552 = vunpack.c.l.b16 %v130
    %v553 = vunpack.c.h.b16 %v130
    %v554 = vunpack.c.l.b16 %v131
    %v555 = vunpack.c.h.b16 %v131
    %v556 = vunpack.c.l.b16 %v132
    %v557 = vunpack.c.h.b16 %v132
    %v558 = vunpack.c.l.b16 %v133
    %v559 = vunpack.c.h.b16 %v133
    %v560 = vunpack.c.l.b16 %v134
    %v561 = vunpack.c.h.b16 %v134
    %v562 = vunpack.c.l.b16 %v135
    %v563 = vunpack.c.h.b16 %v135
    %v564 = vunpack.c.l.b16 %v136
    %v565 = vunpack.c.h.b16 %v136
    %v566 = vunpack.c.l.b16 %v137
    %v567 = vunpack.c.h.b16 %v137
    %v568 = vunpack.c.l.b16 %v138
    %v569 = vunpack.c.h.b16 %v138
    %v570 = vunpack.c.l.b16 %v139
    %v571 = vunpack.c.h.b16 %v139
    %v572 = vunpack.c.l.b16 %v140
    %v573 = vunpack.c.h.b16 %v140
    %v574 = vunpack.c.l.b16 %v141
    %v575 = vunpack.c.h.b16 %v141
    %v576 = vunpack.c.l.b16 %v142
    %v577 = vunpack.c.h.b16 %v142
    %v578 = vunpack.c.l.b16 %v143
    %v579 = vunpack.c.h.b16 %v143
    %v580 = vunpack.c.l.b16 %v144
    %v581 = vunpack.c.h.b16 %v144
    %v582 = vunpack.c.l.b16 %v145
    %v583 = vunpack.c.h.b16 %v145
    %v584 = vunpack.c.l.b16 %v146
    %v585 = vunpack.c.h.b16 %v146
    %v586 = vunpack.c.l.b16 %v147
    %v587 = vunpack.c.h.b16 %v147
    %v588 = vunpack.c.l.b16 %v148
    %v589 = vunpack.c.h.b16 %v148
    %v590 = vunpack.c.l.b16 %v149
    %v591 = vunpack.c.h.b16 %v149
    %v592 = vunpack.c.l.b16 %v150
    %v593 = vunpack.c.h.b16 %v150
    %v594 = vunpack.c.l.b16 %v151
    %v595 = vunpack.c.h.b16 %v151
    %v596 = vunpack.c.l.b16 %v152
    %v597 = vunpack.c.h.b16 %v152
    %v598 = vunpack.c.l.b16 %v153
    %v599 = vunpack.c.h.b16 %v153
    %v600 = vunpack.c.l.b16 %v154
    %v601 = vunpack.c.h.b16 %v154
    %v602 = vunpack.c.l.b16 %v155
    %v603 = vunpack.c.h.b16 %v155
    %v604 = vunpack.c.l.b16 %v156
    %v605 = vunpack.c.h.b16 %v156
    %v606 = vunpack.c.l.b16 %v157
    %v607 = vunpack.c.h.b16 %v157
    %v608 = vunpack.c.l.b16 %v158
    %v609 = vunpack.c.h.b16 %v158
    %v610 = vunpack.c.l.b16 %v159
    %v611 = vunpack.c.h.b16 %v159
    %v612 = vunpack.c.l.b16 %v160
    %v613 = vunpack.c.h.b16 %v160
    %v614 = vunpack.c.l.b16 %v161
    %v615 = vunpack.c.h.b16 %v161
    %v616 = vunpack.c.l.b16 %v162
    %v617 = vunpack.c.h.b16 %v162
    %v618 = vpack.c.b16 %v366, %v362
    %v619 = vpack.c.b16 %v367, %v363
    %v620 = vpack.c.b16 %v368, %v364
    %v621 = vpack.c.b16 %v369, %v365
    %v622 = vpack.c.b16 %v374, %v370
    %v623 = vpack.c.b16 %v375, %v371
    %v624 = vpack.c.b16 %v376, %v372
    %v625 = vpack.c.b16 %v377, %v373
    %v626 = vpack.c.b16 %v382, %v378
    %v627 = vpack.c.b16 %v383, %v379
    %v628 = vpack.c.b16 %v384, %v380
    %v629 = vpack.c.b16 %v385, %v381
    %v630 = vpack.c.b16 %v390, %v386
    %v631 = vpack.c.b16 %v391, %v387
    %v632 = vpack.c.b16 %v392, %v388
    %v633 = vpack.c.b16 %v393, %v389
    %v634 = vpack.c.b16 %v398, %v394
    %v635 = vpack.c.b16 %v399, %v395
    %v636 = vpack.c.b16 %v400, %v396
    %v637 = vpack.c.b16 %v401, %v397
    %v638 = vpack.c.b16 %v406, %v402
    %v639 = vpack.c.b16 %v407, %v403
    %v640 = vpack.c.b16 %v408, %v404
    %v641 = vpack.c.b16 %v409, %v405
    %v642 = vpack.c.b16 %v414, %v410
    %v643 = vpack.c.b16 %v415, %v411
    %v644 = vpack.c.b16 %v416, %v412
    %v645 = vpack.c.b16 %v417, %v413
    %v646 = vpack.c.b16 %v422, %v418
    %v647 = vpack.c.b16 %v423, %v419
    %v648 = vpack.c.b16 %v424, %v420
    %v649 = vpack.c.b16 %v425, %v421
    %v650 = vpack.c.b16 %v430, %v426
    %v651 = vpack.c.b16 %v431, %v427
    %v652 = vpack.c.b16 %v432, %v428
    %v653 = vpack.c.b16 %v433, %v429
    %v654 = vpack.c.b16 %v438, %v434
    %v655 = vpack.c.b16 %v439, %v435
    %v656 = vpack.c.b16 %v440, %v436
    %v657 = vpack.c.b16 %v441, %v437
    %v658 = vpack.c.b16 %v446, %v442
    %v659 = vpack.c.b16 %v447, %v443
    %v660 = vpack.c.b16 %v448, %v444
    %v661 = vpack.c.b16 %v449, %v445
    %v662 = vpack.c.b16 %v454, %v450
    %v663 = vpack.c.b16 %v455, %v451
    %v664 = vpack.c.b16 %v456, %v452
    %v665 = vpack.c.b16 %v457, %v453
    %v666 = vpack.c.b16 %v462, %v458
    %v667 = vpack.c.b16 %v463, %v459
    %v668 = vpack.c.b16 %v464, %v460
    %v669 = vpack.c.b16 %v465, %v461
    %v670 = vpack.c.b16 %v470, %v466
    %v671 = vpack.c.b16 %v471, %v467
    %v672 = vpack.c.b16 %v472, %v468
    %v673 = vpack.c.b16 %v473, %v469
    %v674 = vpack.c.b16 %v478, %v474
    %v675 = vpack.c.b16 %v479, %v475
    %v676 = vpack.c.b16 %v480, %v476
    %v677 = vpack.c.b16 %v481, %v477
    %v678 = vpack.c.b16 %v486, %v482
    %v679 = vpack.c.b16 %v487, %v483
    %v680 = vpack.c.b16 %v488, %v484
    %v681 = vpack.c.b16 %v489, %v485
    %v682 = vpack.c.b16 %v494, %v490
    %v683 = vpack.c.b16 %v495, %v491
    %v684 = vpack.c.b16 %v496, %v492
    %v685 = vpack.c.b16 %v497, %v493
    %v686 = vpack.c.b16 %v502, %v498
    %v687 = vpack.c.b16 %v503, %v499
    %v688 = vpack.c.b16 %v504, %v500
    %v689 = vpack.c.b16 %v505, %v501
    %v690 = vpack.c.b16 %v510, %v506
    %v691 = vpack.c.b16 %v511, %v507
    %v692 = vpack.c.b16 %v512, %v508
    %v693 = vpack.c.b16 %v513, %v509
    %v694 = vpack.c.b16 %v518, %v514
    %v695 = vpack.c.b16 %v519, %v515
    %v696 = vpack.c.b16 %v520, %v516
    %v697 = vpack.c.b16 %v521, %v517
    %v698 = vpack.c.b16 %v526, %v522
    %v699 = vpack.c.b16 %v527, %v523
    %v700 = vpack.c.b16 %v528, %v524
    %v701 = vpack.c.b16 %v529, %v525
    %v702 = vpack.c.b16 %v534, %v530
    %v703 = vpack.c.b16 %v535, %v531
    %v704 = vpack.c.b16 %v536, %v532
    %v705 = vpack.c.b16 %v537, %v533
    %v706 = vpack.c.b16 %v542, %v538
    %v707 = vpack.c.b16 %v543, %v539
    %v708 = vpack.c.b16 %v544, %v540
    %v709 = vpack.c.b16 %v545, %v541
    %v710 = vpack.c.b16 %v550, %v546
    %v711 = vpack.c.b16 %v551, %v547
    %v712 = vpack.c.b16 %v552, %v548
    %v713 = vpack.c.b16 %v553, %v549
    %v714 = vpack.c.b16 %v558, %v554
    %v715 = vpack.c.b16 %v559, %v555
    %v716 = vpack.c.b16 %v560, %v556
    %v717 = vpack.c.b16 %v561, %v557
    %v718 = vpack.c.b16 %v566, %v562
    %v719 = vpack.c.b16 %v567, %v563
    %v720 = vpack.c.b16 %v568, %v564
    %v721 = vpack.c.b16 %v569, %v565
    %v722 = vpack.c.b16 %v574, %v570
    %v723 = vpack.c.b16 %v575, %v571
    %v724 = vpack.c.b16 %v576, %v572
    %v725 = vpack.c.b16 %v577, %v573
    %v726 = vpack.c.b16 %v582, %v578
    %v727 = vpack.c.b16 %v583, %v579
    %v728 = vpack.c.b16 %v584, %v580
    %v729 = vpack.c.b16 %v585, %v581
    %v730 = vpack.c.b16 %v590, %v586
    %v731 = vpack.c.b16 %v591, %v587
    %v732 = vpack.c.b16 %v592, %v588
    %v733 = vpack.c.b16 %v593, %v589
    %v734 = vpack.c.b16 %v598, %v594
    %v735 = vpack.c.b16 %v599, %v595
    %v736 = vpack.c.b16 %v600, %v596
    %v737 = vpack.c.b16 %v601, %v597
    %v738 = vpack.c.b16 %v606, %v602
    %v739 = vpack.c.b16 %v607, %v603
    %v740 = vpack.c.b16 %v608, %v604
    %v741 = vpack.c.b16 %v609, %v605
    %v742 = vpack.c.b16 %v614, %v610
    %v743 = vpack.c.b16 %v615, %v611
    %v744 = vpack.c.b16 %v616, %v612
    %v745 = vpack.c.b16 %v617, %v613
    %v938 = vunpack.c.l.b16 %v163
    %v939 = vunpack.c.l.b16 %v164
    %v940 = vunpack.c.l.b16 %v165
    %v941 = vunpack.c.l.b16 %v166
    %v942 = vunpack.c.l.b16 %v167
    %v943 = vunpack.c.l.b16 %v168
    %v944 = vunpack.c.l.b16 %v169
    %v945 = vunpack.c.l.b16 %v170
    %v946 = vunpack.c.l.b16 %v171
    %v947 = vunpack.c.l.b16 %v172
    %v948 = vunpack.c.l.b16 %v173
    %v949 = vunpack.c.l.b16 %v174
    %v950 = vunpack.c.l.b16 %v175
    %v951 = vunpack.c.l.b16 %v176
    %v952 = vunpack.c.l.b16 %v177
    %v953 = vunpack.c.l.b16 %v178
    %v954 = vunpack.c.l.b16 %v179
    %v955 = vunpack.c.l.b16 %v180
    %v956 = vunpack.c.l.b16 %v181
    %v957 = vunpack.c.l.b16 %v182
    %v958 = vunpack.c.l.b16 %v183
    %v959 = vunpack.c.l.b16 %v184
    %v960 = vunpack.c.l.b16 %v185
    %v961 = vunpack.c.l.b16 %v186
    %v962 = vunpack.c.l.b16 %v187
    %v963 = vunpack.c.l.b16 %v188
    %v964 = vunpack.c.l.b16 %v189
    %v965 = vunpack.c.l.b16 %v190
    %v966 = vunpack.c.l.b16 %v191
    %v967 = vunpack.c.l.b16 %v192
    %v968 = vunpack.c.l.b16 %v193
    %v969 = vunpack.c.l.b16 %v194
    %v970 = vunpack.c.l.b16 %v195
    %v971 = vunpack.c.l.b16 %v196
    %v972 = vunpack.c.l.b16 %v197
    %v973 = vunpack.c.l.b16 %v198
    %v974 = vunpack.c.l.b16 %v199
    %v975 = vunpack.c.l.b16 %v200
    %v976 = vunpack.c.l.b16 %v201
    %v977 = vunpack.c.l.b16 %v202
    %v978 = vunpack.c.l.b16 %v203
    %v979 = vunpack.c.l.b16 %v204
    %v980 = vunpack.c.l.b16 %v205
    %v981 = vunpack.c.l.b16 %v206
    %v982 = vunpack.c.l.b16 %v207
    %v983 = vunpack.c.l.b16 %v208
    %v984 = vunpack.c.l.b16 %v209
    %v985 = vunpack.c.l.b16 %v210
    %v986 = vunpack.c.l.b16 %v211
    %v987 = vunpack.c.l.b16 %v212
    %v988 = vunpack.c.l.b16 %v213
    %v989 = vunpack.c.l.b16 %v214
    %v990 = vunpack.c.l.b16 %v215
    %v991 = vunpack.c.l.b16 %v216
    %v992 = vunpack.c.l.b16 %v217
    %v993 = vunpack.c.l.b16 %v218
    %v994 = vunpack.c.l.b16 %v219
    %v995 = vunpack.c.l.b16 %v220
    %v996 = vunpack.c.l.b16 %v221
    %v997 = vunpack.c.l.b16 %v222
    %v998 = vunpack.c.l.b16 %v223
    %v999 = vunpack.c.l.b16 %v224
    %v1000 = vunpack.c.l.b16 %v225
    %v1001 = vunpack.c.l.b16 %v226
    %v1002 = vpack.c.b16 %v939, %v938
    %v1003 = vpack.c.b16 %v941, %v940
    %v1004 = vpack.c.b16 %v943, %v942
    %v1005 = vpack.c.b16 %v945, %v944
    %v1006 = vpack.c.b16 %v947, %v946
    %v1007 = vpack.c.b16 %v949, %v948
    %v1008 = vpack.c.b16 %v951, %v950
    %v1009 = vpack.c.b16 %v953, %v952
    %v1010 = vpack.c.b16 %v955, %v954
    %v1011 = vpack.c.b16 %v957, %v956
    %v1012 = vpack.c.b16 %v959, %v958
    %v1013 = vpack.c.b16 %v961, %v960
    %v1014 = vpack.c.b16 %v963, %v962
    %v1015 = vpack.c.b16 %v965, %v964
    %v1016 = vpack.c.b16 %v967, %v966
    %v1017 = vpack.c.b16 %v969, %v968
    %v1018 = vpack.c.b16 %v971, %v970
    %v1019 = vpack.c.b16 %v973, %v972
    %v1020 = vpack.c.b16 %v975, %v974
    %v1021 = vpack.c.b16 %v977, %v976
    %v1022 = vpack.c.b16 %v979, %v978
    %v1023 = vpack.c.b16 %v981, %v980
    %v1024 = vpack.c.b16 %v983, %v982
    %v1025 = vpack.c.b16 %v985, %v984
    %v1026 = vpack.c.b16 %v987, %v986
    %v1027 = vpack.c.b16 %v989, %v988
    %v1028 = vpack.c.b16 %v991, %v990
    %v1029 = vpack.c.b16 %v993, %v992
    %v1030 = vpack.c.b16 %v995, %v994
    %v1031 = vpack.c.b16 %v997, %v996
    %v1032 = vpack.c.b16 %v999, %v998
    %v1033 = vpack.c.b16 %v1001, %v1000
    %1066 = vmatprep.subr.bf16.mxu0 0
    %1067 = vmatpush1.bf16.msra.mxu0 %v1002
    %1068 = vmatprep.subr.bf16.mxu0 0
    %1069 = vmatpush1.bf16.msra.mxu0 %v1003
    %1070 = vmatprep.subr.bf16.mxu0 0
    %1071 = vmatpush1.bf16.msra.mxu0 %v1004
    %1072 = vmatprep.subr.bf16.mxu0 0
    %1073 = vmatpush1.bf16.msra.mxu0 %v1005
    %1074 = vmatprep.subr.bf16.mxu0 0
    %1075 = vmatpush1.bf16.msra.mxu0 %v1006
    %1076 = vmatprep.subr.bf16.mxu0 0
    %1077 = vmatpush1.bf16.msra.mxu0 %v1007
    %1078 = vmatprep.subr.bf16.mxu0 0
    %1079 = vmatpush1.bf16.msra.mxu0 %v1008
    %1080 = vmatprep.subr.bf16.mxu0 0
    %1081 = vmatpush1.bf16.msra.mxu0 %v1009
    %1082 = vmatprep.subr.bf16.mxu0 0
    %1083 = vmatpush1.bf16.msra.mxu0 %v1010
    %1084 = vmatprep.subr.bf16.mxu0 0
    %1085 = vmatpush1.bf16.msra.mxu0 %v1011
    %1086 = vmatprep.subr.bf16.mxu0 0
    %1087 = vmatpush1.bf16.msra.mxu0 %v1012
    %1088 = vmatprep.subr.bf16.mxu0 0
    %1089 = vmatpush1.bf16.msra.mxu0 %v1013
    %1090 = vmatprep.subr.bf16.mxu0 0
    %1091 = vmatpush1.bf16.msra.mxu0 %v1014
    %1092 = vmatprep.subr.bf16.mxu0 0
    %1093 = vmatpush1.bf16.msra.mxu0 %v1015
    %1094 = vmatprep.subr.bf16.mxu0 0
    %1095 = vmatpush1.bf16.msra.mxu0 %v1016
    %1096 = vmatprep.subr.bf16.mxu0 0
    %1097 = vmatpush1.bf16.msra.mxu0 %v1017
    %1098 = vmatprep.mubr.bf16.mxu0 %v619
    %1099 = vmatmul.mubr.bf16.gmra.mrb[0].mxu0 %v618
    %v1100 = vpop.f32.mrb[0].mxu0
    %v1101 = vadd.f32 %v232, %v1100
    %v1102 = vpop.f32.mrb[0].mxu0
    %v1103 = vpop.f32.mrb[0].mxu0
    %v1104 = vadd.f32 %v232, %v1103
    %v1105 = vpop.f32.mrb[0].mxu0
    %1106 = vmatprep.mubr.bf16.mxu0 %v623
    %1107 = vmatmul.mubr.bf16.gmra.mrb[0].mxu0 %v622
    %v1108 = vpop.f32.mrb[0].mxu0
    %v1109 = vadd.f32 %v232, %v1108
    %v1110 = vpop.f32.mrb[0].mxu0
    %v1111 = vpop.f32.mrb[0].mxu0
    %v1112 = vadd.f32 %v232, %v1111
    %v1113 = vpop.f32.mrb[0].mxu0
    %1114 = vmatprep.mubr.bf16.mxu0 %v627
    %1115 = vmatmul.mubr.bf16.gmra.mrb[0].mxu0 %v626
    %v1116 = vpop.f32.mrb[0].mxu0
    %v1117 = vadd.f32 %v232, %v1116
    %v1118 = vpop.f32.mrb[0].mxu0
    %v1119 = vpop.f32.mrb[0].mxu0
    %v1120 = vadd.f32 %v232, %v1119
    %v1121 = vpop.f32.mrb[0].mxu0
    %1122 = vmatprep.mubr.bf16.mxu0 %v631
    %1123 = vmatmul.mubr.bf16.gmra.mrb[0].mxu0 %v630
    %v1124 = vpop.f32.mrb[0].mxu0
    %v1125 = vadd.f32 %v232, %v1124
    %v1126 = vpop.f32.mrb[0].mxu0
    %v1127 = vpop.f32.mrb[0].mxu0
    %v1128 = vadd.f32 %v232, %v1127
    %v1129 = vpop.f32.mrb[0].mxu0
    %1130 = vmatprep.mubr.bf16.mxu0 %v635
    %1131 = vmatmul.mubr.bf16.gmra.mrb[0].mxu0 %v634
    %v1132 = vpop.f32.mrb[0].mxu0
    %v1133 = vadd.f32 %v232, %v1132
    %v1134 = vpop.f32.mrb[0].mxu0
    %v1135 = vpop.f32.mrb[0].mxu0
    %v1136 = vadd.f32 %v232, %v1135
    %v1137 = vpop.f32.mrb[0].mxu0
    %1138 = vmatprep.mubr.bf16.mxu0 %v639
    %1139 = vmatmul.mubr.bf16.gmra.mrb[0].mxu0 %v638
    %v1140 = vpop.f32.mrb[0].mxu0
    %v1141 = vadd.f32 %v232, %v1140
    %v1142 = vpop.f32.mrb[0].mxu0
    %v1143 = vpop.f32.mrb[0].mxu0
    %v1144 = vadd.f32 %v232, %v1143
    %v1145 = vpop.f32.mrb[0].mxu0
    %1146 = vmatprep.mubr.bf16.mxu0 %v643
    %1147 = vmatmul.mubr.bf16.gmra.mrb[0].mxu0 %v642
    %v1148 = vpop.f32.mrb[0].mxu0
    %v1149 = vadd.f32 %v232, %v1148
    %v1150 = vpop.f32.mrb[0].mxu0
    %v1151 = vpop.f32.mrb[0].mxu0
    %v1152 = vadd.f32 %v232, %v1151
    %v1153 = vpop.f32.mrb[0].mxu0
    %1154 = vmatprep.mubr.bf16.mxu0 %v647
    %1155 = vmatmul.mubr.bf16.gmra.mrb[0].mxu0 %v646
    %v1156 = vpop.f32.mrb[0].mxu0
    %v1157 = vadd.f32 %v232, %v1156
    %v1158 = vpop.f32.mrb[0].mxu0
    %v1159 = vpop.f32.mrb[0].mxu0
    %v1160 = vadd.f32 %v232, %v1159
    %v1161 = vpop.f32.mrb[0].mxu0
    %1162 = vmatprep.mubr.bf16.mxu0 %v651
    %1163 = vmatmul.mubr.bf16.gmra.mrb[0].mxu0 %v650
    %v1164 = vpop.f32.mrb[0].mxu0
    %v1165 = vadd.f32 %v232, %v1164
    %v1166 = vpop.f32.mrb[0].mxu0
    %v1167 = vpop.f32.mrb[0].mxu0
    %v1168 = vadd.f32 %v232, %v1167
    %v1169 = vpop.f32.mrb[0].mxu0
    %1170 = vmatprep.mubr.bf16.mxu0 %v655
    %1171 = vmatmul.mubr.bf16.gmra.mrb[0].mxu0 %v654
    %v1172 = vpop.f32.mrb[0].mxu0
    %v1173 = vadd.f32 %v232, %v1172
    %v1174 = vpop.f32.mrb[0].mxu0
    %v1175 = vpop.f32.mrb[0].mxu0
    %v1176 = vadd.f32 %v232, %v1175
    %v1177 = vpop.f32.mrb[0].mxu0
    %1178 = vmatprep.mubr.bf16.mxu0 %v659
    %1179 = vmatmul.mubr.bf16.gmra.mrb[0].mxu0 %v658
    %v1180 = vpop.f32.mrb[0].mxu0
    %v1181 = vadd.f32 %v232, %v1180
    %v1182 = vpop.f32.mrb[0].mxu0
    %v1183 = vpop.f32.mrb[0].mxu0
    %v1184 = vadd.f32 %v232, %v1183
    %v1185 = vpop.f32.mrb[0].mxu0
    %1186 = vmatprep.mubr.bf16.mxu0 %v663
    %1187 = vmatmul.mubr.bf16.gmra.mrb[0].mxu0 %v662
    %v1188 = vpop.f32.mrb[0].mxu0
    %v1189 = vadd.f32 %v232, %v1188
    %v1190 = vpop.f32.mrb[0].mxu0
    %v1191 = vpop.f32.mrb[0].mxu0
    %v1192 = vadd.f32 %v232, %v1191
    %v1193 = vpop.f32.mrb[0].mxu0
    %1194 = vmatprep.mubr.bf16.mxu0 %v667
    %1195 = vmatmul.mubr.bf16.gmra.mrb[0].mxu0 %v666
    %v1196 = vpop.f32.mrb[0].mxu0
    %v1197 = vadd.f32 %v232, %v1196
    %v1198 = vpop.f32.mrb[0].mxu0
    %v1199 = vpop.f32.mrb[0].mxu0
    %v1200 = vadd.f32 %v232, %v1199
    %v1201 = vpop.f32.mrb[0].mxu0
    %1202 = vmatprep.mubr.bf16.mxu0 %v671
    %1203 = vmatmul.mubr.bf16.gmra.mrb[0].mxu0 %v670
    %v1204 = vpop.f32.mrb[0].mxu0
    %v1205 = vadd.f32 %v232, %v1204
    %v1206 = vpop.f32.mrb[0].mxu0
    %v1207 = vpop.f32.mrb[0].mxu0
    %v1208 = vadd.f32 %v232, %v1207
    %v1209 = vpop.f32.mrb[0].mxu0
    %1210 = vmatprep.mubr.bf16.mxu0 %v675
    %1211 = vmatmul.mubr.bf16.gmra.mrb[0].mxu0 %v674
    %v1212 = vpop.f32.mrb[0].mxu0
    %v1213 = vadd.f32 %v232, %v1212
    %v1214 = vpop.f32.mrb[0].mxu0
    %v1215 = vpop.f32.mrb[0].mxu0
    %v1216 = vadd.f32 %v232, %v1215
    %v1217 = vpop.f32.mrb[0].mxu0
    %1218 = vmatprep.mubr.bf16.mxu0 %v679
    %1219 = vmatmul.mubr.bf16.gmra.mrb[0].mxu0 %v678
    %v1220 = vpop.f32.mrb[0].mxu0
    %v1221 = vadd.f32 %v232, %v1220
    %v1222 = vpop.f32.mrb[0].mxu0
    %v1223 = vpop.f32.mrb[0].mxu0
    %v1224 = vadd.f32 %v232, %v1223
    %v1225 = vpop.f32.mrb[0].mxu0
    %1226 = vmatprep.mubr.bf16.mxu0 %v683
    %1227 = vmatmul.mubr.bf16.gmra.mrb[0].mxu0 %v682
    %v1228 = vpop.f32.mrb[0].mxu0
    %v1229 = vadd.f32 %v232, %v1228
    %v1230 = vpop.f32.mrb[0].mxu0
    %v1231 = vpop.f32.mrb[0].mxu0
    %v1232 = vadd.f32 %v232, %v1231
    %v1233 = vpop.f32.mrb[0].mxu0
    %1234 = vmatprep.mubr.bf16.mxu0 %v687
    %1235 = vmatmul.mubr.bf16.gmra.mrb[0].mxu0 %v686
    %v1236 = vpop.f32.mrb[0].mxu0
    %v1237 = vadd.f32 %v232, %v1236
    %v1238 = vpop.f32.mrb[0].mxu0
    %v1239 = vpop.f32.mrb[0].mxu0
    %v1240 = vadd.f32 %v232, %v1239
    %v1241 = vpop.f32.mrb[0].mxu0
    %1242 = vmatprep.mubr.bf16.mxu0 %v691
    %1243 = vmatmul.mubr.bf16.gmra.mrb[0].mxu0 %v690
    %v1244 = vpop.f32.mrb[0].mxu0
    %v1245 = vadd.f32 %v232, %v1244
    %v1246 = vpop.f32.mrb[0].mxu0
    %v1247 = vpop.f32.mrb[0].mxu0
    %v1248 = vadd.f32 %v232, %v1247
    %v1249 = vpop.f32.mrb[0].mxu0
    %1250 = vmatprep.mubr.bf16.mxu0 %v695
    %1251 = vmatmul.mubr.bf16.gmra.mrb[0].mxu0 %v694
    %v1252 = vpop.f32.mrb[0].mxu0
    %v1253 = vadd.f32 %v232, %v1252
    %v1254 = vpop.f32.mrb[0].mxu0
    %v1255 = vpop.f32.mrb[0].mxu0
    %v1256 = vadd.f32 %v232, %v1255
    %v1257 = vpop.f32.mrb[0].mxu0
    %1258 = vmatprep.mubr.bf16.mxu0 %v699
    %1259 = vmatmul.mubr.bf16.gmra.mrb[0].mxu0 %v698
    %v1260 = vpop.f32.mrb[0].mxu0
    %v1261 = vadd.f32 %v232, %v1260
    %v1262 = vpop.f32.mrb[0].mxu0
    %v1263 = vpop.f32.mrb[0].mxu0
    %v1264 = vadd.f32 %v232, %v1263
    %v1265 = vpop.f32.mrb[0].mxu0
    %1266 = vmatprep.mubr.bf16.mxu0 %v703
    %1267 = vmatmul.mubr.bf16.gmra.mrb[0].mxu0 %v702
    %v1268 = vpop.f32.mrb[0].mxu0
    %v1269 = vadd.f32 %v232, %v1268
    %v1270 = vpop.f32.mrb[0].mxu0
    %v1271 = vpop.f32.mrb[0].mxu0
    %v1272 = vadd.f32 %v232, %v1271
    %v1273 = vpop.f32.mrb[0].mxu0
    %1274 = vmatprep.mubr.bf16.mxu0 %v707
    %1275 = vmatmul.mubr.bf16.gmra.mrb[0].mxu0 %v706
    %v1276 = vpop.f32.mrb[0].mxu0
    %v1277 = vadd.f32 %v232, %v1276
    %v1278 = vpop.f32.mrb[0].mxu0
    %v1279 = vpop.f32.mrb[0].mxu0
    %v1280 = vadd.f32 %v232, %v1279
    %v1281 = vpop.f32.mrb[0].mxu0
    %1282 = vmatprep.mubr.bf16.mxu0 %v711
    %1283 = vmatmul.mubr.bf16.gmra.mrb[0].mxu0 %v710
    %v1284 = vpop.f32.mrb[0].mxu0
    %v1285 = vadd.f32 %v232, %v1284
    %v1286 = vpop.f32.mrb[0].mxu0
    %v1287 = vpop.f32.mrb[0].mxu0
    %v1288 = vadd.f32 %v232, %v1287
    %v1289 = vpop.f32.mrb[0].mxu0
    %1290 = vmatprep.mubr.bf16.mxu0 %v715
    %1291 = vmatmul.mubr.bf16.gmra.mrb[0].mxu0 %v714
    %v1292 = vpop.f32.mrb[0].mxu0
    %v1293 = vadd.f32 %v232, %v1292
    %v1294 = vpop.f32.mrb[0].mxu0
    %v1295 = vpop.f32.mrb[0].mxu0
    %v1296 = vadd.f32 %v232, %v1295
    %v1297 = vpop.f32.mrb[0].mxu0
    %1298 = vmatprep.mubr.bf16.mxu0 %v719
    %1299 = vmatmul.mubr.bf16.gmra.mrb[0].mxu0 %v718
    %v1300 = vpop.f32.mrb[0].mxu0
    %v1301 = vadd.f32 %v232, %v1300
    %v1302 = vpop.f32.mrb[0].mxu0
    %v1303 = vpop.f32.mrb[0].mxu0
    %v1304 = vadd.f32 %v232, %v1303
    %v1305 = vpop.f32.mrb[0].mxu0
    %1306 = vmatprep.mubr.bf16.mxu0 %v723
    %1307 = vmatmul.mubr.bf16.gmra.mrb[0].mxu0 %v722
    %v1308 = vpop.f32.mrb[0].mxu0
    %v1309 = vadd.f32 %v232, %v1308
    %v1310 = vpop.f32.mrb[0].mxu0
    %v1311 = vpop.f32.mrb[0].mxu0
    %v1312 = vadd.f32 %v232, %v1311
    %v1313 = vpop.f32.mrb[0].mxu0
    %1314 = vmatprep.mubr.bf16.mxu0 %v727
    %1315 = vmatmul.mubr.bf16.gmra.mrb[0].mxu0 %v726
    %v1316 = vpop.f32.mrb[0].mxu0
    %v1317 = vadd.f32 %v232, %v1316
    %v1318 = vpop.f32.mrb[0].mxu0
    %v1319 = vpop.f32.mrb[0].mxu0
    %v1320 = vadd.f32 %v232, %v1319
    %v1321 = vpop.f32.mrb[0].mxu0
    %1322 = vmatprep.mubr.bf16.mxu0 %v731
    %1323 = vmatmul.mubr.bf16.gmra.mrb[0].mxu0 %v730
    %v1324 = vpop.f32.mrb[0].mxu0
    %v1325 = vadd.f32 %v232, %v1324
    %v1326 = vpop.f32.mrb[0].mxu0
    %v1327 = vpop.f32.mrb[0].mxu0
    %v1328 = vadd.f32 %v232, %v1327
    %v1329 = vpop.f32.mrb[0].mxu0
    %1330 = vmatprep.mubr.bf16.mxu0 %v735
    %1331 = vmatmul.mubr.bf16.gmra.mrb[0].mxu0 %v734
    %v1332 = vpop.f32.mrb[0].mxu0
    %v1333 = vadd.f32 %v232, %v1332
    %v1334 = vpop.f32.mrb[0].mxu0
    %v1335 = vpop.f32.mrb[0].mxu0
    %v1336 = vadd.f32 %v232, %v1335
    %v1337 = vpop.f32.mrb[0].mxu0
    %1338 = vmatprep.mubr.bf16.mxu0 %v739
    %1339 = vmatmul.mubr.bf16.gmra.mrb[0].mxu0 %v738
    %v1340 = vpop.f32.mrb[0].mxu0
    %v1341 = vadd.f32 %v232, %v1340
    %v1342 = vpop.f32.mrb[0].mxu0
    %v1343 = vpop.f32.mrb[0].mxu0
    %v1344 = vadd.f32 %v232, %v1343
    %v1345 = vpop.f32.mrb[0].mxu0
    %1346 = vmatprep.mubr.bf16.mxu0 %v743
    %1347 = vmatmul.mubr.bf16.gmra.mrb[0].mxu0 %v742
    %v1348 = vpop.f32.mrb[0].mxu0
    %v1349 = vadd.f32 %v232, %v1348
    %v1350 = vpop.f32.mrb[0].mxu0
    %v1351 = vpop.f32.mrb[0].mxu0
    %v1352 = vadd.f32 %v232, %v1351
    %v1353 = vpop.f32.mrb[0].mxu0
    %1354 = vdwg.mxu0
    %1355 = vmatprep.subr.bf16.mxu0 0
    %1356 = vmatpush1.bf16.msra.mxu0 %v1018
    %1357 = vmatprep.subr.bf16.mxu0 0
    %1358 = vmatpush1.bf16.msra.mxu0 %v1019
    %1359 = vmatprep.subr.bf16.mxu0 0
    %1360 = vmatpush1.bf16.msra.mxu0 %v1020
    %1361 = vmatprep.subr.bf16.mxu0 0
    %1362 = vmatpush1.bf16.msra.mxu0 %v1021
    %1363 = vmatprep.subr.bf16.mxu0 0
    %1364 = vmatpush1.bf16.msra.mxu0 %v1022
    %1365 = vmatprep.subr.bf16.mxu0 0
    %1366 = vmatpush1.bf16.msra.mxu0 %v1023
    %1367 = vmatprep.subr.bf16.mxu0 0
    %1368 = vmatpush1.bf16.msra.mxu0 %v1024
    %1369 = vmatprep.subr.bf16.mxu0 0
    %1370 = vmatpush1.bf16.msra.mxu0 %v1025
    %1371 = vmatprep.subr.bf16.mxu0 0
    %1372 = vmatpush1.bf16.msra.mxu0 %v1026
    %1373 = vmatprep.subr.bf16.mxu0 0
    %1374 = vmatpush1.bf16.msra.mxu0 %v1027
    %1375 = vmatprep.subr.bf16.mxu0 0
    %1376 = vmatpush1.bf16.msra.mxu0 %v1028
    %1377 = vmatprep.subr.bf16.mxu0 0
    %1378 = vmatpush1.bf16.msra.mxu0 %v1029
    %1379 = vmatprep.subr.bf16.mxu0 0
    %1380 = vmatpush1.bf16.msra.mxu0 %v1030
    %1381 = vmatprep.subr.bf16.mxu0 0
    %1382 = vmatpush1.bf16.msra.mxu0 %v1031
    %1383 = vmatprep.subr.bf16.mxu0 0
    %1384 = vmatpush1.bf16.msra.mxu0 %v1032
    %1385 = vmatprep.subr.bf16.mxu0 0
    %1386 = vmatpush1.bf16.msra.mxu0 %v1033
    %1387 = vmatprep.mubr.bf16.mxu0 %v621
    %1388 = vmatmul.mubr.bf16.gmra.mrb[0].mxu0 %v620
    %v1389 = vpop.f32.mrb[0].mxu0
    %v1390 = vadd.f32 %v1101, %v1389
    %v1391 = vpop.f32.mrb[0].mxu0
    %v1392 = vpop.f32.mrb[0].mxu0
    %v1393 = vadd.f32 %v1104, %v1392
    %v1394 = vpop.f32.mrb[0].mxu0
    %1395 = vmatprep.mubr.bf16.mxu0 %v625
    %1396 = vmatmul.mubr.bf16.gmra.mrb[0].mxu0 %v624
    %v1397 = vpop.f32.mrb[0].mxu0
    %v1398 = vadd.f32 %v1109, %v1397
    %v1399 = vpop.f32.mrb[0].mxu0
    %v1400 = vpop.f32.mrb[0].mxu0
    %v1401 = vadd.f32 %v1112, %v1400
    %v1402 = vpop.f32.mrb[0].mxu0
    %1403 = vmatprep.mubr.bf16.mxu0 %v629
    %1404 = vmatmul.mubr.bf16.gmra.mrb[0].mxu0 %v628
    %v1405 = vpop.f32.mrb[0].mxu0
    %v1406 = vadd.f32 %v1117, %v1405
    %v1407 = vpop.f32.mrb[0].mxu0
    %v1408 = vpop.f32.mrb[0].mxu0
    %v1409 = vadd.f32 %v1120, %v1408
    %v1410 = vpop.f32.mrb[0].mxu0
    %1411 = vmatprep.mubr.bf16.mxu0 %v633
    %1412 = vmatmul.mubr.bf16.gmra.mrb[0].mxu0 %v632
    %v1413 = vpop.f32.mrb[0].mxu0
    %v1414 = vadd.f32 %v1125, %v1413
    %v1415 = vpop.f32.mrb[0].mxu0
    %v1416 = vpop.f32.mrb[0].mxu0
    %v1417 = vadd.f32 %v1128, %v1416
    %v1418 = vpop.f32.mrb[0].mxu0
    %1419 = vmatprep.mubr.bf16.mxu0 %v637
    %1420 = vmatmul.mubr.bf16.gmra.mrb[0].mxu0 %v636
    %v1421 = vpop.f32.mrb[0].mxu0
    %v1422 = vadd.f32 %v1133, %v1421
    %v1423 = vpop.f32.mrb[0].mxu0
    %v1424 = vpop.f32.mrb[0].mxu0
    %v1425 = vadd.f32 %v1136, %v1424
    %v1426 = vpop.f32.mrb[0].mxu0
    %1427 = vmatprep.mubr.bf16.mxu0 %v641
    %1428 = vmatmul.mubr.bf16.gmra.mrb[0].mxu0 %v640
    %v1429 = vpop.f32.mrb[0].mxu0
    %v1430 = vadd.f32 %v1141, %v1429
    %v1431 = vpop.f32.mrb[0].mxu0
    %v1432 = vpop.f32.mrb[0].mxu0
    %v1433 = vadd.f32 %v1144, %v1432
    %v1434 = vpop.f32.mrb[0].mxu0
    %1435 = vmatprep.mubr.bf16.mxu0 %v645
    %1436 = vmatmul.mubr.bf16.gmra.mrb[0].mxu0 %v644
    %v1437 = vpop.f32.mrb[0].mxu0
    %v1438 = vadd.f32 %v1149, %v1437
    %v1439 = vpop.f32.mrb[0].mxu0
    %v1440 = vpop.f32.mrb[0].mxu0
    %v1441 = vadd.f32 %v1152, %v1440
    %v1442 = vpop.f32.mrb[0].mxu0
    %1443 = vmatprep.mubr.bf16.mxu0 %v649
    %1444 = vmatmul.mubr.bf16.gmra.mrb[0].mxu0 %v648
    %v1445 = vpop.f32.mrb[0].mxu0
    %v1446 = vadd.f32 %v1157, %v1445
    %v1447 = vpop.f32.mrb[0].mxu0
    %v1448 = vpop.f32.mrb[0].mxu0
    %v1449 = vadd.f32 %v1160, %v1448
    %v1450 = vpop.f32.mrb[0].mxu0
    %1451 = vmatprep.mubr.bf16.mxu0 %v653
    %1452 = vmatmul.mubr.bf16.gmra.mrb[0].mxu0 %v652
    %v1453 = vpop.f32.mrb[0].mxu0
    %v1454 = vadd.f32 %v1165, %v1453
    %v1455 = vpop.f32.mrb[0].mxu0
    %v1456 = vpop.f32.mrb[0].mxu0
    %v1457 = vadd.f32 %v1168, %v1456
    %v1458 = vpop.f32.mrb[0].mxu0
    %1459 = vmatprep.mubr.bf16.mxu0 %v657
    %1460 = vmatmul.mubr.bf16.gmra.mrb[0].mxu0 %v656
    %v1461 = vpop.f32.mrb[0].mxu0
    %v1462 = vadd.f32 %v1173, %v1461
    %v1463 = vpop.f32.mrb[0].mxu0
    %v1464 = vpop.f32.mrb[0].mxu0
    %v1465 = vadd.f32 %v1176, %v1464
    %v1466 = vpop.f32.mrb[0].mxu0
    %1467 = vmatprep.mubr.bf16.mxu0 %v661
    %1468 = vmatmul.mubr.bf16.gmra.mrb[0].mxu0 %v660
    %v1469 = vpop.f32.mrb[0].mxu0
    %v1470 = vadd.f32 %v1181, %v1469
    %v1471 = vpop.f32.mrb[0].mxu0
    %v1472 = vpop.f32.mrb[0].mxu0
    %v1473 = vadd.f32 %v1184, %v1472
    %v1474 = vpop.f32.mrb[0].mxu0
    %1475 = vmatprep.mubr.bf16.mxu0 %v665
    %1476 = vmatmul.mubr.bf16.gmra.mrb[0].mxu0 %v664
    %v1477 = vpop.f32.mrb[0].mxu0
    %v1478 = vadd.f32 %v1189, %v1477
    %v1479 = vpop.f32.mrb[0].mxu0
    %v1480 = vpop.f32.mrb[0].mxu0
    %v1481 = vadd.f32 %v1192, %v1480
    %v1482 = vpop.f32.mrb[0].mxu0
    %1483 = vmatprep.mubr.bf16.mxu0 %v669
    %1484 = vmatmul.mubr.bf16.gmra.mrb[0].mxu0 %v668
    %v1485 = vpop.f32.mrb[0].mxu0
    %v1486 = vadd.f32 %v1197, %v1485
    %v1487 = vpop.f32.mrb[0].mxu0
    %v1488 = vpop.f32.mrb[0].mxu0
    %v1489 = vadd.f32 %v1200, %v1488
    %v1490 = vpop.f32.mrb[0].mxu0
    %1491 = vmatprep.mubr.bf16.mxu0 %v673
    %1492 = vmatmul.mubr.bf16.gmra.mrb[0].mxu0 %v672
    %v1493 = vpop.f32.mrb[0].mxu0
    %v1494 = vadd.f32 %v1205, %v1493
    %v1495 = vpop.f32.mrb[0].mxu0
    %v1496 = vpop.f32.mrb[0].mxu0
    %v1497 = vadd.f32 %v1208, %v1496
    %v1498 = vpop.f32.mrb[0].mxu0
    %1499 = vmatprep.mubr.bf16.mxu0 %v677
    %1500 = vmatmul.mubr.bf16.gmra.mrb[0].mxu0 %v676
    %v1501 = vpop.f32.mrb[0].mxu0
    %v1502 = vadd.f32 %v1213, %v1501
    %v1503 = vpop.f32.mrb[0].mxu0
    %v1504 = vpop.f32.mrb[0].mxu0
    %v1505 = vadd.f32 %v1216, %v1504
    %v1506 = vpop.f32.mrb[0].mxu0
    %1507 = vmatprep.mubr.bf16.mxu0 %v681
    %1508 = vmatmul.mubr.bf16.gmra.mrb[0].mxu0 %v680
    %v1509 = vpop.f32.mrb[0].mxu0
    %v1510 = vadd.f32 %v1221, %v1509
    %v1511 = vpop.f32.mrb[0].mxu0
    %v1512 = vpop.f32.mrb[0].mxu0
    %v1513 = vadd.f32 %v1224, %v1512
    %v1514 = vpop.f32.mrb[0].mxu0
    %1515 = vmatprep.mubr.bf16.mxu0 %v685
    %1516 = vmatmul.mubr.bf16.gmra.mrb[0].mxu0 %v684
    %v1517 = vpop.f32.mrb[0].mxu0
    %v1518 = vadd.f32 %v1229, %v1517
    %v1519 = vpop.f32.mrb[0].mxu0
    %v1520 = vpop.f32.mrb[0].mxu0
    %v1521 = vadd.f32 %v1232, %v1520
    %v1522 = vpop.f32.mrb[0].mxu0
    %1523 = vmatprep.mubr.bf16.mxu0 %v689
    %1524 = vmatmul.mubr.bf16.gmra.mrb[0].mxu0 %v688
    %v1525 = vpop.f32.mrb[0].mxu0
    %v1526 = vadd.f32 %v1237, %v1525
    %v1527 = vpop.f32.mrb[0].mxu0
    %v1528 = vpop.f32.mrb[0].mxu0
    %v1529 = vadd.f32 %v1240, %v1528
    %v1530 = vpop.f32.mrb[0].mxu0
    %1531 = vmatprep.mubr.bf16.mxu0 %v693
    %1532 = vmatmul.mubr.bf16.gmra.mrb[0].mxu0 %v692
    %v1533 = vpop.f32.mrb[0].mxu0
    %v1534 = vadd.f32 %v1245, %v1533
    %v1535 = vpop.f32.mrb[0].mxu0
    %v1536 = vpop.f32.mrb[0].mxu0
    %v1537 = vadd.f32 %v1248, %v1536
    %v1538 = vpop.f32.mrb[0].mxu0
    %1539 = vmatprep.mubr.bf16.mxu0 %v697
    %1540 = vmatmul.mubr.bf16.gmra.mrb[0].mxu0 %v696
    %v1541 = vpop.f32.mrb[0].mxu0
    %v1542 = vadd.f32 %v1253, %v1541
    %v1543 = vpop.f32.mrb[0].mxu0
    %v1544 = vpop.f32.mrb[0].mxu0
    %v1545 = vadd.f32 %v1256, %v1544
    %v1546 = vpop.f32.mrb[0].mxu0
    %1547 = vmatprep.mubr.bf16.mxu0 %v701
    %1548 = vmatmul.mubr.bf16.gmra.mrb[0].mxu0 %v700
    %v1549 = vpop.f32.mrb[0].mxu0
    %v1550 = vadd.f32 %v1261, %v1549
    %v1551 = vpop.f32.mrb[0].mxu0
    %v1552 = vpop.f32.mrb[0].mxu0
    %v1553 = vadd.f32 %v1264, %v1552
    %v1554 = vpop.f32.mrb[0].mxu0
    %1555 = vmatprep.mubr.bf16.mxu0 %v705
    %1556 = vmatmul.mubr.bf16.gmra.mrb[0].mxu0 %v704
    %v1557 = vpop.f32.mrb[0].mxu0
    %v1558 = vadd.f32 %v1269, %v1557
    %v1559 = vpop.f32.mrb[0].mxu0
    %v1560 = vpop.f32.mrb[0].mxu0
    %v1561 = vadd.f32 %v1272, %v1560
    %v1562 = vpop.f32.mrb[0].mxu0
    %1563 = vmatprep.mubr.bf16.mxu0 %v709
    %1564 = vmatmul.mubr.bf16.gmra.mrb[0].mxu0 %v708
    %v1565 = vpop.f32.mrb[0].mxu0
    %v1566 = vadd.f32 %v1277, %v1565
    %v1567 = vpop.f32.mrb[0].mxu0
    %v1568 = vpop.f32.mrb[0].mxu0
    %v1569 = vadd.f32 %v1280, %v1568
    %v1570 = vpop.f32.mrb[0].mxu0
    %1571 = vmatprep.mubr.bf16.mxu0 %v713
    %1572 = vmatmul.mubr.bf16.gmra.mrb[0].mxu0 %v712
    %v1573 = vpop.f32.mrb[0].mxu0
    %v1574 = vadd.f32 %v1285, %v1573
    %v1575 = vpop.f32.mrb[0].mxu0
    %v1576 = vpop.f32.mrb[0].mxu0
    %v1577 = vadd.f32 %v1288, %v1576
    %v1578 = vpop.f32.mrb[0].mxu0
    %1579 = vmatprep.mubr.bf16.mxu0 %v717
    %1580 = vmatmul.mubr.bf16.gmra.mrb[0].mxu0 %v716
    %v1581 = vpop.f32.mrb[0].mxu0
    %v1582 = vadd.f32 %v1293, %v1581
    %v1583 = vpop.f32.mrb[0].mxu0
    %v1584 = vpop.f32.mrb[0].mxu0
    %v1585 = vadd.f32 %v1296, %v1584
    %v1586 = vpop.f32.mrb[0].mxu0
    %1587 = vmatprep.mubr.bf16.mxu0 %v721
    %1588 = vmatmul.mubr.bf16.gmra.mrb[0].mxu0 %v720
    %v1589 = vpop.f32.mrb[0].mxu0
    %v1590 = vadd.f32 %v1301, %v1589
    %v1591 = vpop.f32.mrb[0].mxu0
    %v1592 = vpop.f32.mrb[0].mxu0
    %v1593 = vadd.f32 %v1304, %v1592
    %v1594 = vpop.f32.mrb[0].mxu0
    %1595 = vmatprep.mubr.bf16.mxu0 %v725
    %1596 = vmatmul.mubr.bf16.gmra.mrb[0].mxu0 %v724
    %v1597 = vpop.f32.mrb[0].mxu0
    %v1598 = vadd.f32 %v1309, %v1597
    %v1599 = vpop.f32.mrb[0].mxu0
    %v1600 = vpop.f32.mrb[0].mxu0
    %v1601 = vadd.f32 %v1312, %v1600
    %v1602 = vpop.f32.mrb[0].mxu0
    %1603 = vmatprep.mubr.bf16.mxu0 %v729
    %1604 = vmatmul.mubr.bf16.gmra.mrb[0].mxu0 %v728
    %v1605 = vpop.f32.mrb[0].mxu0
    %v1606 = vadd.f32 %v1317, %v1605
    %v1607 = vpop.f32.mrb[0].mxu0
    %v1608 = vpop.f32.mrb[0].mxu0
    %v1609 = vadd.f32 %v1320, %v1608
    %v1610 = vpop.f32.mrb[0].mxu0
    %1611 = vmatprep.mubr.bf16.mxu0 %v733
    %1612 = vmatmul.mubr.bf16.gmra.mrb[0].mxu0 %v732
    %v1613 = vpop.f32.mrb[0].mxu0
    %v1614 = vadd.f32 %v1325, %v1613
    %v1615 = vpop.f32.mrb[0].mxu0
    %v1616 = vpop.f32.mrb[0].mxu0
    %v1617 = vadd.f32 %v1328, %v1616
    %v1618 = vpop.f32.mrb[0].mxu0
    %1619 = vmatprep.mubr.bf16.mxu0 %v737
    %1620 = vmatmul.mubr.bf16.gmra.mrb[0].mxu0 %v736
    %v1621 = vpop.f32.mrb[0].mxu0
    %v1622 = vadd.f32 %v1333, %v1621
    %v1623 = vpop.f32.mrb[0].mxu0
    %v1624 = vpop.f32.mrb[0].mxu0
    %v1625 = vadd.f32 %v1336, %v1624
    %v1626 = vpop.f32.mrb[0].mxu0
    %1627 = vmatprep.mubr.bf16.mxu0 %v741
    %1628 = vmatmul.mubr.bf16.gmra.mrb[0].mxu0 %v740
    %v1629 = vpop.f32.mrb[0].mxu0
    %v1630 = vadd.f32 %v1341, %v1629
    %v1631 = vpop.f32.mrb[0].mxu0
    %v1632 = vpop.f32.mrb[0].mxu0
    %v1633 = vadd.f32 %v1344, %v1632
    %v1634 = vpop.f32.mrb[0].mxu0
    %1635 = vmatprep.mubr.bf16.mxu0 %v745
    %1636 = vmatmul.mubr.bf16.gmra.mrb[0].mxu0 %v744
    %v1637 = vpop.f32.mrb[0].mxu0
    %v1638 = vadd.f32 %v1349, %v1637
    %v1639 = vpop.f32.mrb[0].mxu0
    %v1640 = vpop.f32.mrb[0].mxu0
    %v1641 = vadd.f32 %v1352, %v1640
    %v1642 = vpop.f32.mrb[0].mxu0
    %1643 = vdwg.mxu0
    %v1644 = vmax.f32 %v1390, 0.0
    %v1645 = vmax.f32 %v1393, 0.0
    %v1646 = vmax.f32 %v1398, 0.0
    %v1647 = vmax.f32 %v1401, 0.0
    %v1648 = vmax.f32 %v1406, 0.0
    %v1649 = vmax.f32 %v1409, 0.0
    %v1650 = vmax.f32 %v1414, 0.0
    %v1651 = vmax.f32 %v1417, 0.0
    %v1652 = vmax.f32 %v1422, 0.0
    %v1653 = vmax.f32 %v1425, 0.0
    %v1654 = vmax.f32 %v1430, 0.0
    %v1655 = vmax.f32 %v1433, 0.0
    %v1656 = vmax.f32 %v1438, 0.0
    %v1657 = vmax.f32 %v1441, 0.0
    %v1658 = vmax.f32 %v1446, 0.0
    %v1659 = vmax.f32 %v1449, 0.0
    %v1660 = vmax.f32 %v1454, 0.0
    %v1661 = vmax.f32 %v1457, 0.0
    %v1662 = vmax.f32 %v1462, 0.0
    %v1663 = vmax.f32 %v1465, 0.0
    %v1664 = vmax.f32 %v1470, 0.0
    %v1665 = vmax.f32 %v1473, 0.0
    %v1666 = vmax.f32 %v1478, 0.0
    %v1667 = vmax.f32 %v1481, 0.0
    %v1668 = vmax.f32 %v1486, 0.0
    %v1669 = vmax.f32 %v1489, 0.0
    %v1670 = vmax.f32 %v1494, 0.0
    %v1671 = vmax.f32 %v1497, 0.0
    %v1672 = vmax.f32 %v1502, 0.0
    %v1673 = vmax.f32 %v1505, 0.0
    %v1674 = vmax.f32 %v1510, 0.0
    %v1675 = vmax.f32 %v1513, 0.0
    %v1676 = vmax.f32 %v1518, 0.0
    %v1677 = vmax.f32 %v1521, 0.0
    %v1678 = vmax.f32 %v1526, 0.0
    %v1679 = vmax.f32 %v1529, 0.0
    %v1680 = vmax.f32 %v1534, 0.0
    %v1681 = vmax.f32 %v1537, 0.0
    %v1682 = vmax.f32 %v1542, 0.0
    %v1683 = vmax.f32 %v1545, 0.0
    %v1684 = vmax.f32 %v1550, 0.0
    %v1685 = vmax.f32 %v1553, 0.0
    %v1686 = vmax.f32 %v1558, 0.0
    %v1687 = vmax.f32 %v1561, 0.0
    %v1688 = vmax.f32 %v1566, 0.0
    %v1689 = vmax.f32 %v1569, 0.0
    %v1690 = vmax.f32 %v1574, 0.0
    %v1691 = vmax.f32 %v1577, 0.0
    %v1692 = vmax.f32 %v1582, 0.0
    %v1693 = vmax.f32 %v1585, 0.0
    %v1694 = vmax.f32 %v1590, 0.0
    %v1695 = vmax.f32 %v1593, 0.0
    %v1696 = vmax.f32 %v1598, 0.0
    %v1697 = vmax.f32 %v1601, 0.0
    %v1698 = vmax.f32 %v1606, 0.0
    %v1699 = vmax.f32 %v1609, 0.0
    %v1700 = vmax.f32 %v1614, 0.0
    %v1701 = vmax.f32 %v1617, 0.0
    %v1702 = vmax.f32 %v1622, 0.0
    %v1703 = vmax.f32 %v1625, 0.0
    %v1704 = vmax.f32 %v1630, 0.0
    %v1705 = vmax.f32 %v1633, 0.0
    %v1706 = vmax.f32 %v1638, 0.0
    %v1707 = vmax.f32 %v1641, 0.0
    %v1708 = vpack.c.bf16 %v1645, %v1644
    %v1709 = vpack.c.bf16 %v1647, %v1646
    %v1710 = vpack.c.bf16 %v1649, %v1648
    %v1711 = vpack.c.bf16 %v1651, %v1650
    %v1712 = vpack.c.bf16 %v1653, %v1652
    %v1713 = vpack.c.bf16 %v1655, %v1654
    %v1714 = vpack.c.bf16 %v1657, %v1656
    %v1715 = vpack.c.bf16 %v1659, %v1658
    %v1716 = vpack.c.bf16 %v1661, %v1660
    %v1717 = vpack.c.bf16 %v1663, %v1662
    %v1718 = vpack.c.bf16 %v1665, %v1664
    %v1719 = vpack.c.bf16 %v1667, %v1666
    %v1720 = vpack.c.bf16 %v1669, %v1668
    %v1721 = vpack.c.bf16 %v1671, %v1670
    %v1722 = vpack.c.bf16 %v1673, %v1672
    %v1723 = vpack.c.bf16 %v1675, %v1674
    %v1724 = vpack.c.bf16 %v1677, %v1676
    %v1725 = vpack.c.bf16 %v1679, %v1678
    %v1726 = vpack.c.bf16 %v1681, %v1680
    %v1727 = vpack.c.bf16 %v1683, %v1682
    %v1728 = vpack.c.bf16 %v1685, %v1684
    %v1729 = vpack.c.bf16 %v1687, %v1686
    %v1730 = vpack.c.bf16 %v1689, %v1688
    %v1731 = vpack.c.bf16 %v1691, %v1690
    %v1732 = vpack.c.bf16 %v1693, %v1692
    %v1733 = vpack.c.bf16 %v1695, %v1694
    %v1734 = vpack.c.bf16 %v1697, %v1696
    %v1735 = vpack.c.bf16 %v1699, %v1698
    %v1736 = vpack.c.bf16 %v1701, %v1700
    %v1737 = vpack.c.bf16 %v1703, %v1702
    %v1738 = vpack.c.bf16 %v1705, %v1704
    %v1739 = vpack.c.bf16 %v1707, %v1706
    %v1740 = vld [vmem:[%s3] sm:$0xf]
    %v1741 = vld [vmem:[%s3 + $0x4] sm:$0xf]
    %v1742 = vld [vmem:[%s3 + $0x8] sm:$0xf]
    %v1743 = vld [vmem:[%s3 + $0xc] sm:$0xf]
    %v1744 = vld [vmem:[%s3 + $0x10] sm:$0xf]
    %v1745 = vld [vmem:[%s3 + $0x14] sm:$0xf]
    %v1746 = vld [vmem:[%s3 + $0x18] sm:$0xf]
    %v1747 = vld [vmem:[%s3 + $0x1c] sm:$0xf]
    %v1748 = vld [vmem:[%s3 + $0x20] sm:$0xf]
    %v1749 = vld [vmem:[%s3 + $0x24] sm:$0xf]
    %v1750 = vld [vmem:[%s3 + $0x28] sm:$0xf]
    %v1751 = vld [vmem:[%s3 + $0x2c] sm:$0xf]
    %v1752 = vld [vmem:[%s3 + $0x30] sm:$0xf]
    %v1753 = vld [vmem:[%s3 + $0x34] sm:$0xf]
    %v1754 = vld [vmem:[%s3 + $0x38] sm:$0xf]
    %v1755 = vld [vmem:[%s3 + $0x3c] sm:$0xf]
    %v1772 = vunpack.c.l.b16 %v1740
    %v1773 = vunpack.c.l.b16 %v1741
    %v1774 = vunpack.c.l.b16 %v1742
    %v1775 = vunpack.c.l.b16 %v1743
    %v1776 = vunpack.c.l.b16 %v1744
    %v1777 = vunpack.c.l.b16 %v1745
    %v1778 = vunpack.c.l.b16 %v1746
    %v1779 = vunpack.c.l.b16 %v1747
    %v1780 = vunpack.c.l.b16 %v1748
    %v1781 = vunpack.c.l.b16 %v1749
    %v1782 = vunpack.c.l.b16 %v1750
    %v1783 = vunpack.c.l.b16 %v1751
    %v1784 = vunpack.c.l.b16 %v1752
    %v1785 = vunpack.c.l.b16 %v1753
    %v1786 = vunpack.c.l.b16 %v1754
    %v1787 = vunpack.c.l.b16 %v1755
    %v1788 = vpack.c.b16 %v1773, %v1772
    %v1789 = vpack.c.b16 %v1775, %v1774
    %v1790 = vpack.c.b16 %v1777, %v1776
    %v1791 = vpack.c.b16 %v1779, %v1778
    %v1792 = vpack.c.b16 %v1781, %v1780
    %v1793 = vpack.c.b16 %v1783, %v1782
    %v1794 = vpack.c.b16 %v1785, %v1784
    %v1795 = vpack.c.b16 %v1787, %v1786
    %1804 = vmatprep.subr.bf16.mxu0 0
    %1805 = vmatpush1.bf16.msra.mxu0 %v1788
    %1806 = vmatprep.subr.bf16.mxu0 0
    %1807 = vmatpush1.bf16.msra.mxu0 %v1789
    %1808 = vmatprep.subr.bf16.mxu0 0
    %1809 = vmatpush1.bf16.msra.mxu0 %v1790
    %1810 = vmatprep.subr.bf16.mxu0 0
    %1811 = vmatpush1.bf16.msra.mxu0 %v1791
    %1812 = vmatprep.subr.bf16.mxu0 0
    %1813 = vmatpush1.bf16.msra.mxu0 %v1792
    %1814 = vmatprep.subr.bf16.mxu0 0
    %1815 = vmatpush1.bf16.msra.mxu0 %v1793
    %1816 = vmatprep.subr.bf16.mxu0 0
    %1817 = vmatpush1.bf16.msra.mxu0 %v1794
    %1818 = vmatprep.subr.bf16.mxu0 0
    %1819 = vmatpush1.bf16.msra.mxu0 %v1795
    %1820 = vmatprep.subr.bf16.mxu0 0
    %1821 = vmatpush1.bf16.msra.mxu0 0
    %1822 = vmatprep.subr.bf16.mxu0 0
    %1823 = vmatpush1.bf16.msra.mxu0 0
    %1824 = vmatprep.subr.bf16.mxu0 0
    %1825 = vmatpush1.bf16.msra.mxu0 0
    %1826 = vmatprep.subr.bf16.mxu0 0
    %1827 = vmatpush1.bf16.msra.mxu0 0
    %1828 = vmatprep.subr.bf16.mxu0 0
    %1829 = vmatpush1.bf16.msra.mxu0 0
    %1830 = vmatprep.subr.bf16.mxu0 0
    %1831 = vmatpush1.bf16.msra.mxu0 0
    %1832 = vmatprep.subr.bf16.mxu0 0
    %1833 = vmatpush1.bf16.msra.mxu0 0
    %1834 = vmatprep.subr.bf16.mxu0 0
    %1835 = vmatpush1.bf16.msra.mxu0 0
    %1836 = vmatprep.mubr.bf16.mxu0 0
    %1837 = vmatmul.mubr.bf16.gmra.mrb[0].mxu0 %v1708
    %v1838 = vpop.f32.mrb[0].mxu0
    %v1839 = vadd.f32 0.0, %v1838
    %v1840 = vpop.f32.mrb[0].mxu0
    %v1841 = vpop.f32.mrb[0].mxu0
    %v1842 = vadd.f32 0.0, %v1841
    %v1843 = vpop.f32.mrb[0].mxu0
    %1844 = vmatprep.mubr.bf16.mxu0 0
    %1845 = vmatmul.mubr.bf16.gmra.mrb[0].mxu0 %v1709
    %v1846 = vpop.f32.mrb[0].mxu0
    %v1847 = vadd.f32 0.0, %v1846
    %v1848 = vpop.f32.mrb[0].mxu0
    %v1849 = vpop.f32.mrb[0].mxu0
    %v1850 = vadd.f32 0.0, %v1849
    %v1851 = vpop.f32.mrb[0].mxu0
    %1852 = vmatprep.mubr.bf16.mxu0 0
    %1853 = vmatmul.mubr.bf16.gmra.mrb[0].mxu0 %v1710
    %v1854 = vpop.f32.mrb[0].mxu0
    %v1855 = vadd.f32 0.0, %v1854
    %v1856 = vpop.f32.mrb[0].mxu0
    %v1857 = vpop.f32.mrb[0].mxu0
    %v1858 = vadd.f32 0.0, %v1857
    %v1859 = vpop.f32.mrb[0].mxu0
    %1860 = vmatprep.mubr.bf16.mxu0 0
    %1861 = vmatmul.mubr.bf16.gmra.mrb[0].mxu0 %v1711
    %v1862 = vpop.f32.mrb[0].mxu0
    %v1863 = vadd.f32 0.0, %v1862
    %v1864 = vpop.f32.mrb[0].mxu0
    %v1865 = vpop.f32.mrb[0].mxu0
    %v1866 = vadd.f32 0.0, %v1865
    %v1867 = vpop.f32.mrb[0].mxu0
    %1868 = vmatprep.mubr.bf16.mxu0 0
    %1869 = vmatmul.mubr.bf16.gmra.mrb[0].mxu0 %v1712
    %v1870 = vpop.f32.mrb[0].mxu0
    %v1871 = vadd.f32 0.0, %v1870
    %v1872 = vpop.f32.mrb[0].mxu0
    %v1873 = vpop.f32.mrb[0].mxu0
    %v1874 = vadd.f32 0.0, %v1873
    %v1875 = vpop.f32.mrb[0].mxu0
    %1876 = vmatprep.mubr.bf16.mxu0 0
    %1877 = vmatmul.mubr.bf16.gmra.mrb[0].mxu0 %v1713
    %v1878 = vpop.f32.mrb[0].mxu0
    %v1879 = vadd.f32 0.0, %v1878
    %v1880 = vpop.f32.mrb[0].mxu0
    %v1881 = vpop.f32.mrb[0].mxu0
    %v1882 = vadd.f32 0.0, %v1881
    %v1883 = vpop.f32.mrb[0].mxu0
    %1884 = vmatprep.mubr.bf16.mxu0 0
    %1885 = vmatmul.mubr.bf16.gmra.mrb[0].mxu0 %v1714
    %v1886 = vpop.f32.mrb[0].mxu0
    %v1887 = vadd.f32 0.0, %v1886
    %v1888 = vpop.f32.mrb[0].mxu0
    %v1889 = vpop.f32.mrb[0].mxu0
    %v1890 = vadd.f32 0.0, %v1889
    %v1891 = vpop.f32.mrb[0].mxu0
    %1892 = vmatprep.mubr.bf16.mxu0 0
    %1893 = vmatmul.mubr.bf16.gmra.mrb[0].mxu0 %v1715
    %v1894 = vpop.f32.mrb[0].mxu0
    %v1895 = vadd.f32 0.0, %v1894
    %v1896 = vpop.f32.mrb[0].mxu0
    %v1897 = vpop.f32.mrb[0].mxu0
    %v1898 = vadd.f32 0.0, %v1897
    %v1899 = vpop.f32.mrb[0].mxu0
    %1900 = vmatprep.mubr.bf16.mxu0 0
    %1901 = vmatmul.mubr.bf16.gmra.mrb[0].mxu0 %v1716
    %v1902 = vpop.f32.mrb[0].mxu0
    %v1903 = vadd.f32 0.0, %v1902
    %v1904 = vpop.f32.mrb[0].mxu0
    %v1905 = vpop.f32.mrb[0].mxu0
    %v1906 = vadd.f32 0.0, %v1905
    %v1907 = vpop.f32.mrb[0].mxu0
    %1908 = vmatprep.mubr.bf16.mxu0 0
    %1909 = vmatmul.mubr.bf16.gmra.mrb[0].mxu0 %v1717
    %v1910 = vpop.f32.mrb[0].mxu0
    %v1911 = vadd.f32 0.0, %v1910
    %v1912 = vpop.f32.mrb[0].mxu0
    %v1913 = vpop.f32.mrb[0].mxu0
    %v1914 = vadd.f32 0.0, %v1913
    %v1915 = vpop.f32.mrb[0].mxu0
    %1916 = vmatprep.mubr.bf16.mxu0 0
    %1917 = vmatmul.mubr.bf16.gmra.mrb[0].mxu0 %v1718
    %v1918 = vpop.f32.mrb[0].mxu0
    %v1919 = vadd.f32 0.0, %v1918
    %v1920 = vpop.f32.mrb[0].mxu0
    %v1921 = vpop.f32.mrb[0].mxu0
    %v1922 = vadd.f32 0.0, %v1921
    %v1923 = vpop.f32.mrb[0].mxu0
    %1924 = vmatprep.mubr.bf16.mxu0 0
    %1925 = vmatmul.mubr.bf16.gmra.mrb[0].mxu0 %v1719
    %v1926 = vpop.f32.mrb[0].mxu0
    %v1927 = vadd.f32 0.0, %v1926
    %v1928 = vpop.f32.mrb[0].mxu0
    %v1929 = vpop.f32.mrb[0].mxu0
    %v1930 = vadd.f32 0.0, %v1929
    %v1931 = vpop.f32.mrb[0].mxu0
    %1932 = vmatprep.mubr.bf16.mxu0 0
    %1933 = vmatmul.mubr.bf16.gmra.mrb[0].mxu0 %v1720
    %v1934 = vpop.f32.mrb[0].mxu0
    %v1935 = vadd.f32 0.0, %v1934
    %v1936 = vpop.f32.mrb[0].mxu0
    %v1937 = vpop.f32.mrb[0].mxu0
    %v1938 = vadd.f32 0.0, %v1937
    %v1939 = vpop.f32.mrb[0].mxu0
    %1940 = vmatprep.mubr.bf16.mxu0 0
    %1941 = vmatmul.mubr.bf16.gmra.mrb[0].mxu0 %v1721
    %v1942 = vpop.f32.mrb[0].mxu0
    %v1943 = vadd.f32 0.0, %v1942
    %v1944 = vpop.f32.mrb[0].mxu0
    %v1945 = vpop.f32.mrb[0].mxu0
    %v1946 = vadd.f32 0.0, %v1945
    %v1947 = vpop.f32.mrb[0].mxu0
    %1948 = vmatprep.mubr.bf16.mxu0 0
    %1949 = vmatmul.mubr.bf16.gmra.mrb[0].mxu0 %v1722
    %v1950 = vpop.f32.mrb[0].mxu0
    %v1951 = vadd.f32 0.0, %v1950
    %v1952 = vpop.f32.mrb[0].mxu0
    %v1953 = vpop.f32.mrb[0].mxu0
    %v1954 = vadd.f32 0.0, %v1953
    %v1955 = vpop.f32.mrb[0].mxu0
    %1956 = vmatprep.mubr.bf16.mxu0 0
    %1957 = vmatmul.mubr.bf16.gmra.mrb[0].mxu0 %v1723
    %v1958 = vpop.f32.mrb[0].mxu0
    %v1959 = vadd.f32 0.0, %v1958
    %v1960 = vpop.f32.mrb[0].mxu0
    %v1961 = vpop.f32.mrb[0].mxu0
    %v1962 = vadd.f32 0.0, %v1961
    %v1963 = vpop.f32.mrb[0].mxu0
    %1964 = vmatprep.mubr.bf16.mxu0 0
    %1965 = vmatmul.mubr.bf16.gmra.mrb[0].mxu0 %v1724
    %v1966 = vpop.f32.mrb[0].mxu0
    %v1967 = vadd.f32 0.0, %v1966
    %v1968 = vpop.f32.mrb[0].mxu0
    %v1969 = vpop.f32.mrb[0].mxu0
    %v1970 = vadd.f32 0.0, %v1969
    %v1971 = vpop.f32.mrb[0].mxu0
    %1972 = vmatprep.mubr.bf16.mxu0 0
    %1973 = vmatmul.mubr.bf16.gmra.mrb[0].mxu0 %v1725
    %v1974 = vpop.f32.mrb[0].mxu0
    %v1975 = vadd.f32 0.0, %v1974
    %v1976 = vpop.f32.mrb[0].mxu0
    %v1977 = vpop.f32.mrb[0].mxu0
    %v1978 = vadd.f32 0.0, %v1977
    %v1979 = vpop.f32.mrb[0].mxu0
    %1980 = vmatprep.mubr.bf16.mxu0 0
    %1981 = vmatmul.mubr.bf16.gmra.mrb[0].mxu0 %v1726
    %v1982 = vpop.f32.mrb[0].mxu0
    %v1983 = vadd.f32 0.0, %v1982
    %v1984 = vpop.f32.mrb[0].mxu0
    %v1985 = vpop.f32.mrb[0].mxu0
    %v1986 = vadd.f32 0.0, %v1985
    %v1987 = vpop.f32.mrb[0].mxu0
    %1988 = vmatprep.mubr.bf16.mxu0 0
    %1989 = vmatmul.mubr.bf16.gmra.mrb[0].mxu0 %v1727
    %v1990 = vpop.f32.mrb[0].mxu0
    %v1991 = vadd.f32 0.0, %v1990
    %v1992 = vpop.f32.mrb[0].mxu0
    %v1993 = vpop.f32.mrb[0].mxu0
    %v1994 = vadd.f32 0.0, %v1993
    %v1995 = vpop.f32.mrb[0].mxu0
    %1996 = vmatprep.mubr.bf16.mxu0 0
    %1997 = vmatmul.mubr.bf16.gmra.mrb[0].mxu0 %v1728
    %v1998 = vpop.f32.mrb[0].mxu0
    %v1999 = vadd.f32 0.0, %v1998
    %v2000 = vpop.f32.mrb[0].mxu0
    %v2001 = vpop.f32.mrb[0].mxu0
    %v2002 = vadd.f32 0.0, %v2001
    %v2003 = vpop.f32.mrb[0].mxu0
    %2004 = vmatprep.mubr.bf16.mxu0 0
    %2005 = vmatmul.mubr.bf16.gmra.mrb[0].mxu0 %v1729
    %v2006 = vpop.f32.mrb[0].mxu0
    %v2007 = vadd.f32 0.0, %v2006
    %v2008 = vpop.f32.mrb[0].mxu0
    %v2009 = vpop.f32.mrb[0].mxu0
    %v2010 = vadd.f32 0.0, %v2009
    %v2011 = vpop.f32.mrb[0].mxu0
    %2012 = vmatprep.mubr.bf16.mxu0 0
    %2013 = vmatmul.mubr.bf16.gmra.mrb[0].mxu0 %v1730
    %v2014 = vpop.f32.mrb[0].mxu0
    %v2015 = vadd.f32 0.0, %v2014
    %v2016 = vpop.f32.mrb[0].mxu0
    %v2017 = vpop.f32.mrb[0].mxu0
    %v2018 = vadd.f32 0.0, %v2017
    %v2019 = vpop.f32.mrb[0].mxu0
    %2020 = vmatprep.mubr.bf16.mxu0 0
    %2021 = vmatmul.mubr.bf16.gmra.mrb[0].mxu0 %v1731
    %v2022 = vpop.f32.mrb[0].mxu0
    %v2023 = vadd.f32 0.0, %v2022
    %v2024 = vpop.f32.mrb[0].mxu0
    %v2025 = vpop.f32.mrb[0].mxu0
    %v2026 = vadd.f32 0.0, %v2025
    %v2027 = vpop.f32.mrb[0].mxu0
    %2028 = vmatprep.mubr.bf16.mxu0 0
    %2029 = vmatmul.mubr.bf16.gmra.mrb[0].mxu0 %v1732
    %v2030 = vpop.f32.mrb[0].mxu0
    %v2031 = vadd.f32 0.0, %v2030
    %v2032 = vpop.f32.mrb[0].mxu0
    %v2033 = vpop.f32.mrb[0].mxu0
    %v2034 = vadd.f32 0.0, %v2033
    %v2035 = vpop.f32.mrb[0].mxu0
    %2036 = vmatprep.mubr.bf16.mxu0 0
    %2037 = vmatmul.mubr.bf16.gmra.mrb[0].mxu0 %v1733
    %v2038 = vpop.f32.mrb[0].mxu0
    %v2039 = vadd.f32 0.0, %v2038
    %v2040 = vpop.f32.mrb[0].mxu0
    %v2041 = vpop.f32.mrb[0].mxu0
    %v2042 = vadd.f32 0.0, %v2041
    %v2043 = vpop.f32.mrb[0].mxu0
    %2044 = vmatprep.mubr.bf16.mxu0 0
    %2045 = vmatmul.mubr.bf16.gmra.mrb[0].mxu0 %v1734
    %v2046 = vpop.f32.mrb[0].mxu0
    %v2047 = vadd.f32 0.0, %v2046
    %v2048 = vpop.f32.mrb[0].mxu0
    %v2049 = vpop.f32.mrb[0].mxu0
    %v2050 = vadd.f32 0.0, %v2049
    %v2051 = vpop.f32.mrb[0].mxu0
    %2052 = vmatprep.mubr.bf16.mxu0 0
    %2053 = vmatmul.mubr.bf16.gmra.mrb[0].mxu0 %v1735
    %v2054 = vpop.f32.mrb[0].mxu0
    %v2055 = vadd.f32 0.0, %v2054
    %v2056 = vpop.f32.mrb[0].mxu0
    %v2057 = vpop.f32.mrb[0].mxu0
    %v2058 = vadd.f32 0.0, %v2057
    %v2059 = vpop.f32.mrb[0].mxu0
    %2060 = vmatprep.mubr.bf16.mxu0 0
    %2061 = vmatmul.mubr.bf16.gmra.mrb[0].mxu0 %v1736
    %v2062 = vpop.f32.mrb[0].mxu0
    %v2063 = vadd.f32 0.0, %v2062
    %v2064 = vpop.f32.mrb[0].mxu0
    %v2065 = vpop.f32.mrb[0].mxu0
    %v2066 = vadd.f32 0.0, %v2065
    %v2067 = vpop.f32.mrb[0].mxu0
    %2068 = vmatprep.mubr.bf16.mxu0 0
    %2069 = vmatmul.mubr.bf16.gmra.mrb[0].mxu0 %v1737
    %v2070 = vpop.f32.mrb[0].mxu0
    %v2071 = vadd.f32 0.0, %v2070
    %v2072 = vpop.f32.mrb[0].mxu0
    %v2073 = vpop.f32.mrb[0].mxu0
    %v2074 = vadd.f32 0.0, %v2073
    %v2075 = vpop.f32.mrb[0].mxu0
    %2076 = vmatprep.mubr.bf16.mxu0 0
    %2077 = vmatmul.mubr.bf16.gmra.mrb[0].mxu0 %v1738
    %v2078 = vpop.f32.mrb[0].mxu0
    %v2079 = vadd.f32 0.0, %v2078
    %v2080 = vpop.f32.mrb[0].mxu0
    %v2081 = vpop.f32.mrb[0].mxu0
    %v2082 = vadd.f32 0.0, %v2081
    %v2083 = vpop.f32.mrb[0].mxu0
    %2084 = vmatprep.mubr.bf16.mxu0 0
    %2085 = vmatmul.mubr.bf16.gmra.mrb[0].mxu0 %v1739
    %v2086 = vpop.f32.mrb[0].mxu0
    %v2087 = vadd.f32 0.0, %v2086
    %v2088 = vpop.f32.mrb[0].mxu0
    %v2089 = vpop.f32.mrb[0].mxu0
    %v2090 = vadd.f32 0.0, %v2089
    %v2091 = vpop.f32.mrb[0].mxu0
    %2092 = vdwg.mxu0
    %v2093 = vpack.c.bf16 %v1842, %v1839
    %v2094 = vpack.c.bf16 %v1850, %v1847
    %v2095 = vpack.c.bf16 %v1858, %v1855
    %v2096 = vpack.c.bf16 %v1866, %v1863
    %v2097 = vpack.c.bf16 %v1874, %v1871
    %v2098 = vpack.c.bf16 %v1882, %v1879
    %v2099 = vpack.c.bf16 %v1890, %v1887
    %v2100 = vpack.c.bf16 %v1898, %v1895
    %v2101 = vpack.c.bf16 %v1906, %v1903
    %v2102 = vpack.c.bf16 %v1914, %v1911
    %v2103 = vpack.c.bf16 %v1922, %v1919
    %v2104 = vpack.c.bf16 %v1930, %v1927
    %v2105 = vpack.c.bf16 %v1938, %v1935
    %v2106 = vpack.c.bf16 %v1946, %v1943
    %v2107 = vpack.c.bf16 %v1954, %v1951
    %v2108 = vpack.c.bf16 %v1962, %v1959
    %v2109 = vpack.c.bf16 %v1970, %v1967
    %v2110 = vpack.c.bf16 %v1978, %v1975
    %v2111 = vpack.c.bf16 %v1986, %v1983
    %v2112 = vpack.c.bf16 %v1994, %v1991
    %v2113 = vpack.c.bf16 %v2002, %v1999
    %v2114 = vpack.c.bf16 %v2010, %v2007
    %v2115 = vpack.c.bf16 %v2018, %v2015
    %v2116 = vpack.c.bf16 %v2026, %v2023
    %v2117 = vpack.c.bf16 %v2034, %v2031
    %v2118 = vpack.c.bf16 %v2042, %v2039
    %v2119 = vpack.c.bf16 %v2050, %v2047
    %v2120 = vpack.c.bf16 %v2058, %v2055
    %v2121 = vpack.c.bf16 %v2066, %v2063
    %v2122 = vpack.c.bf16 %v2074, %v2071
    %v2123 = vpack.c.bf16 %v2082, %v2079
    %v2124 = vpack.c.bf16 %v2090, %v2087
    %v2125 = vld [vmem:[%s4] sm:$0x1]
    %v2127 = vlaneseq
    %v2128 = vshrl.u32 %v2127, 7
    %v2129 = vsub.s32 0, %v2128
    %v2130 = vrot.slane %v2125, %v2129
    %2132 = vmatprep.subr.bf16.mxu0 0
    %2133 = vmatpush1.bf16.msra.mxu0 %v2093
    %2134 = vmatprep.subr.bf16.mxu0 0
    %2135 = vmatpush1.bf16.msra.mxu0 %v2094
    %2136 = vmatprep.subr.bf16.mxu0 0
    %2137 = vmatpush1.bf16.msra.mxu0 %v2095
    %2138 = vmatprep.subr.bf16.mxu0 0
    %2139 = vmatpush1.bf16.msra.mxu0 %v2096
    %2140 = vmatprep.subr.bf16.mxu0 0
    %2141 = vmatpush1.bf16.msra.mxu0 %v2097
    %2142 = vmatprep.subr.bf16.mxu0 0
    %2143 = vmatpush1.bf16.msra.mxu0 %v2098
    %2144 = vmatprep.subr.bf16.mxu0 0
    %2145 = vmatpush1.bf16.msra.mxu0 %v2099
    %2146 = vmatprep.subr.bf16.mxu0 0
    %2147 = vmatpush1.bf16.msra.mxu0 %v2100
    %2148 = vmatprep.subr.bf16.mxu0 0
    %2149 = vmatpush1.bf16.msra.mxu0 %v2101
    %2150 = vmatprep.subr.bf16.mxu0 0
    %2151 = vmatpush1.bf16.msra.mxu0 %v2102
    %2152 = vmatprep.subr.bf16.mxu0 0
    %2153 = vmatpush1.bf16.msra.mxu0 %v2103
    %2154 = vmatprep.subr.bf16.mxu0 0
    %2155 = vmatpush1.bf16.msra.mxu0 %v2104
    %2156 = vmatprep.subr.bf16.mxu0 0
    %2157 = vmatpush1.bf16.msra.mxu0 %v2105
    %2158 = vmatprep.subr.bf16.mxu0 0
    %2159 = vmatpush1.bf16.msra.mxu0 %v2106
    %2160 = vmatprep.subr.bf16.mxu0 0
    %2161 = vmatpush1.bf16.msra.mxu0 %v2107
    %2162 = vmatprep.subr.bf16.mxu0 0
    %2163 = vmatpush1.bf16.msra.mxu0 %v2108
    %2164 = vmatprep.mubr.bf16.mxu0 %v619
    %2165 = vmatmul.mubr.bf16.gmra.mrb[0].mxu0 %v618
    %v2166 = vpop.f32.mrb[0].mxu0
    %v2167 = vadd.f32 %v2130, %v2166
    %v2168 = vpop.f32.mrb[0].mxu0
    %v2169 = vpop.f32.mrb[0].mxu0
    %v2170 = vadd.f32 %v2130, %v2169
    %v2171 = vpop.f32.mrb[0].mxu0
    %2172 = vmatprep.mubr.bf16.mxu0 %v623
    %2173 = vmatmul.mubr.bf16.gmra.mrb[0].mxu0 %v622
    %v2174 = vpop.f32.mrb[0].mxu0
    %v2175 = vadd.f32 %v2130, %v2174
    %v2176 = vpop.f32.mrb[0].mxu0
    %v2177 = vpop.f32.mrb[0].mxu0
    %v2178 = vadd.f32 %v2130, %v2177
    %v2179 = vpop.f32.mrb[0].mxu0
    %2180 = vmatprep.mubr.bf16.mxu0 %v627
    %2181 = vmatmul.mubr.bf16.gmra.mrb[0].mxu0 %v626
    %v2182 = vpop.f32.mrb[0].mxu0
    %v2183 = vadd.f32 %v2130, %v2182
    %v2184 = vpop.f32.mrb[0].mxu0
    %v2185 = vpop.f32.mrb[0].mxu0
    %v2186 = vadd.f32 %v2130, %v2185
    %v2187 = vpop.f32.mrb[0].mxu0
    %2188 = vmatprep.mubr.bf16.mxu0 %v631
    %2189 = vmatmul.mubr.bf16.gmra.mrb[0].mxu0 %v630
    %v2190 = vpop.f32.mrb[0].mxu0
    %v2191 = vadd.f32 %v2130, %v2190
    %v2192 = vpop.f32.mrb[0].mxu0
    %v2193 = vpop.f32.mrb[0].mxu0
    %v2194 = vadd.f32 %v2130, %v2193
    %v2195 = vpop.f32.mrb[0].mxu0
    %2196 = vmatprep.mubr.bf16.mxu0 %v635
    %2197 = vmatmul.mubr.bf16.gmra.mrb[0].mxu0 %v634
    %v2198 = vpop.f32.mrb[0].mxu0
    %v2199 = vadd.f32 %v2130, %v2198
    %v2200 = vpop.f32.mrb[0].mxu0
    %v2201 = vpop.f32.mrb[0].mxu0
    %v2202 = vadd.f32 %v2130, %v2201
    %v2203 = vpop.f32.mrb[0].mxu0
    %2204 = vmatprep.mubr.bf16.mxu0 %v639
    %2205 = vmatmul.mubr.bf16.gmra.mrb[0].mxu0 %v638
    %v2206 = vpop.f32.mrb[0].mxu0
    %v2207 = vadd.f32 %v2130, %v2206
    %v2208 = vpop.f32.mrb[0].mxu0
    %v2209 = vpop.f32.mrb[0].mxu0
    %v2210 = vadd.f32 %v2130, %v2209
    %v2211 = vpop.f32.mrb[0].mxu0
    %2212 = vmatprep.mubr.bf16.mxu0 %v643
    %2213 = vmatmul.mubr.bf16.gmra.mrb[0].mxu0 %v642
    %v2214 = vpop.f32.mrb[0].mxu0
    %v2215 = vadd.f32 %v2130, %v2214
    %v2216 = vpop.f32.mrb[0].mxu0
    %v2217 = vpop.f32.mrb[0].mxu0
    %v2218 = vadd.f32 %v2130, %v2217
    %v2219 = vpop.f32.mrb[0].mxu0
    %2220 = vmatprep.mubr.bf16.mxu0 %v647
    %2221 = vmatmul.mubr.bf16.gmra.mrb[0].mxu0 %v646
    %v2222 = vpop.f32.mrb[0].mxu0
    %v2223 = vadd.f32 %v2130, %v2222
    %v2224 = vpop.f32.mrb[0].mxu0
    %v2225 = vpop.f32.mrb[0].mxu0
    %v2226 = vadd.f32 %v2130, %v2225
    %v2227 = vpop.f32.mrb[0].mxu0
    %2228 = vmatprep.mubr.bf16.mxu0 %v651
    %2229 = vmatmul.mubr.bf16.gmra.mrb[0].mxu0 %v650
    %v2230 = vpop.f32.mrb[0].mxu0
    %v2231 = vadd.f32 %v2130, %v2230
    %v2232 = vpop.f32.mrb[0].mxu0
    %v2233 = vpop.f32.mrb[0].mxu0
    %v2234 = vadd.f32 %v2130, %v2233
    %v2235 = vpop.f32.mrb[0].mxu0
    %2236 = vmatprep.mubr.bf16.mxu0 %v655
    %2237 = vmatmul.mubr.bf16.gmra.mrb[0].mxu0 %v654
    %v2238 = vpop.f32.mrb[0].mxu0
    %v2239 = vadd.f32 %v2130, %v2238
    %v2240 = vpop.f32.mrb[0].mxu0
    %v2241 = vpop.f32.mrb[0].mxu0
    %v2242 = vadd.f32 %v2130, %v2241
    %v2243 = vpop.f32.mrb[0].mxu0
    %2244 = vmatprep.mubr.bf16.mxu0 %v659
    %2245 = vmatmul.mubr.bf16.gmra.mrb[0].mxu0 %v658
    %v2246 = vpop.f32.mrb[0].mxu0
    %v2247 = vadd.f32 %v2130, %v2246
    %v2248 = vpop.f32.mrb[0].mxu0
    %v2249 = vpop.f32.mrb[0].mxu0
    %v2250 = vadd.f32 %v2130, %v2249
    %v2251 = vpop.f32.mrb[0].mxu0
    %2252 = vmatprep.mubr.bf16.mxu0 %v663
    %2253 = vmatmul.mubr.bf16.gmra.mrb[0].mxu0 %v662
    %v2254 = vpop.f32.mrb[0].mxu0
    %v2255 = vadd.f32 %v2130, %v2254
    %v2256 = vpop.f32.mrb[0].mxu0
    %v2257 = vpop.f32.mrb[0].mxu0
    %v2258 = vadd.f32 %v2130, %v2257
    %v2259 = vpop.f32.mrb[0].mxu0
    %2260 = vmatprep.mubr.bf16.mxu0 %v667
    %2261 = vmatmul.mubr.bf16.gmra.mrb[0].mxu0 %v666
    %v2262 = vpop.f32.mrb[0].mxu0
    %v2263 = vadd.f32 %v2130, %v2262
    %v2264 = vpop.f32.mrb[0].mxu0
    %v2265 = vpop.f32.mrb[0].mxu0
    %v2266 = vadd.f32 %v2130, %v2265
    %v2267 = vpop.f32.mrb[0].mxu0
    %2268 = vmatprep.mubr.bf16.mxu0 %v671
    %2269 = vmatmul.mubr.bf16.gmra.mrb[0].mxu0 %v670
    %v2270 = vpop.f32.mrb[0].mxu0
    %v2271 = vadd.f32 %v2130, %v2270
    %v2272 = vpop.f32.mrb[0].mxu0
    %v2273 = vpop.f32.mrb[0].mxu0
    %v2274 = vadd.f32 %v2130, %v2273
    %v2275 = vpop.f32.mrb[0].mxu0
    %2276 = vmatprep.mubr.bf16.mxu0 %v675
    %2277 = vmatmul.mubr.bf16.gmra.mrb[0].mxu0 %v674
    %v2278 = vpop.f32.mrb[0].mxu0
    %v2279 = vadd.f32 %v2130, %v2278
    %v2280 = vpop.f32.mrb[0].mxu0
    %v2281 = vpop.f32.mrb[0].mxu0
    %v2282 = vadd.f32 %v2130, %v2281
    %v2283 = vpop.f32.mrb[0].mxu0
    %2284 = vmatprep.mubr.bf16.mxu0 %v679
    %2285 = vmatmul.mubr.bf16.gmra.mrb[0].mxu0 %v678
    %v2286 = vpop.f32.mrb[0].mxu0
    %v2287 = vadd.f32 %v2130, %v2286
    %v2288 = vpop.f32.mrb[0].mxu0
    %v2289 = vpop.f32.mrb[0].mxu0
    %v2290 = vadd.f32 %v2130, %v2289
    %v2291 = vpop.f32.mrb[0].mxu0
    %2292 = vmatprep.mubr.bf16.mxu0 %v683
    %2293 = vmatmul.mubr.bf16.gmra.mrb[0].mxu0 %v682
    %v2294 = vpop.f32.mrb[0].mxu0
    %v2295 = vadd.f32 %v2130, %v2294
    %v2296 = vpop.f32.mrb[0].mxu0
    %v2297 = vpop.f32.mrb[0].mxu0
    %v2298 = vadd.f32 %v2130, %v2297
    %v2299 = vpop.f32.mrb[0].mxu0
    %2300 = vmatprep.mubr.bf16.mxu0 %v687
    %2301 = vmatmul.mubr.bf16.gmra.mrb[0].mxu0 %v686
    %v2302 = vpop.f32.mrb[0].mxu0
    %v2303 = vadd.f32 %v2130, %v2302
    %v2304 = vpop.f32.mrb[0].mxu0
    %v2305 = vpop.f32.mrb[0].mxu0
    %v2306 = vadd.f32 %v2130, %v2305
    %v2307 = vpop.f32.mrb[0].mxu0
    %2308 = vmatprep.mubr.bf16.mxu0 %v691
    %2309 = vmatmul.mubr.bf16.gmra.mrb[0].mxu0 %v690
    %v2310 = vpop.f32.mrb[0].mxu0
    %v2311 = vadd.f32 %v2130, %v2310
    %v2312 = vpop.f32.mrb[0].mxu0
    %v2313 = vpop.f32.mrb[0].mxu0
    %v2314 = vadd.f32 %v2130, %v2313
    %v2315 = vpop.f32.mrb[0].mxu0
    %2316 = vmatprep.mubr.bf16.mxu0 %v695
    %2317 = vmatmul.mubr.bf16.gmra.mrb[0].mxu0 %v694
    %v2318 = vpop.f32.mrb[0].mxu0
    %v2319 = vadd.f32 %v2130, %v2318
    %v2320 = vpop.f32.mrb[0].mxu0
    %v2321 = vpop.f32.mrb[0].mxu0
    %v2322 = vadd.f32 %v2130, %v2321
    %v2323 = vpop.f32.mrb[0].mxu0
    %2324 = vmatprep.mubr.bf16.mxu0 %v699
    %2325 = vmatmul.mubr.bf16.gmra.mrb[0].mxu0 %v698
    %v2326 = vpop.f32.mrb[0].mxu0
    %v2327 = vadd.f32 %v2130, %v2326
    %v2328 = vpop.f32.mrb[0].mxu0
    %v2329 = vpop.f32.mrb[0].mxu0
    %v2330 = vadd.f32 %v2130, %v2329
    %v2331 = vpop.f32.mrb[0].mxu0
    %2332 = vmatprep.mubr.bf16.mxu0 %v703
    %2333 = vmatmul.mubr.bf16.gmra.mrb[0].mxu0 %v702
    %v2334 = vpop.f32.mrb[0].mxu0
    %v2335 = vadd.f32 %v2130, %v2334
    %v2336 = vpop.f32.mrb[0].mxu0
    %v2337 = vpop.f32.mrb[0].mxu0
    %v2338 = vadd.f32 %v2130, %v2337
    %v2339 = vpop.f32.mrb[0].mxu0
    %2340 = vmatprep.mubr.bf16.mxu0 %v707
    %2341 = vmatmul.mubr.bf16.gmra.mrb[0].mxu0 %v706
    %v2342 = vpop.f32.mrb[0].mxu0
    %v2343 = vadd.f32 %v2130, %v2342
    %v2344 = vpop.f32.mrb[0].mxu0
    %v2345 = vpop.f32.mrb[0].mxu0
    %v2346 = vadd.f32 %v2130, %v2345
    %v2347 = vpop.f32.mrb[0].mxu0
    %2348 = vmatprep.mubr.bf16.mxu0 %v711
    %2349 = vmatmul.mubr.bf16.gmra.mrb[0].mxu0 %v710
    %v2350 = vpop.f32.mrb[0].mxu0
    %v2351 = vadd.f32 %v2130, %v2350
    %v2352 = vpop.f32.mrb[0].mxu0
    %v2353 = vpop.f32.mrb[0].mxu0
    %v2354 = vadd.f32 %v2130, %v2353
    %v2355 = vpop.f32.mrb[0].mxu0
    %2356 = vmatprep.mubr.bf16.mxu0 %v715
    %2357 = vmatmul.mubr.bf16.gmra.mrb[0].mxu0 %v714
    %v2358 = vpop.f32.mrb[0].mxu0
    %v2359 = vadd.f32 %v2130, %v2358
    %v2360 = vpop.f32.mrb[0].mxu0
    %v2361 = vpop.f32.mrb[0].mxu0
    %v2362 = vadd.f32 %v2130, %v2361
    %v2363 = vpop.f32.mrb[0].mxu0
    %2364 = vmatprep.mubr.bf16.mxu0 %v719
    %2365 = vmatmul.mubr.bf16.gmra.mrb[0].mxu0 %v718
    %v2366 = vpop.f32.mrb[0].mxu0
    %v2367 = vadd.f32 %v2130, %v2366
    %v2368 = vpop.f32.mrb[0].mxu0
    %v2369 = vpop.f32.mrb[0].mxu0
    %v2370 = vadd.f32 %v2130, %v2369
    %v2371 = vpop.f32.mrb[0].mxu0
    %2372 = vmatprep.mubr.bf16.mxu0 %v723
    %2373 = vmatmul.mubr.bf16.gmra.mrb[0].mxu0 %v722
    %v2374 = vpop.f32.mrb[0].mxu0
    %v2375 = vadd.f32 %v2130, %v2374
    %v2376 = vpop.f32.mrb[0].mxu0
    %v2377 = vpop.f32.mrb[0].mxu0
    %v2378 = vadd.f32 %v2130, %v2377
    %v2379 = vpop.f32.mrb[0].mxu0
    %2380 = vmatprep.mubr.bf16.mxu0 %v727
    %2381 = vmatmul.mubr.bf16.gmra.mrb[0].mxu0 %v726
    %v2382 = vpop.f32.mrb[0].mxu0
    %v2383 = vadd.f32 %v2130, %v2382
    %v2384 = vpop.f32.mrb[0].mxu0
    %v2385 = vpop.f32.mrb[0].mxu0
    %v2386 = vadd.f32 %v2130, %v2385
    %v2387 = vpop.f32.mrb[0].mxu0
    %2388 = vmatprep.mubr.bf16.mxu0 %v731
    %2389 = vmatmul.mubr.bf16.gmra.mrb[0].mxu0 %v730
    %v2390 = vpop.f32.mrb[0].mxu0
    %v2391 = vadd.f32 %v2130, %v2390
    %v2392 = vpop.f32.mrb[0].mxu0
    %v2393 = vpop.f32.mrb[0].mxu0
    %v2394 = vadd.f32 %v2130, %v2393
    %v2395 = vpop.f32.mrb[0].mxu0
    %2396 = vmatprep.mubr.bf16.mxu0 %v735
    %2397 = vmatmul.mubr.bf16.gmra.mrb[0].mxu0 %v734
    %v2398 = vpop.f32.mrb[0].mxu0
    %v2399 = vadd.f32 %v2130, %v2398
    %v2400 = vpop.f32.mrb[0].mxu0
    %v2401 = vpop.f32.mrb[0].mxu0
    %v2402 = vadd.f32 %v2130, %v2401
    %v2403 = vpop.f32.mrb[0].mxu0
    %2404 = vmatprep.mubr.bf16.mxu0 %v739
    %2405 = vmatmul.mubr.bf16.gmra.mrb[0].mxu0 %v738
    %v2406 = vpop.f32.mrb[0].mxu0
    %v2407 = vadd.f32 %v2130, %v2406
    %v2408 = vpop.f32.mrb[0].mxu0
    %v2409 = vpop.f32.mrb[0].mxu0
    %v2410 = vadd.f32 %v2130, %v2409
    %v2411 = vpop.f32.mrb[0].mxu0
    %2412 = vmatprep.mubr.bf16.mxu0 %v743
    %2413 = vmatmul.mubr.bf16.gmra.mrb[0].mxu0 %v742
    %v2414 = vpop.f32.mrb[0].mxu0
    %v2415 = vadd.f32 %v2130, %v2414
    %v2416 = vpop.f32.mrb[0].mxu0
    %v2417 = vpop.f32.mrb[0].mxu0
    %v2418 = vadd.f32 %v2130, %v2417
    %v2419 = vpop.f32.mrb[0].mxu0
    %2420 = vdwg.mxu0
    %2421 = vmatprep.subr.bf16.mxu0 0
    %2422 = vmatpush1.bf16.msra.mxu0 %v2109
    %2423 = vmatprep.subr.bf16.mxu0 0
    %2424 = vmatpush1.bf16.msra.mxu0 %v2110
    %2425 = vmatprep.subr.bf16.mxu0 0
    %2426 = vmatpush1.bf16.msra.mxu0 %v2111
    %2427 = vmatprep.subr.bf16.mxu0 0
    %2428 = vmatpush1.bf16.msra.mxu0 %v2112
    %2429 = vmatprep.subr.bf16.mxu0 0
    %2430 = vmatpush1.bf16.msra.mxu0 %v2113
    %2431 = vmatprep.subr.bf16.mxu0 0
    %2432 = vmatpush1.bf16.msra.mxu0 %v2114
    %2433 = vmatprep.subr.bf16.mxu0 0
    %2434 = vmatpush1.bf16.msra.mxu0 %v2115
    %2435 = vmatprep.subr.bf16.mxu0 0
    %2436 = vmatpush1.bf16.msra.mxu0 %v2116
    %2437 = vmatprep.subr.bf16.mxu0 0
    %2438 = vmatpush1.bf16.msra.mxu0 %v2117
    %2439 = vmatprep.subr.bf16.mxu0 0
    %2440 = vmatpush1.bf16.msra.mxu0 %v2118
    %2441 = vmatprep.subr.bf16.mxu0 0
    %2442 = vmatpush1.bf16.msra.mxu0 %v2119
    %2443 = vmatprep.subr.bf16.mxu0 0
    %2444 = vmatpush1.bf16.msra.mxu0 %v2120
    %2445 = vmatprep.subr.bf16.mxu0 0
    %2446 = vmatpush1.bf16.msra.mxu0 %v2121
    %2447 = vmatprep.subr.bf16.mxu0 0
    %2448 = vmatpush1.bf16.msra.mxu0 %v2122
    %2449 = vmatprep.subr.bf16.mxu0 0
    %2450 = vmatpush1.bf16.msra.mxu0 %v2123
    %2451 = vmatprep.subr.bf16.mxu0 0
    %2452 = vmatpush1.bf16.msra.mxu0 %v2124
    %2453 = vmatprep.mubr.bf16.mxu0 %v621
    %2454 = vmatmul.mubr.bf16.gmra.mrb[0].mxu0 %v620
    %v2455 = vpop.f32.mrb[0].mxu0
    %v2456 = vadd.f32 %v2167, %v2455
    %v2457 = vpop.f32.mrb[0].mxu0
    %v2458 = vpop.f32.mrb[0].mxu0
    %v2459 = vadd.f32 %v2170, %v2458
    %v2460 = vpop.f32.mrb[0].mxu0
    %2461 = vmatprep.mubr.bf16.mxu0 %v625
    %2462 = vmatmul.mubr.bf16.gmra.mrb[0].mxu0 %v624
    %v2463 = vpop.f32.mrb[0].mxu0
    %v2464 = vadd.f32 %v2175, %v2463
    %v2465 = vpop.f32.mrb[0].mxu0
    %v2466 = vpop.f32.mrb[0].mxu0
    %v2467 = vadd.f32 %v2178, %v2466
    %v2468 = vpop.f32.mrb[0].mxu0
    %2469 = vmatprep.mubr.bf16.mxu0 %v629
    %2470 = vmatmul.mubr.bf16.gmra.mrb[0].mxu0 %v628
    %v2471 = vpop.f32.mrb[0].mxu0
    %v2472 = vadd.f32 %v2183, %v2471
    %v2473 = vpop.f32.mrb[0].mxu0
    %v2474 = vpop.f32.mrb[0].mxu0
    %v2475 = vadd.f32 %v2186, %v2474
    %v2476 = vpop.f32.mrb[0].mxu0
    %2477 = vmatprep.mubr.bf16.mxu0 %v633
    %2478 = vmatmul.mubr.bf16.gmra.mrb[0].mxu0 %v632
    %v2479 = vpop.f32.mrb[0].mxu0
    %v2480 = vadd.f32 %v2191, %v2479
    %v2481 = vpop.f32.mrb[0].mxu0
    %v2482 = vpop.f32.mrb[0].mxu0
    %v2483 = vadd.f32 %v2194, %v2482
    %v2484 = vpop.f32.mrb[0].mxu0
    %2485 = vmatprep.mubr.bf16.mxu0 %v637
    %2486 = vmatmul.mubr.bf16.gmra.mrb[0].mxu0 %v636
    %v2487 = vpop.f32.mrb[0].mxu0
    %v2488 = vadd.f32 %v2199, %v2487
    %v2489 = vpop.f32.mrb[0].mxu0
    %v2490 = vpop.f32.mrb[0].mxu0
    %v2491 = vadd.f32 %v2202, %v2490
    %v2492 = vpop.f32.mrb[0].mxu0
    %2493 = vmatprep.mubr.bf16.mxu0 %v641
    %2494 = vmatmul.mubr.bf16.gmra.mrb[0].mxu0 %v640
    %v2495 = vpop.f32.mrb[0].mxu0
    %v2496 = vadd.f32 %v2207, %v2495
    %v2497 = vpop.f32.mrb[0].mxu0
    %v2498 = vpop.f32.mrb[0].mxu0
    %v2499 = vadd.f32 %v2210, %v2498
    %v2500 = vpop.f32.mrb[0].mxu0
    %2501 = vmatprep.mubr.bf16.mxu0 %v645
    %2502 = vmatmul.mubr.bf16.gmra.mrb[0].mxu0 %v644
    %v2503 = vpop.f32.mrb[0].mxu0
    %v2504 = vadd.f32 %v2215, %v2503
    %v2505 = vpop.f32.mrb[0].mxu0
    %v2506 = vpop.f32.mrb[0].mxu0
    %v2507 = vadd.f32 %v2218, %v2506
    %v2508 = vpop.f32.mrb[0].mxu0
    %2509 = vmatprep.mubr.bf16.mxu0 %v649
    %2510 = vmatmul.mubr.bf16.gmra.mrb[0].mxu0 %v648
    %v2511 = vpop.f32.mrb[0].mxu0
    %v2512 = vadd.f32 %v2223, %v2511
    %v2513 = vpop.f32.mrb[0].mxu0
    %v2514 = vpop.f32.mrb[0].mxu0
    %v2515 = vadd.f32 %v2226, %v2514
    %v2516 = vpop.f32.mrb[0].mxu0
    %2517 = vmatprep.mubr.bf16.mxu0 %v653
    %2518 = vmatmul.mubr.bf16.gmra.mrb[0].mxu0 %v652
    %v2519 = vpop.f32.mrb[0].mxu0
    %v2520 = vadd.f32 %v2231, %v2519
    %v2521 = vpop.f32.mrb[0].mxu0
    %v2522 = vpop.f32.mrb[0].mxu0
    %v2523 = vadd.f32 %v2234, %v2522
    %v2524 = vpop.f32.mrb[0].mxu0
    %2525 = vmatprep.mubr.bf16.mxu0 %v657
    %2526 = vmatmul.mubr.bf16.gmra.mrb[0].mxu0 %v656
    %v2527 = vpop.f32.mrb[0].mxu0
    %v2528 = vadd.f32 %v2239, %v2527
    %v2529 = vpop.f32.mrb[0].mxu0
    %v2530 = vpop.f32.mrb[0].mxu0
    %v2531 = vadd.f32 %v2242, %v2530
    %v2532 = vpop.f32.mrb[0].mxu0
    %2533 = vmatprep.mubr.bf16.mxu0 %v661
    %2534 = vmatmul.mubr.bf16.gmra.mrb[0].mxu0 %v660
    %v2535 = vpop.f32.mrb[0].mxu0
    %v2536 = vadd.f32 %v2247, %v2535
    %v2537 = vpop.f32.mrb[0].mxu0
    %v2538 = vpop.f32.mrb[0].mxu0
    %v2539 = vadd.f32 %v2250, %v2538
    %v2540 = vpop.f32.mrb[0].mxu0
    %2541 = vmatprep.mubr.bf16.mxu0 %v665
    %2542 = vmatmul.mubr.bf16.gmra.mrb[0].mxu0 %v664
    %v2543 = vpop.f32.mrb[0].mxu0
    %v2544 = vadd.f32 %v2255, %v2543
    %v2545 = vpop.f32.mrb[0].mxu0
    %v2546 = vpop.f32.mrb[0].mxu0
    %v2547 = vadd.f32 %v2258, %v2546
    %v2548 = vpop.f32.mrb[0].mxu0
    %2549 = vmatprep.mubr.bf16.mxu0 %v669
    %2550 = vmatmul.mubr.bf16.gmra.mrb[0].mxu0 %v668
    %v2551 = vpop.f32.mrb[0].mxu0
    %v2552 = vadd.f32 %v2263, %v2551
    %v2553 = vpop.f32.mrb[0].mxu0
    %v2554 = vpop.f32.mrb[0].mxu0
    %v2555 = vadd.f32 %v2266, %v2554
    %v2556 = vpop.f32.mrb[0].mxu0
    %2557 = vmatprep.mubr.bf16.mxu0 %v673
    %2558 = vmatmul.mubr.bf16.gmra.mrb[0].mxu0 %v672
    %v2559 = vpop.f32.mrb[0].mxu0
    %v2560 = vadd.f32 %v2271, %v2559
    %v2561 = vpop.f32.mrb[0].mxu0
    %v2562 = vpop.f32.mrb[0].mxu0
    %v2563 = vadd.f32 %v2274, %v2562
    %v2564 = vpop.f32.mrb[0].mxu0
    %2565 = vmatprep.mubr.bf16.mxu0 %v677
    %2566 = vmatmul.mubr.bf16.gmra.mrb[0].mxu0 %v676
    %v2567 = vpop.f32.mrb[0].mxu0
    %v2568 = vadd.f32 %v2279, %v2567
    %v2569 = vpop.f32.mrb[0].mxu0
    %v2570 = vpop.f32.mrb[0].mxu0
    %v2571 = vadd.f32 %v2282, %v2570
    %v2572 = vpop.f32.mrb[0].mxu0
    %2573 = vmatprep.mubr.bf16.mxu0 %v681
    %2574 = vmatmul.mubr.bf16.gmra.mrb[0].mxu0 %v680
    %v2575 = vpop.f32.mrb[0].mxu0
    %v2576 = vadd.f32 %v2287, %v2575
    %v2577 = vpop.f32.mrb[0].mxu0
    %v2578 = vpop.f32.mrb[0].mxu0
    %v2579 = vadd.f32 %v2290, %v2578
    %v2580 = vpop.f32.mrb[0].mxu0
    %2581 = vmatprep.mubr.bf16.mxu0 %v685
    %2582 = vmatmul.mubr.bf16.gmra.mrb[0].mxu0 %v684
    %v2583 = vpop.f32.mrb[0].mxu0
    %v2584 = vadd.f32 %v2295, %v2583
    %v2585 = vpop.f32.mrb[0].mxu0
    %v2586 = vpop.f32.mrb[0].mxu0
    %v2587 = vadd.f32 %v2298, %v2586
    %v2588 = vpop.f32.mrb[0].mxu0
    %2589 = vmatprep.mubr.bf16.mxu0 %v689
    %2590 = vmatmul.mubr.bf16.gmra.mrb[0].mxu0 %v688
    %v2591 = vpop.f32.mrb[0].mxu0
    %v2592 = vadd.f32 %v2303, %v2591
    %v2593 = vpop.f32.mrb[0].mxu0
    %v2594 = vpop.f32.mrb[0].mxu0
    %v2595 = vadd.f32 %v2306, %v2594
    %v2596 = vpop.f32.mrb[0].mxu0
    %2597 = vmatprep.mubr.bf16.mxu0 %v693
    %2598 = vmatmul.mubr.bf16.gmra.mrb[0].mxu0 %v692
    %v2599 = vpop.f32.mrb[0].mxu0
    %v2600 = vadd.f32 %v2311, %v2599
    %v2601 = vpop.f32.mrb[0].mxu0
    %v2602 = vpop.f32.mrb[0].mxu0
    %v2603 = vadd.f32 %v2314, %v2602
    %v2604 = vpop.f32.mrb[0].mxu0
    %2605 = vmatprep.mubr.bf16.mxu0 %v697
    %2606 = vmatmul.mubr.bf16.gmra.mrb[0].mxu0 %v696
    %v2607 = vpop.f32.mrb[0].mxu0
    %v2608 = vadd.f32 %v2319, %v2607
    %v2609 = vpop.f32.mrb[0].mxu0
    %v2610 = vpop.f32.mrb[0].mxu0
    %v2611 = vadd.f32 %v2322, %v2610
    %v2612 = vpop.f32.mrb[0].mxu0
    %2613 = vmatprep.mubr.bf16.mxu0 %v701
    %2614 = vmatmul.mubr.bf16.gmra.mrb[0].mxu0 %v700
    %v2615 = vpop.f32.mrb[0].mxu0
    %v2616 = vadd.f32 %v2327, %v2615
    %v2617 = vpop.f32.mrb[0].mxu0
    %v2618 = vpop.f32.mrb[0].mxu0
    %v2619 = vadd.f32 %v2330, %v2618
    %v2620 = vpop.f32.mrb[0].mxu0
    %2621 = vmatprep.mubr.bf16.mxu0 %v705
    %2622 = vmatmul.mubr.bf16.gmra.mrb[0].mxu0 %v704
    %v2623 = vpop.f32.mrb[0].mxu0
    %v2624 = vadd.f32 %v2335, %v2623
    %v2625 = vpop.f32.mrb[0].mxu0
    %v2626 = vpop.f32.mrb[0].mxu0
    %v2627 = vadd.f32 %v2338, %v2626
    %v2628 = vpop.f32.mrb[0].mxu0
    %2629 = vmatprep.mubr.bf16.mxu0 %v709
    %2630 = vmatmul.mubr.bf16.gmra.mrb[0].mxu0 %v708
    %v2631 = vpop.f32.mrb[0].mxu0
    %v2632 = vadd.f32 %v2343, %v2631
    %v2633 = vpop.f32.mrb[0].mxu0
    %v2634 = vpop.f32.mrb[0].mxu0
    %v2635 = vadd.f32 %v2346, %v2634
    %v2636 = vpop.f32.mrb[0].mxu0
    %2637 = vmatprep.mubr.bf16.mxu0 %v713
    %2638 = vmatmul.mubr.bf16.gmra.mrb[0].mxu0 %v712
    %v2639 = vpop.f32.mrb[0].mxu0
    %v2640 = vadd.f32 %v2351, %v2639
    %v2641 = vpop.f32.mrb[0].mxu0
    %v2642 = vpop.f32.mrb[0].mxu0
    %v2643 = vadd.f32 %v2354, %v2642
    %v2644 = vpop.f32.mrb[0].mxu0
    %2645 = vmatprep.mubr.bf16.mxu0 %v717
    %2646 = vmatmul.mubr.bf16.gmra.mrb[0].mxu0 %v716
    %v2647 = vpop.f32.mrb[0].mxu0
    %v2648 = vadd.f32 %v2359, %v2647
    %v2649 = vpop.f32.mrb[0].mxu0
    %v2650 = vpop.f32.mrb[0].mxu0
    %v2651 = vadd.f32 %v2362, %v2650
    %v2652 = vpop.f32.mrb[0].mxu0
    %2653 = vmatprep.mubr.bf16.mxu0 %v721
    %2654 = vmatmul.mubr.bf16.gmra.mrb[0].mxu0 %v720
    %v2655 = vpop.f32.mrb[0].mxu0
    %v2656 = vadd.f32 %v2367, %v2655
    %v2657 = vpop.f32.mrb[0].mxu0
    %v2658 = vpop.f32.mrb[0].mxu0
    %v2659 = vadd.f32 %v2370, %v2658
    %v2660 = vpop.f32.mrb[0].mxu0
    %2661 = vmatprep.mubr.bf16.mxu0 %v725
    %2662 = vmatmul.mubr.bf16.gmra.mrb[0].mxu0 %v724
    %v2663 = vpop.f32.mrb[0].mxu0
    %v2664 = vadd.f32 %v2375, %v2663
    %v2665 = vpop.f32.mrb[0].mxu0
    %v2666 = vpop.f32.mrb[0].mxu0
    %v2667 = vadd.f32 %v2378, %v2666
    %v2668 = vpop.f32.mrb[0].mxu0
    %2669 = vmatprep.mubr.bf16.mxu0 %v729
    %2670 = vmatmul.mubr.bf16.gmra.mrb[0].mxu0 %v728
    %v2671 = vpop.f32.mrb[0].mxu0
    %v2672 = vadd.f32 %v2383, %v2671
    %v2673 = vpop.f32.mrb[0].mxu0
    %v2674 = vpop.f32.mrb[0].mxu0
    %v2675 = vadd.f32 %v2386, %v2674
    %v2676 = vpop.f32.mrb[0].mxu0
    %2677 = vmatprep.mubr.bf16.mxu0 %v733
    %2678 = vmatmul.mubr.bf16.gmra.mrb[0].mxu0 %v732
    %v2679 = vpop.f32.mrb[0].mxu0
    %v2680 = vadd.f32 %v2391, %v2679
    %v2681 = vpop.f32.mrb[0].mxu0
    %v2682 = vpop.f32.mrb[0].mxu0
    %v2683 = vadd.f32 %v2394, %v2682
    %v2684 = vpop.f32.mrb[0].mxu0
    %2685 = vmatprep.mubr.bf16.mxu0 %v737
    %2686 = vmatmul.mubr.bf16.gmra.mrb[0].mxu0 %v736
    %v2687 = vpop.f32.mrb[0].mxu0
    %v2688 = vadd.f32 %v2399, %v2687
    %v2689 = vpop.f32.mrb[0].mxu0
    %v2690 = vpop.f32.mrb[0].mxu0
    %v2691 = vadd.f32 %v2402, %v2690
    %v2692 = vpop.f32.mrb[0].mxu0
    %2693 = vmatprep.mubr.bf16.mxu0 %v741
    %2694 = vmatmul.mubr.bf16.gmra.mrb[0].mxu0 %v740
    %v2695 = vpop.f32.mrb[0].mxu0
    %v2696 = vadd.f32 %v2407, %v2695
    %v2697 = vpop.f32.mrb[0].mxu0
    %v2698 = vpop.f32.mrb[0].mxu0
    %v2699 = vadd.f32 %v2410, %v2698
    %v2700 = vpop.f32.mrb[0].mxu0
    %2701 = vmatprep.mubr.bf16.mxu0 %v745
    %2702 = vmatmul.mubr.bf16.gmra.mrb[0].mxu0 %v744
    %v2703 = vpop.f32.mrb[0].mxu0
    %v2704 = vadd.f32 %v2415, %v2703
    %v2705 = vpop.f32.mrb[0].mxu0
    %v2706 = vpop.f32.mrb[0].mxu0
    %v2707 = vadd.f32 %v2418, %v2706
    %v2708 = vpop.f32.mrb[0].mxu0
    %2709 = vdwg.mxu0
    %2710 = vmax.xlane.f32.xlu0 %v2456
    %v2711 = vpop.xlane.xlu0 %2710
    %2712 = vmax.xlane.f32.xlu0 %v2459
    %v2713 = vpop.xlane.xlu0 %2712
    %2714 = vmax.xlane.f32.xlu0 %v2464
    %v2715 = vpop.xlane.xlu0 %2714
    %2716 = vmax.xlane.f32.xlu0 %v2467
    %v2717 = vpop.xlane.xlu0 %2716
    %2718 = vmax.xlane.f32.xlu0 %v2472
    %v2719 = vpop.xlane.xlu0 %2718
    %2720 = vmax.xlane.f32.xlu0 %v2475
    %v2721 = vpop.xlane.xlu0 %2720
    %2722 = vmax.xlane.f32.xlu0 %v2480
    %v2723 = vpop.xlane.xlu0 %2722
    %2724 = vmax.xlane.f32.xlu0 %v2483
    %v2725 = vpop.xlane.xlu0 %2724
    %2726 = vmax.xlane.f32.xlu0 %v2488
    %v2727 = vpop.xlane.xlu0 %2726
    %2728 = vmax.xlane.f32.xlu0 %v2491
    %v2729 = vpop.xlane.xlu0 %2728
    %2730 = vmax.xlane.f32.xlu0 %v2496
    %v2731 = vpop.xlane.xlu0 %2730
    %2732 = vmax.xlane.f32.xlu0 %v2499
    %v2733 = vpop.xlane.xlu0 %2732
    %2734 = vmax.xlane.f32.xlu0 %v2504
    %v2735 = vpop.xlane.xlu0 %2734
    %2736 = vmax.xlane.f32.xlu0 %v2507
    %v2737 = vpop.xlane.xlu0 %2736
    %2738 = vmax.xlane.f32.xlu0 %v2512
    %v2739 = vpop.xlane.xlu0 %2738
    %2740 = vmax.xlane.f32.xlu0 %v2515
    %v2741 = vpop.xlane.xlu0 %2740
    %2742 = vmax.xlane.f32.xlu0 %v2520
    %v2743 = vpop.xlane.xlu0 %2742
    %2744 = vmax.xlane.f32.xlu0 %v2523
    %v2745 = vpop.xlane.xlu0 %2744
    %2746 = vmax.xlane.f32.xlu0 %v2528
    %v2747 = vpop.xlane.xlu0 %2746
    %2748 = vmax.xlane.f32.xlu0 %v2531
    %v2749 = vpop.xlane.xlu0 %2748
    %2750 = vmax.xlane.f32.xlu0 %v2536
    %v2751 = vpop.xlane.xlu0 %2750
    %2752 = vmax.xlane.f32.xlu0 %v2539
    %v2753 = vpop.xlane.xlu0 %2752
    %2754 = vmax.xlane.f32.xlu0 %v2544
    %v2755 = vpop.xlane.xlu0 %2754
    %2756 = vmax.xlane.f32.xlu0 %v2547
    %v2757 = vpop.xlane.xlu0 %2756
    %2758 = vmax.xlane.f32.xlu0 %v2552
    %v2759 = vpop.xlane.xlu0 %2758
    %2760 = vmax.xlane.f32.xlu0 %v2555
    %v2761 = vpop.xlane.xlu0 %2760
    %2762 = vmax.xlane.f32.xlu0 %v2560
    %v2763 = vpop.xlane.xlu0 %2762
    %2764 = vmax.xlane.f32.xlu0 %v2563
    %v2765 = vpop.xlane.xlu0 %2764
    %2766 = vmax.xlane.f32.xlu0 %v2568
    %v2767 = vpop.xlane.xlu0 %2766
    %2768 = vmax.xlane.f32.xlu0 %v2571
    %v2769 = vpop.xlane.xlu0 %2768
    %2770 = vmax.xlane.f32.xlu0 %v2576
    %v2771 = vpop.xlane.xlu0 %2770
    %2772 = vmax.xlane.f32.xlu0 %v2579
    %v2773 = vpop.xlane.xlu0 %2772
    %2774 = vmax.xlane.f32.xlu0 %v2584
    %v2775 = vpop.xlane.xlu0 %2774
    %2776 = vmax.xlane.f32.xlu0 %v2587
    %v2777 = vpop.xlane.xlu0 %2776
    %2778 = vmax.xlane.f32.xlu0 %v2592
    %v2779 = vpop.xlane.xlu0 %2778
    %2780 = vmax.xlane.f32.xlu0 %v2595
    %v2781 = vpop.xlane.xlu0 %2780
    %2782 = vmax.xlane.f32.xlu0 %v2600
    %v2783 = vpop.xlane.xlu0 %2782
    %2784 = vmax.xlane.f32.xlu0 %v2603
    %v2785 = vpop.xlane.xlu0 %2784
    %2786 = vmax.xlane.f32.xlu0 %v2608
    %v2787 = vpop.xlane.xlu0 %2786
    %2788 = vmax.xlane.f32.xlu0 %v2611
    %v2789 = vpop.xlane.xlu0 %2788
    %2790 = vmax.xlane.f32.xlu0 %v2616
    %v2791 = vpop.xlane.xlu0 %2790
    %2792 = vmax.xlane.f32.xlu0 %v2619
    %v2793 = vpop.xlane.xlu0 %2792
    %2794 = vmax.xlane.f32.xlu0 %v2624
    %v2795 = vpop.xlane.xlu0 %2794
    %2796 = vmax.xlane.f32.xlu0 %v2627
    %v2797 = vpop.xlane.xlu0 %2796
    %2798 = vmax.xlane.f32.xlu0 %v2632
    %v2799 = vpop.xlane.xlu0 %2798
    %2800 = vmax.xlane.f32.xlu0 %v2635
    %v2801 = vpop.xlane.xlu0 %2800
    %2802 = vmax.xlane.f32.xlu0 %v2640
    %v2803 = vpop.xlane.xlu0 %2802
    %2804 = vmax.xlane.f32.xlu0 %v2643
    %v2805 = vpop.xlane.xlu0 %2804
    %2806 = vmax.xlane.f32.xlu0 %v2648
    %v2807 = vpop.xlane.xlu0 %2806
    %2808 = vmax.xlane.f32.xlu0 %v2651
    %v2809 = vpop.xlane.xlu0 %2808
    %2810 = vmax.xlane.f32.xlu0 %v2656
    %v2811 = vpop.xlane.xlu0 %2810
    %2812 = vmax.xlane.f32.xlu0 %v2659
    %v2813 = vpop.xlane.xlu0 %2812
    %2814 = vmax.xlane.f32.xlu0 %v2664
    %v2815 = vpop.xlane.xlu0 %2814
    %2816 = vmax.xlane.f32.xlu0 %v2667
    %v2817 = vpop.xlane.xlu0 %2816
    %2818 = vmax.xlane.f32.xlu0 %v2672
    %v2819 = vpop.xlane.xlu0 %2818
    %2820 = vmax.xlane.f32.xlu0 %v2675
    %v2821 = vpop.xlane.xlu0 %2820
    %2822 = vmax.xlane.f32.xlu0 %v2680
    %v2823 = vpop.xlane.xlu0 %2822
    %2824 = vmax.xlane.f32.xlu0 %v2683
    %v2825 = vpop.xlane.xlu0 %2824
    %2826 = vmax.xlane.f32.xlu0 %v2688
    %v2827 = vpop.xlane.xlu0 %2826
    %2828 = vmax.xlane.f32.xlu0 %v2691
    %v2829 = vpop.xlane.xlu0 %2828
    %2830 = vmax.xlane.f32.xlu0 %v2696
    %v2831 = vpop.xlane.xlu0 %2830
    %2832 = vmax.xlane.f32.xlu0 %v2699
    %v2833 = vpop.xlane.xlu0 %2832
    %2834 = vmax.xlane.f32.xlu0 %v2704
    %v2835 = vpop.xlane.xlu0 %2834
    %2836 = vmax.xlane.f32.xlu0 %v2707
    %v2837 = vpop.xlane.xlu0 %2836
    %v2838 = vsub.f32 %v2456, %v2711
    %v2839 = vsub.f32 %v2459, %v2713
    %v2840 = vsub.f32 %v2464, %v2715
    %v2841 = vsub.f32 %v2467, %v2717
    %v2842 = vsub.f32 %v2472, %v2719
    %v2843 = vsub.f32 %v2475, %v2721
    %v2844 = vsub.f32 %v2480, %v2723
    %v2845 = vsub.f32 %v2483, %v2725
    %v2846 = vsub.f32 %v2488, %v2727
    %v2847 = vsub.f32 %v2491, %v2729
    %v2848 = vsub.f32 %v2496, %v2731
    %v2849 = vsub.f32 %v2499, %v2733
    %v2850 = vsub.f32 %v2504, %v2735
    %v2851 = vsub.f32 %v2507, %v2737
    %v2852 = vsub.f32 %v2512, %v2739
    %v2853 = vsub.f32 %v2515, %v2741
    %v2854 = vsub.f32 %v2520, %v2743
    %v2855 = vsub.f32 %v2523, %v2745
    %v2856 = vsub.f32 %v2528, %v2747
    %v2857 = vsub.f32 %v2531, %v2749
    %v2858 = vsub.f32 %v2536, %v2751
    %v2859 = vsub.f32 %v2539, %v2753
    %v2860 = vsub.f32 %v2544, %v2755
    %v2861 = vsub.f32 %v2547, %v2757
    %v2862 = vsub.f32 %v2552, %v2759
    %v2863 = vsub.f32 %v2555, %v2761
    %v2864 = vsub.f32 %v2560, %v2763
    %v2865 = vsub.f32 %v2563, %v2765
    %v2866 = vsub.f32 %v2568, %v2767
    %v2867 = vsub.f32 %v2571, %v2769
    %v2868 = vsub.f32 %v2576, %v2771
    %v2869 = vsub.f32 %v2579, %v2773
    %v2870 = vsub.f32 %v2584, %v2775
    %v2871 = vsub.f32 %v2587, %v2777
    %v2872 = vsub.f32 %v2592, %v2779
    %v2873 = vsub.f32 %v2595, %v2781
    %v2874 = vsub.f32 %v2600, %v2783
    %v2875 = vsub.f32 %v2603, %v2785
    %v2876 = vsub.f32 %v2608, %v2787
    %v2877 = vsub.f32 %v2611, %v2789
    %v2878 = vsub.f32 %v2616, %v2791
    %v2879 = vsub.f32 %v2619, %v2793
    %v2880 = vsub.f32 %v2624, %v2795
    %v2881 = vsub.f32 %v2627, %v2797
    %v2882 = vsub.f32 %v2632, %v2799
    %v2883 = vsub.f32 %v2635, %v2801
    %v2884 = vsub.f32 %v2640, %v2803
    %v2885 = vsub.f32 %v2643, %v2805
    %v2886 = vsub.f32 %v2648, %v2807
    %v2887 = vsub.f32 %v2651, %v2809
    %v2888 = vsub.f32 %v2656, %v2811
    %v2889 = vsub.f32 %v2659, %v2813
    %v2890 = vsub.f32 %v2664, %v2815
    %v2891 = vsub.f32 %v2667, %v2817
    %v2892 = vsub.f32 %v2672, %v2819
    %v2893 = vsub.f32 %v2675, %v2821
    %v2894 = vsub.f32 %v2680, %v2823
    %v2895 = vsub.f32 %v2683, %v2825
    %v2896 = vsub.f32 %v2688, %v2827
    %v2897 = vsub.f32 %v2691, %v2829
    %v2898 = vsub.f32 %v2696, %v2831
    %v2899 = vsub.f32 %v2699, %v2833
    %v2900 = vsub.f32 %v2704, %v2835
    %v2901 = vsub.f32 %v2707, %v2837
    %v2902 = vmul.f32 %v2838, 1.442695
    %v2903 = vpow.pop %v2902
    %v2904 = vmul.f32 %v2839, 1.442695
    %v2905 = vpow.pop %v2904
    %v2906 = vmul.f32 %v2840, 1.442695
    %v2907 = vpow.pop %v2906
    %v2908 = vmul.f32 %v2841, 1.442695
    %v2909 = vpow.pop %v2908
    %v2910 = vmul.f32 %v2842, 1.442695
    %v2911 = vpow.pop %v2910
    %v2912 = vmul.f32 %v2843, 1.442695
    %v2913 = vpow.pop %v2912
    %v2914 = vmul.f32 %v2844, 1.442695
    %v2915 = vpow.pop %v2914
    %v2916 = vmul.f32 %v2845, 1.442695
    %v2917 = vpow.pop %v2916
    %v2918 = vmul.f32 %v2846, 1.442695
    %v2919 = vpow.pop %v2918
    %v2920 = vmul.f32 %v2847, 1.442695
    %v2921 = vpow.pop %v2920
    %v2922 = vmul.f32 %v2848, 1.442695
    %v2923 = vpow.pop %v2922
    %v2924 = vmul.f32 %v2849, 1.442695
    %v2925 = vpow.pop %v2924
    %v2926 = vmul.f32 %v2850, 1.442695
    %v2927 = vpow.pop %v2926
    %v2928 = vmul.f32 %v2851, 1.442695
    %v2929 = vpow.pop %v2928
    %v2930 = vmul.f32 %v2852, 1.442695
    %v2931 = vpow.pop %v2930
    %v2932 = vmul.f32 %v2853, 1.442695
    %v2933 = vpow.pop %v2932
    %v2934 = vmul.f32 %v2854, 1.442695
    %v2935 = vpow.pop %v2934
    %v2936 = vmul.f32 %v2855, 1.442695
    %v2937 = vpow.pop %v2936
    %v2938 = vmul.f32 %v2856, 1.442695
    %v2939 = vpow.pop %v2938
    %v2940 = vmul.f32 %v2857, 1.442695
    %v2941 = vpow.pop %v2940
    %v2942 = vmul.f32 %v2858, 1.442695
    %v2943 = vpow.pop %v2942
    %v2944 = vmul.f32 %v2859, 1.442695
    %v2945 = vpow.pop %v2944
    %v2946 = vmul.f32 %v2860, 1.442695
    %v2947 = vpow.pop %v2946
    %v2948 = vmul.f32 %v2861, 1.442695
    %v2949 = vpow.pop %v2948
    %v2950 = vmul.f32 %v2862, 1.442695
    %v2951 = vpow.pop %v2950
    %v2952 = vmul.f32 %v2863, 1.442695
    %v2953 = vpow.pop %v2952
    %v2954 = vmul.f32 %v2864, 1.442695
    %v2955 = vpow.pop %v2954
    %v2956 = vmul.f32 %v2865, 1.442695
    %v2957 = vpow.pop %v2956
    %v2958 = vmul.f32 %v2866, 1.442695
    %v2959 = vpow.pop %v2958
    %v2960 = vmul.f32 %v2867, 1.442695
    %v2961 = vpow.pop %v2960
    %v2962 = vmul.f32 %v2868, 1.442695
    %v2963 = vpow.pop %v2962
    %v2964 = vmul.f32 %v2869, 1.442695
    %v2965 = vpow.pop %v2964
    %v2966 = vmul.f32 %v2870, 1.442695
    %v2967 = vpow.pop %v2966
    %v2968 = vmul.f32 %v2871, 1.442695
    %v2969 = vpow.pop %v2968
    %v2970 = vmul.f32 %v2872, 1.442695
    %v2971 = vpow.pop %v2970
    %v2972 = vmul.f32 %v2873, 1.442695
    %v2973 = vpow.pop %v2972
    %v2974 = vmul.f32 %v2874, 1.442695
    %v2975 = vpow.pop %v2974
    %v2976 = vmul.f32 %v2875, 1.442695
    %v2977 = vpow.pop %v2976
    %v2978 = vmul.f32 %v2876, 1.442695
    %v2979 = vpow.pop %v2978
    %v2980 = vmul.f32 %v2877, 1.442695
    %v2981 = vpow.pop %v2980
    %v2982 = vmul.f32 %v2878, 1.442695
    %v2983 = vpow.pop %v2982
    %v2984 = vmul.f32 %v2879, 1.442695
    %v2985 = vpow.pop %v2984
    %v2986 = vmul.f32 %v2880, 1.442695
    %v2987 = vpow.pop %v2986
    %v2988 = vmul.f32 %v2881, 1.442695
    %v2989 = vpow.pop %v2988
    %v2990 = vmul.f32 %v2882, 1.442695
    %v2991 = vpow.pop %v2990
    %v2992 = vmul.f32 %v2883, 1.442695
    %v2993 = vpow.pop %v2992
    %v2994 = vmul.f32 %v2884, 1.442695
    %v2995 = vpow.pop %v2994
    %v2996 = vmul.f32 %v2885, 1.442695
    %v2997 = vpow.pop %v2996
    %v2998 = vmul.f32 %v2886, 1.442695
    %v2999 = vpow.pop %v2998
    %v3000 = vmul.f32 %v2887, 1.442695
    %v3001 = vpow.pop %v3000
    %v3002 = vmul.f32 %v2888, 1.442695
    %v3003 = vpow.pop %v3002
    %v3004 = vmul.f32 %v2889, 1.442695
    %v3005 = vpow.pop %v3004
    %v3006 = vmul.f32 %v2890, 1.442695
    %v3007 = vpow.pop %v3006
    %v3008 = vmul.f32 %v2891, 1.442695
    %v3009 = vpow.pop %v3008
    %v3010 = vmul.f32 %v2892, 1.442695
    %v3011 = vpow.pop %v3010
    %v3012 = vmul.f32 %v2893, 1.442695
    %v3013 = vpow.pop %v3012
    %v3014 = vmul.f32 %v2894, 1.442695
    %v3015 = vpow.pop %v3014
    %v3016 = vmul.f32 %v2895, 1.442695
    %v3017 = vpow.pop %v3016
    %v3018 = vmul.f32 %v2896, 1.442695
    %v3019 = vpow.pop %v3018
    %v3020 = vmul.f32 %v2897, 1.442695
    %v3021 = vpow.pop %v3020
    %v3022 = vmul.f32 %v2898, 1.442695
    %v3023 = vpow.pop %v3022
    %v3024 = vmul.f32 %v2899, 1.442695
    %v3025 = vpow.pop %v3024
    %v3026 = vmul.f32 %v2900, 1.442695
    %v3027 = vpow.pop %v3026
    %v3028 = vmul.f32 %v2901, 1.442695
    %v3029 = vpow.pop %v3028
    %3030 = vadd.xlane.f32.xlu0 %v2903
    %v3031 = vpop.xlane.xlu0 %3030
    %3032 = vadd.xlane.f32.xlu0 %v2905
    %v3033 = vpop.xlane.xlu0 %3032
    %3034 = vadd.xlane.f32.xlu0 %v2907
    %v3035 = vpop.xlane.xlu0 %3034
    %3036 = vadd.xlane.f32.xlu0 %v2909
    %v3037 = vpop.xlane.xlu0 %3036
    %3038 = vadd.xlane.f32.xlu0 %v2911
    %v3039 = vpop.xlane.xlu0 %3038
    %3040 = vadd.xlane.f32.xlu0 %v2913
    %v3041 = vpop.xlane.xlu0 %3040
    %3042 = vadd.xlane.f32.xlu0 %v2915
    %v3043 = vpop.xlane.xlu0 %3042
    %3044 = vadd.xlane.f32.xlu0 %v2917
    %v3045 = vpop.xlane.xlu0 %3044
    %3046 = vadd.xlane.f32.xlu0 %v2919
    %v3047 = vpop.xlane.xlu0 %3046
    %3048 = vadd.xlane.f32.xlu0 %v2921
    %v3049 = vpop.xlane.xlu0 %3048
    %3050 = vadd.xlane.f32.xlu0 %v2923
    %v3051 = vpop.xlane.xlu0 %3050
    %3052 = vadd.xlane.f32.xlu0 %v2925
    %v3053 = vpop.xlane.xlu0 %3052
    %3054 = vadd.xlane.f32.xlu0 %v2927
    %v3055 = vpop.xlane.xlu0 %3054
    %3056 = vadd.xlane.f32.xlu0 %v2929
    %v3057 = vpop.xlane.xlu0 %3056
    %3058 = vadd.xlane.f32.xlu0 %v2931
    %v3059 = vpop.xlane.xlu0 %3058
    %3060 = vadd.xlane.f32.xlu0 %v2933
    %v3061 = vpop.xlane.xlu0 %3060
    %3062 = vadd.xlane.f32.xlu0 %v2935
    %v3063 = vpop.xlane.xlu0 %3062
    %3064 = vadd.xlane.f32.xlu0 %v2937
    %v3065 = vpop.xlane.xlu0 %3064
    %3066 = vadd.xlane.f32.xlu0 %v2939
    %v3067 = vpop.xlane.xlu0 %3066
    %3068 = vadd.xlane.f32.xlu0 %v2941
    %v3069 = vpop.xlane.xlu0 %3068
    %3070 = vadd.xlane.f32.xlu0 %v2943
    %v3071 = vpop.xlane.xlu0 %3070
    %3072 = vadd.xlane.f32.xlu0 %v2945
    %v3073 = vpop.xlane.xlu0 %3072
    %3074 = vadd.xlane.f32.xlu0 %v2947
    %v3075 = vpop.xlane.xlu0 %3074
    %3076 = vadd.xlane.f32.xlu0 %v2949
    %v3077 = vpop.xlane.xlu0 %3076
    %3078 = vadd.xlane.f32.xlu0 %v2951
    %v3079 = vpop.xlane.xlu0 %3078
    %3080 = vadd.xlane.f32.xlu0 %v2953
    %v3081 = vpop.xlane.xlu0 %3080
    %3082 = vadd.xlane.f32.xlu0 %v2955
    %v3083 = vpop.xlane.xlu0 %3082
    %3084 = vadd.xlane.f32.xlu0 %v2957
    %v3085 = vpop.xlane.xlu0 %3084
    %3086 = vadd.xlane.f32.xlu0 %v2959
    %v3087 = vpop.xlane.xlu0 %3086
    %3088 = vadd.xlane.f32.xlu0 %v2961
    %v3089 = vpop.xlane.xlu0 %3088
    %3090 = vadd.xlane.f32.xlu0 %v2963
    %v3091 = vpop.xlane.xlu0 %3090
    %3092 = vadd.xlane.f32.xlu0 %v2965
    %v3093 = vpop.xlane.xlu0 %3092
    %3094 = vadd.xlane.f32.xlu0 %v2967
    %v3095 = vpop.xlane.xlu0 %3094
    %3096 = vadd.xlane.f32.xlu0 %v2969
    %v3097 = vpop.xlane.xlu0 %3096
    %3098 = vadd.xlane.f32.xlu0 %v2971
    %v3099 = vpop.xlane.xlu0 %3098
    %3100 = vadd.xlane.f32.xlu0 %v2973
    %v3101 = vpop.xlane.xlu0 %3100
    %3102 = vadd.xlane.f32.xlu0 %v2975
    %v3103 = vpop.xlane.xlu0 %3102
    %3104 = vadd.xlane.f32.xlu0 %v2977
    %v3105 = vpop.xlane.xlu0 %3104
    %3106 = vadd.xlane.f32.xlu0 %v2979
    %v3107 = vpop.xlane.xlu0 %3106
    %3108 = vadd.xlane.f32.xlu0 %v2981
    %v3109 = vpop.xlane.xlu0 %3108
    %3110 = vadd.xlane.f32.xlu0 %v2983
    %v3111 = vpop.xlane.xlu0 %3110
    %3112 = vadd.xlane.f32.xlu0 %v2985
    %v3113 = vpop.xlane.xlu0 %3112
    %3114 = vadd.xlane.f32.xlu0 %v2987
    %v3115 = vpop.xlane.xlu0 %3114
    %3116 = vadd.xlane.f32.xlu0 %v2989
    %v3117 = vpop.xlane.xlu0 %3116
    %3118 = vadd.xlane.f32.xlu0 %v2991
    %v3119 = vpop.xlane.xlu0 %3118
    %3120 = vadd.xlane.f32.xlu0 %v2993
    %v3121 = vpop.xlane.xlu0 %3120
    %3122 = vadd.xlane.f32.xlu0 %v2995
    %v3123 = vpop.xlane.xlu0 %3122
    %3124 = vadd.xlane.f32.xlu0 %v2997
    %v3125 = vpop.xlane.xlu0 %3124
    %3126 = vadd.xlane.f32.xlu0 %v2999
    %v3127 = vpop.xlane.xlu0 %3126
    %3128 = vadd.xlane.f32.xlu0 %v3001
    %v3129 = vpop.xlane.xlu0 %3128
    %3130 = vadd.xlane.f32.xlu0 %v3003
    %v3131 = vpop.xlane.xlu0 %3130
    %3132 = vadd.xlane.f32.xlu0 %v3005
    %v3133 = vpop.xlane.xlu0 %3132
    %3134 = vadd.xlane.f32.xlu0 %v3007
    %v3135 = vpop.xlane.xlu0 %3134
    %3136 = vadd.xlane.f32.xlu0 %v3009
    %v3137 = vpop.xlane.xlu0 %3136
    %3138 = vadd.xlane.f32.xlu0 %v3011
    %v3139 = vpop.xlane.xlu0 %3138
    %3140 = vadd.xlane.f32.xlu0 %v3013
    %v3141 = vpop.xlane.xlu0 %3140
    %3142 = vadd.xlane.f32.xlu0 %v3015
    %v3143 = vpop.xlane.xlu0 %3142
    %3144 = vadd.xlane.f32.xlu0 %v3017
    %v3145 = vpop.xlane.xlu0 %3144
    %3146 = vadd.xlane.f32.xlu0 %v3019
    %v3147 = vpop.xlane.xlu0 %3146
    %3148 = vadd.xlane.f32.xlu0 %v3021
    %v3149 = vpop.xlane.xlu0 %3148
    %3150 = vadd.xlane.f32.xlu0 %v3023
    %v3151 = vpop.xlane.xlu0 %3150
    %3152 = vadd.xlane.f32.xlu0 %v3025
    %v3153 = vpop.xlane.xlu0 %3152
    %3154 = vadd.xlane.f32.xlu0 %v3027
    %v3155 = vpop.xlane.xlu0 %3154
    %3156 = vadd.xlane.f32.xlu0 %v3029
    %v3157 = vpop.xlane.xlu0 %3156
    %v3158 = vlog2.pop %v3031
    %v3159 = vmul.f32 %v3158, 0.6931472
    %v3160 = vlog2.pop %v3033
    %v3161 = vmul.f32 %v3160, 0.6931472
    %v3162 = vlog2.pop %v3035
    %v3163 = vmul.f32 %v3162, 0.6931472
    %v3164 = vlog2.pop %v3037
    %v3165 = vmul.f32 %v3164, 0.6931472
    %v3166 = vlog2.pop %v3039
    %v3167 = vmul.f32 %v3166, 0.6931472
    %v3168 = vlog2.pop %v3041
    %v3169 = vmul.f32 %v3168, 0.6931472
    %v3170 = vlog2.pop %v3043
    %v3171 = vmul.f32 %v3170, 0.6931472
    %v3172 = vlog2.pop %v3045
    %v3173 = vmul.f32 %v3172, 0.6931472
    %v3174 = vlog2.pop %v3047
    %v3175 = vmul.f32 %v3174, 0.6931472
    %v3176 = vlog2.pop %v3049
    %v3177 = vmul.f32 %v3176, 0.6931472
    %v3178 = vlog2.pop %v3051
    %v3179 = vmul.f32 %v3178, 0.6931472
    %v3180 = vlog2.pop %v3053
    %v3181 = vmul.f32 %v3180, 0.6931472
    %v3182 = vlog2.pop %v3055
    %v3183 = vmul.f32 %v3182, 0.6931472
    %v3184 = vlog2.pop %v3057
    %v3185 = vmul.f32 %v3184, 0.6931472
    %v3186 = vlog2.pop %v3059
    %v3187 = vmul.f32 %v3186, 0.6931472
    %v3188 = vlog2.pop %v3061
    %v3189 = vmul.f32 %v3188, 0.6931472
    %v3190 = vlog2.pop %v3063
    %v3191 = vmul.f32 %v3190, 0.6931472
    %v3192 = vlog2.pop %v3065
    %v3193 = vmul.f32 %v3192, 0.6931472
    %v3194 = vlog2.pop %v3067
    %v3195 = vmul.f32 %v3194, 0.6931472
    %v3196 = vlog2.pop %v3069
    %v3197 = vmul.f32 %v3196, 0.6931472
    %v3198 = vlog2.pop %v3071
    %v3199 = vmul.f32 %v3198, 0.6931472
    %v3200 = vlog2.pop %v3073
    %v3201 = vmul.f32 %v3200, 0.6931472
    %v3202 = vlog2.pop %v3075
    %v3203 = vmul.f32 %v3202, 0.6931472
    %v3204 = vlog2.pop %v3077
    %v3205 = vmul.f32 %v3204, 0.6931472
    %v3206 = vlog2.pop %v3079
    %v3207 = vmul.f32 %v3206, 0.6931472
    %v3208 = vlog2.pop %v3081
    %v3209 = vmul.f32 %v3208, 0.6931472
    %v3210 = vlog2.pop %v3083
    %v3211 = vmul.f32 %v3210, 0.6931472
    %v3212 = vlog2.pop %v3085
    %v3213 = vmul.f32 %v3212, 0.6931472
    %v3214 = vlog2.pop %v3087
    %v3215 = vmul.f32 %v3214, 0.6931472
    %v3216 = vlog2.pop %v3089
    %v3217 = vmul.f32 %v3216, 0.6931472
    %v3218 = vlog2.pop %v3091
    %v3219 = vmul.f32 %v3218, 0.6931472
    %v3220 = vlog2.pop %v3093
    %v3221 = vmul.f32 %v3220, 0.6931472
    %v3222 = vlog2.pop %v3095
    %v3223 = vmul.f32 %v3222, 0.6931472
    %v3224 = vlog2.pop %v3097
    %v3225 = vmul.f32 %v3224, 0.6931472
    %v3226 = vlog2.pop %v3099
    %v3227 = vmul.f32 %v3226, 0.6931472
    %v3228 = vlog2.pop %v3101
    %v3229 = vmul.f32 %v3228, 0.6931472
    %v3230 = vlog2.pop %v3103
    %v3231 = vmul.f32 %v3230, 0.6931472
    %v3232 = vlog2.pop %v3105
    %v3233 = vmul.f32 %v3232, 0.6931472
    %v3234 = vlog2.pop %v3107
    %v3235 = vmul.f32 %v3234, 0.6931472
    %v3236 = vlog2.pop %v3109
    %v3237 = vmul.f32 %v3236, 0.6931472
    %v3238 = vlog2.pop %v3111
    %v3239 = vmul.f32 %v3238, 0.6931472
    %v3240 = vlog2.pop %v3113
    %v3241 = vmul.f32 %v3240, 0.6931472
    %v3242 = vlog2.pop %v3115
    %v3243 = vmul.f32 %v3242, 0.6931472
    %v3244 = vlog2.pop %v3117
    %v3245 = vmul.f32 %v3244, 0.6931472
    %v3246 = vlog2.pop %v3119
    %v3247 = vmul.f32 %v3246, 0.6931472
    %v3248 = vlog2.pop %v3121
    %v3249 = vmul.f32 %v3248, 0.6931472
    %v3250 = vlog2.pop %v3123
    %v3251 = vmul.f32 %v3250, 0.6931472
    %v3252 = vlog2.pop %v3125
    %v3253 = vmul.f32 %v3252, 0.6931472
    %v3254 = vlog2.pop %v3127
    %v3255 = vmul.f32 %v3254, 0.6931472
    %v3256 = vlog2.pop %v3129
    %v3257 = vmul.f32 %v3256, 0.6931472
    %v3258 = vlog2.pop %v3131
    %v3259 = vmul.f32 %v3258, 0.6931472
    %v3260 = vlog2.pop %v3133
    %v3261 = vmul.f32 %v3260, 0.6931472
    %v3262 = vlog2.pop %v3135
    %v3263 = vmul.f32 %v3262, 0.6931472
    %v3264 = vlog2.pop %v3137
    %v3265 = vmul.f32 %v3264, 0.6931472
    %v3266 = vlog2.pop %v3139
    %v3267 = vmul.f32 %v3266, 0.6931472
    %v3268 = vlog2.pop %v3141
    %v3269 = vmul.f32 %v3268, 0.6931472
    %v3270 = vlog2.pop %v3143
    %v3271 = vmul.f32 %v3270, 0.6931472
    %v3272 = vlog2.pop %v3145
    %v3273 = vmul.f32 %v3272, 0.6931472
    %v3274 = vlog2.pop %v3147
    %v3275 = vmul.f32 %v3274, 0.6931472
    %v3276 = vlog2.pop %v3149
    %v3277 = vmul.f32 %v3276, 0.6931472
    %v3278 = vlog2.pop %v3151
    %v3279 = vmul.f32 %v3278, 0.6931472
    %v3280 = vlog2.pop %v3153
    %v3281 = vmul.f32 %v3280, 0.6931472
    %v3282 = vlog2.pop %v3155
    %v3283 = vmul.f32 %v3282, 0.6931472
    %v3284 = vlog2.pop %v3157
    %v3285 = vmul.f32 %v3284, 0.6931472
    %v3286 = vsub.f32 %v2838, %v3159
    %v3287 = vsub.f32 %v2839, %v3161
    %v3288 = vsub.f32 %v2840, %v3163
    %v3289 = vsub.f32 %v2841, %v3165
    %v3290 = vsub.f32 %v2842, %v3167
    %v3291 = vsub.f32 %v2843, %v3169
    %v3292 = vsub.f32 %v2844, %v3171
    %v3293 = vsub.f32 %v2845, %v3173
    %v3294 = vsub.f32 %v2846, %v3175
    %v3295 = vsub.f32 %v2847, %v3177
    %v3296 = vsub.f32 %v2848, %v3179
    %v3297 = vsub.f32 %v2849, %v3181
    %v3298 = vsub.f32 %v2850, %v3183
    %v3299 = vsub.f32 %v2851, %v3185
    %v3300 = vsub.f32 %v2852, %v3187
    %v3301 = vsub.f32 %v2853, %v3189
    %v3302 = vsub.f32 %v2854, %v3191
    %v3303 = vsub.f32 %v2855, %v3193
    %v3304 = vsub.f32 %v2856, %v3195
    %v3305 = vsub.f32 %v2857, %v3197
    %v3306 = vsub.f32 %v2858, %v3199
    %v3307 = vsub.f32 %v2859, %v3201
    %v3308 = vsub.f32 %v2860, %v3203
    %v3309 = vsub.f32 %v2861, %v3205
    %v3310 = vsub.f32 %v2862, %v3207
    %v3311 = vsub.f32 %v2863, %v3209
    %v3312 = vsub.f32 %v2864, %v3211
    %v3313 = vsub.f32 %v2865, %v3213
    %v3314 = vsub.f32 %v2866, %v3215
    %v3315 = vsub.f32 %v2867, %v3217
    %v3316 = vsub.f32 %v2868, %v3219
    %v3317 = vsub.f32 %v2869, %v3221
    %v3318 = vsub.f32 %v2870, %v3223
    %v3319 = vsub.f32 %v2871, %v3225
    %v3320 = vsub.f32 %v2872, %v3227
    %v3321 = vsub.f32 %v2873, %v3229
    %v3322 = vsub.f32 %v2874, %v3231
    %v3323 = vsub.f32 %v2875, %v3233
    %v3324 = vsub.f32 %v2876, %v3235
    %v3325 = vsub.f32 %v2877, %v3237
    %v3326 = vsub.f32 %v2878, %v3239
    %v3327 = vsub.f32 %v2879, %v3241
    %v3328 = vsub.f32 %v2880, %v3243
    %v3329 = vsub.f32 %v2881, %v3245
    %v3330 = vsub.f32 %v2882, %v3247
    %v3331 = vsub.f32 %v2883, %v3249
    %v3332 = vsub.f32 %v2884, %v3251
    %v3333 = vsub.f32 %v2885, %v3253
    %v3334 = vsub.f32 %v2886, %v3255
    %v3335 = vsub.f32 %v2887, %v3257
    %v3336 = vsub.f32 %v2888, %v3259
    %v3337 = vsub.f32 %v2889, %v3261
    %v3338 = vsub.f32 %v2890, %v3263
    %v3339 = vsub.f32 %v2891, %v3265
    %v3340 = vsub.f32 %v2892, %v3267
    %v3341 = vsub.f32 %v2893, %v3269
    %v3342 = vsub.f32 %v2894, %v3271
    %v3343 = vsub.f32 %v2895, %v3273
    %v3344 = vsub.f32 %v2896, %v3275
    %v3345 = vsub.f32 %v2897, %v3277
    %v3346 = vsub.f32 %v2898, %v3279
    %v3347 = vsub.f32 %v2899, %v3281
    %v3348 = vsub.f32 %v2900, %v3283
    %v3349 = vsub.f32 %v2901, %v3285
    %3350 = vst [vmem:[%s5] sm:$0xff] %v3286
    %3351 = vst [vmem:[%s5 + $0x8] sm:$0xff] %v3287
    %3352 = vst [vmem:[%s5 + $0x10] sm:$0xff] %v3288
    %3353 = vst [vmem:[%s5 + $0x18] sm:$0xff] %v3289
    %3354 = vst [vmem:[%s5 + $0x20] sm:$0xff] %v3290
    %3355 = vst [vmem:[%s5 + $0x28] sm:$0xff] %v3291
    %3356 = vst [vmem:[%s5 + $0x30] sm:$0xff] %v3292
    %3357 = vst [vmem:[%s5 + $0x38] sm:$0xff] %v3293
    %3358 = vst [vmem:[%s5 + $0x40] sm:$0xff] %v3294
    %3359 = vst [vmem:[%s5 + $0x48] sm:$0xff] %v3295
    %3360 = vst [vmem:[%s5 + $0x50] sm:$0xff] %v3296
    %3361 = vst [vmem:[%s5 + $0x58] sm:$0xff] %v3297
    %3362 = vst [vmem:[%s5 + $0x60] sm:$0xff] %v3298
    %3363 = vst [vmem:[%s5 + $0x68] sm:$0xff] %v3299
    %3364 = vst [vmem:[%s5 + $0x70] sm:$0xff] %v3300
    %3365 = vst [vmem:[%s5 + $0x78] sm:$0xff] %v3301
    %3366 = vst [vmem:[%s5 + $0x80] sm:$0xff] %v3302
    %3367 = vst [vmem:[%s5 + $0x88] sm:$0xff] %v3303
    %3368 = vst [vmem:[%s5 + $0x90] sm:$0xff] %v3304
    %3369 = vst [vmem:[%s5 + $0x98] sm:$0xff] %v3305
    %3370 = vst [vmem:[%s5 + $0xa0] sm:$0xff] %v3306
    %3371 = vst [vmem:[%s5 + $0xa8] sm:$0xff] %v3307
    %3372 = vst [vmem:[%s5 + $0xb0] sm:$0xff] %v3308
    %3373 = vst [vmem:[%s5 + $0xb8] sm:$0xff] %v3309
    %3374 = vst [vmem:[%s5 + $0xc0] sm:$0xff] %v3310
    %3375 = vst [vmem:[%s5 + $0xc8] sm:$0xff] %v3311
    %3376 = vst [vmem:[%s5 + $0xd0] sm:$0xff] %v3312
    %3377 = vst [vmem:[%s5 + $0xd8] sm:$0xff] %v3313
    %3378 = vst [vmem:[%s5 + $0xe0] sm:$0xff] %v3314
    %3379 = vst [vmem:[%s5 + $0xe8] sm:$0xff] %v3315
    %3380 = vst [vmem:[%s5 + $0xf0] sm:$0xff] %v3316
    %3381 = vst [vmem:[%s5 + $0xf8] sm:$0xff] %v3317
    %3382 = vst [vmem:[%s5 + $0x100] sm:$0xff] %v3318
    %3383 = vst [vmem:[%s5 + $0x108] sm:$0xff] %v3319
    %3384 = vst [vmem:[%s5 + $0x110] sm:$0xff] %v3320
    %3385 = vst [vmem:[%s5 + $0x118] sm:$0xff] %v3321
    %3386 = vst [vmem:[%s5 + $0x120] sm:$0xff] %v3322
    %3387 = vst [vmem:[%s5 + $0x128] sm:$0xff] %v3323
    %3388 = vst [vmem:[%s5 + $0x130] sm:$0xff] %v3324
    %3389 = vst [vmem:[%s5 + $0x138] sm:$0xff] %v3325
    %3390 = vst [vmem:[%s5 + $0x140] sm:$0xff] %v3326
    %3391 = vst [vmem:[%s5 + $0x148] sm:$0xff] %v3327
    %3392 = vst [vmem:[%s5 + $0x150] sm:$0xff] %v3328
    %3393 = vst [vmem:[%s5 + $0x158] sm:$0xff] %v3329
    %3394 = vst [vmem:[%s5 + $0x160] sm:$0xff] %v3330
    %3395 = vst [vmem:[%s5 + $0x168] sm:$0xff] %v3331
    %3396 = vst [vmem:[%s5 + $0x170] sm:$0xff] %v3332
    %3397 = vst [vmem:[%s5 + $0x178] sm:$0xff] %v3333
    %3398 = vst [vmem:[%s5 + $0x180] sm:$0xff] %v3334
    %3399 = vst [vmem:[%s5 + $0x188] sm:$0xff] %v3335
    %3400 = vst [vmem:[%s5 + $0x190] sm:$0xff] %v3336
    %3401 = vst [vmem:[%s5 + $0x198] sm:$0xff] %v3337
    %3402 = vst [vmem:[%s5 + $0x1a0] sm:$0xff] %v3338
    %3403 = vst [vmem:[%s5 + $0x1a8] sm:$0xff] %v3339
    %3404 = vst [vmem:[%s5 + $0x1b0] sm:$0xff] %v3340
    %3405 = vst [vmem:[%s5 + $0x1b8] sm:$0xff] %v3341
    %3406 = vst [vmem:[%s5 + $0x1c0] sm:$0xff] %v3342
    %3407 = vst [vmem:[%s5 + $0x1c8] sm:$0xff] %v3343
    %3408 = vst [vmem:[%s5 + $0x1d0] sm:$0xff] %v3344
    %3409 = vst [vmem:[%s5 + $0x1d8] sm:$0xff] %v3345
    %3410 = vst [vmem:[%s5 + $0x1e0] sm:$0xff] %v3346
    %3411 = vst [vmem:[%s5 + $0x1e8] sm:$0xff] %v3347
    %3412 = vst [vmem:[%s5 + $0x1f0] sm:$0xff] %v3348
    %3413 = vst [vmem:[%s5 + $0x1f8] sm:$0xff] %v3349
    // Predicated region
    $region26: #{gcn_forward.3} parent=1 // pred_check
      _
    $region27: #{gcn_forward.3} parent=1 // pred_check_branch
      %3415 = sbr.rel (0) target = $region29
    $region28: #{gcn_forward.3} parent=1 // pred_region
      _
    $region29: #{gcn_forward.3} parent=1 // pred_fallthru
      _
    // Predicated region
    $region30: #{gcn_forward.3} parent=1 // pred_check
      _
    $region31: #{gcn_forward.3} parent=1 // pred_check_branch
      %3417 = sbr.rel (0) target = $region33
    $region32: #{gcn_forward.3} parent=1 // pred_region
      _
    $region33: #{gcn_forward.3} parent=1 // pred_fallthru
      _
    %3418 = vsyncpa [#allocation3], 1

</llo_original>
